<compile_context>
chip_gen: v7x
topology: tpu7x:2x2x1
jax: 0.10.0
libtpu: 0.0.40
codegen_flags: <defaults>
</compile_context>

<pallas_src>
import functools

import jax
import jax.numpy as jnp
from jax import lax
from jax.experimental import pallas as pl
from jax.experimental.pallas import tpu as pltpu


def _round_up(v, m):
    return (v + m - 1) // m * m


def _pick_tile(m, cap=512):
    # Largest divisor of m that is a multiple of 8 and <= cap; fall back to the full extent.
    for t in range(min(cap, m), 7, -1):
        if m % t == 0 and t % 8 == 0:
            return t
    return m


# ---------------- pass 1: conv as 9 shifted matmuls + per-image BN partial sums ----------------
def _conv_stats_kernel(x_ref, w_ref, mask_ref, conv_ref, stats_ref, *, H, W):
    Wp = W + 2
    HWp = H * Wp
    cpad = conv_ref.shape[-1]

    # 3x3 conv on the flattened padded image: for tap (ky, kx) the needed rows are a
    # contiguous, row-shifted slice of the flat (rows, Cin) view. Output rows follow the
    # (y, x) raster over (H, W+2); the x >= W columns are horizontal-wrap junk, excluded
    # from the statistics below and sliced off in the wrapper.
    for t in range(9):
        ky, kx = t // 3, t % 3
        base = ky * Wp + kx
        v = x_ref[0, base:base + HWp, :]                       # (H*Wp, Cin_pad)
        contrib = jnp.dot(v, w_ref[t], preferred_element_type=jnp.float32)
        if t == 0:
            conv_ref[...] = contrib                            # accumulate in the output block
        else:
            conv_ref[...] += contrib

    acc = conv_ref[...]                                        # (H*Wp, Cout_pad)
    masked = acc * mask_ref[...]                               # zero the wrap columns
    s = jnp.sum(masked, axis=0, keepdims=True)                 # per-channel sum
    q = jnp.sum(masked * acc, axis=0, keepdims=True)           # per-channel sum of squares
    stats_ref[...] = jnp.concatenate(
        [s, q, jnp.zeros((6, cpad), jnp.float32)], axis=0)[None]


# ---------------- pass 2: normalize (single scale/shift) + exact GELU ----------------
def _bn_gelu_kernel(conv_ref, scale_ref, shift_ref, o_ref):
    y = conv_ref[...] * scale_ref[...] + shift_ref[...]
    o_ref[...] = 0.5 * y * (1.0 + lax.erf(y * 0.7071067811865476))


def conv_layer_forward(x_nchw, weight, bias, gamma, beta, *, eps=1e-3):
    """x_nchw: (N, Cin, H, W) f32; weight: (Cout, Cin, 3, 3); bias/gamma/beta: (Cout,).

    `bias` is accepted for module parity but unused: under training-mode BatchNorm the
    conv bias cancels exactly in the mean subtraction (variance is unchanged too)."""
    del bias
    N, Cin, H, W = x_nchw.shape
    Cout = weight.shape[0]
    Wp = W + 2                      # +1 left / +1 right zero pad
    Hg = H + 3                      # +1 top / +1 bottom pad + 1 guard row for the flat shifts
    HWp = H * Wp
    FR = Hg * Wp
    Cin_p = _round_up(Cin, 8)
    Cout_p = _round_up(Cout, 128)
    f32 = jnp.float32

    # ---- glue: NCHW -> padded NHWC, flattened rows ----
    x_nhwc = jnp.transpose(x_nchw, (0, 2, 3, 1)).astype(f32)
    xp = jnp.pad(x_nhwc, ((0, 0), (1, 2), (1, 1), (0, Cin_p - Cin)))
    x_flat = xp.reshape(N, FR, Cin_p)

    # per-tap weight matrices (9, Cin_pad, Cout_pad); padded channels are zero.
    w_taps = jnp.transpose(weight, (2, 3, 1, 0)).astype(f32)            # (ky, kx, Cin, Cout)
    w_taps = jnp.pad(w_taps, ((0, 0), (0, 0), (0, Cin_p - Cin), (0, Cout_p - Cout)))
    w_taps = w_taps.reshape(9, Cin_p, Cout_p)

    # validity mask over the (H, W+2) raster: columns x >= W are wrap junk.
    cols = jnp.arange(HWp, dtype=jnp.int32) % Wp
    row_mask = (cols < W).astype(f32).reshape(HWp, 1)

    cparams = pltpu.CompilerParams(
        dimension_semantics=("parallel",),
        vmem_limit_bytes=32 * 1024 * 1024,
    )

    conv_full, stats = pl.pallas_call(
        functools.partial(_conv_stats_kernel, H=H, W=W),
        grid=(N,),
        in_specs=[
            pl.BlockSpec((1, FR, Cin_p), lambda n: (n, 0, 0)),
            pl.BlockSpec((9, Cin_p, Cout_p), lambda n: (0, 0, 0)),
            pl.BlockSpec((HWp, 1), lambda n: (0, 0)),
        ],
        out_specs=(
            pl.BlockSpec((HWp, Cout_p), lambda n: (n, 0)),
            pl.BlockSpec((1, 8, Cout_p), lambda n: (n, 0, 0)),
        ),
        out_shape=(
            jax.ShapeDtypeStruct((N * HWp, Cout_p), f32),
            jax.ShapeDtypeStruct((N, 8, Cout_p), f32),
        ),
        compiler_params=cparams,
    )(x_flat, w_taps, row_mask)

    # ---- tiny glue: global (over N*H*W) BN stats -> one scale/shift row ----
    count = float(N * H * W)
    ch_sum = jnp.sum(stats[:, 0, :], axis=0)
    ch_sq = jnp.sum(stats[:, 1, :], axis=0)
    mean = ch_sum / count
    var = jnp.maximum(ch_sq / count - mean * mean, 0.0)        # biased (training-mode) variance
    gamma_p = jnp.pad(gamma.astype(f32), (0, Cout_p - Cout), constant_values=1.0)
    beta_p = jnp.pad(beta.astype(f32), (0, Cout_p - Cout))
    scale = gamma_p * lax.rsqrt(var + eps)
    shift = beta_p - mean * scale
    scale_row = scale.reshape(1, Cout_p)
    shift_row = shift.reshape(1, Cout_p)

    # ---- pass 2: normalize + GELU over lane-dense row tiles ----
    M = N * HWp
    tile_m = _pick_tile(M)
    out_full = pl.pallas_call(
        _bn_gelu_kernel,
        grid=(M // tile_m,),
        in_specs=[
            pl.BlockSpec((tile_m, Cout_p), lambda i: (i, 0)),
            pl.BlockSpec((1, Cout_p), lambda i: (0, 0)),
            pl.BlockSpec((1, Cout_p), lambda i: (0, 0)),
        ],
        out_specs=pl.BlockSpec((tile_m, Cout_p), lambda i: (i, 0)),
        out_shape=jax.ShapeDtypeStruct((M, Cout_p), f32),
        compiler_params=cparams,
    )(conv_full, scale_row, shift_row)

    # ---- glue: drop wrap columns / channel padding, back to NCHW ----
    out = out_full.reshape(N, H, Wp, Cout_p)[:, :, :W, :Cout]
    return jnp.transpose(out, (0, 3, 1, 2))


def _reference(x, weight, bias, gamma, beta, eps=1e-3):
    conv = lax.conv_general_dilated(
        x, weight, window_strides=(1, 1), padding=((1, 1), (1, 1)),
        dimension_numbers=("NCHW", "OIHW", "NCHW"))
    conv = conv + bias[None, :, None, None]
    mean = conv.mean(axis=(0, 2, 3), keepdims=True)
    var = ((conv - mean) ** 2).mean(axis=(0, 2, 3), keepdims=True)  # biased, training-mode BN
    y = (conv - mean) / jnp.sqrt(var + eps)
    y = y * gamma[None, :, None, None] + beta[None, :, None, None]
    return jax.nn.gelu(y, approximate=False)


if __name__ == "__main__":
    N, Cin, Cout, H, W = 2, 4, 8, 16, 16

    key = jax.random.PRNGKey(0)
    kx, kw, kb, kg, kbe = jax.random.split(key, 5)
    x = jax.random.normal(kx, (N, Cin, H, W), dtype=jnp.float32)
    weight = 0.1 * jax.random.normal(kw, (Cout, Cin, 3, 3), dtype=jnp.float32)
    bias = 0.1 * jax.random.normal(kb, (Cout,), dtype=jnp.float32)
    gamma = 1.0 + 0.1 * jax.random.normal(kg, (Cout,), dtype=jnp.float32)
    beta = 0.1 * jax.random.normal(kbe, (Cout,), dtype=jnp.float32)

    out = jax.block_until_ready(conv_layer_forward(x, weight, bias, gamma, beta))

    ref = _reference(x, weight, bias, gamma, beta)
    assert out.shape == (N, Cout, H, W)
    assert jnp.allclose(out, ref, atol=5e-2, rtol=5e-2), float(jnp.abs(out - ref).max())

    print("KERNEL_OK")
</pallas_src>

<mosaic_0001>
module attributes {stable_mosaic.version = 11 : i64} {
  func.func @_conv_stats_kernel(%arg0: i32, %arg1: memref<1x342x8xf32, #tpu.memory_space<vmem>>, %arg2: memref<9x8x128xf32, #tpu.memory_space<vmem>>, %arg3: memref<288x1xf32, #tpu.memory_space<vmem>>, %arg4: memref<288x128xf32, #tpu.memory_space<vmem>>, %arg5: memref<1x8x128xf32, #tpu.memory_space<vmem>>) attributes {dimension_semantics = [#tpu.dimension_semantics<parallel>], iteration_bounds = array<i64: 2>, scalar_prefetch = 0 : i64, scratch_operands = 0 : i64, tpu.core_type = #tpu.core_type<tc>, window_params = [{transform_indices = @transform_0, window_bounds = array<i64: 1, 342, 8>}, {pipeline_mode = #tpu.pipeline_mode<synchronous>, transform_indices = @transform_1, window_bounds = array<i64: 9, 8, 128>}, {pipeline_mode = #tpu.pipeline_mode<synchronous>, transform_indices = @transform_2, window_bounds = array<i64: 288, 1>}, {transform_indices = @transform_3, window_bounds = array<i64: 288, 128>}, {transform_indices = @transform_4, window_bounds = array<i64: 1, 8, 128>}]} {
    %c0 = arith.constant 0 : index
    %c0_0 = arith.constant 0 : index
    %c0_1 = arith.constant 0 : index
    %0 = vector.load %arg1[%c0, %c0_0, %c0_1] : memref<1x342x8xf32, #tpu.memory_space<vmem>>, vector<1x288x8xf32>
    %1 = vector.shape_cast %0 : vector<1x288x8xf32> to vector<288x8xf32>
    %c0_2 = arith.constant 0 : index
    %c0_3 = arith.constant 0 : index
    %c0_4 = arith.constant 0 : index
    %2 = vector.load %arg2[%c0_2, %c0_3, %c0_4] : memref<9x8x128xf32, #tpu.memory_space<vmem>>, vector<1x8x128xf32>
    %3 = vector.shape_cast %2 : vector<1x8x128xf32> to vector<8x128xf32>
    %cst = arith.constant dense<0.000000e+00> : vector<288x128xf32>
    %4 = tpu.matmul %1, %3, %cst {dimension_numbers = #tpu.dot_dimension_numbers<[1], [0], [0], [1], [0, 0, 1, 1], [], []>} : vector<288x8xf32>, vector<8x128xf32>, vector<288x128xf32> -> vector<288x128xf32>
    %c0_5 = arith.constant 0 : index
    %c0_6 = arith.constant 0 : index
    %5 = vector.load %arg4[%c0_5, %c0_6] : memref<288x128xf32, #tpu.memory_space<vmem>>, vector<288x128xf32>
    tpu.vector_store %arg4[%c0_5, %c0_6], %4 {strides = array<i32>} : memref<288x128xf32, #tpu.memory_space<vmem>>, vector<288x128xf32>,
    %c0_7 = arith.constant 0 : index
    %c1 = arith.constant 1 : index
    %c0_8 = arith.constant 0 : index
    %6 = vector.load %arg1[%c0_7, %c1, %c0_8] : memref<1x342x8xf32, #tpu.memory_space<vmem>>, vector<1x288x8xf32>
    %7 = vector.shape_cast %6 : vector<1x288x8xf32> to vector<288x8xf32>
    %c1_9 = arith.constant 1 : index
    %c0_10 = arith.constant 0 : index
    %c0_11 = arith.constant 0 : index
    %8 = vector.load %arg2[%c1_9, %c0_10, %c0_11] : memref<9x8x128xf32, #tpu.memory_space<vmem>>, vector<1x8x128xf32>
    %9 = vector.shape_cast %8 : vector<1x8x128xf32> to vector<8x128xf32>
    %cst_12 = arith.constant dense<0.000000e+00> : vector<288x128xf32>
    %10 = tpu.matmul %7, %9, %cst_12 {dimension_numbers = #tpu.dot_dimension_numbers<[1], [0], [0], [1], [0, 0, 1, 1], [], []>} : vector<288x8xf32>, vector<8x128xf32>, vector<288x128xf32> -> vector<288x128xf32>
    %c0_13 = arith.constant 0 : index
    %c0_14 = arith.constant 0 : index
    %11 = vector.load %arg4[%c0_13, %c0_14] : memref<288x128xf32, #tpu.memory_space<vmem>>, vector<288x128xf32>
    %12 = arith.addf %11, %10 : vector<288x128xf32>
    %c0_15 = arith.constant 0 : index
    %c0_16 = arith.constant 0 : index
    %13 = vector.load %arg4[%c0_15, %c0_16] : memref<288x128xf32, #tpu.memory_space<vmem>>, vector<288x128xf32>
    tpu.vector_store %arg4[%c0_15, %c0_16], %12 {strides = array<i32>} : memref<288x128xf32, #tpu.memory_space<vmem>>, vector<288x128xf32>,
    %c0_17 = arith.constant 0 : index
    %c2 = arith.constant 2 : index
    %c0_18 = arith.constant 0 : index
    %14 = vector.load %arg1[%c0_17, %c2, %c0_18] : memref<1x342x8xf32, #tpu.memory_space<vmem>>, vector<1x288x8xf32>
    %15 = vector.shape_cast %14 : vector<1x288x8xf32> to vector<288x8xf32>
    %c2_19 = arith.constant 2 : index
    %c0_20 = arith.constant 0 : index
    %c0_21 = arith.constant 0 : index
    %16 = vector.load %arg2[%c2_19, %c0_20, %c0_21] : memref<9x8x128xf32, #tpu.memory_space<vmem>>, vector<1x8x128xf32>
    %17 = vector.shape_cast %16 : vector<1x8x128xf32> to vector<8x128xf32>
    %cst_22 = arith.constant dense<0.000000e+00> : vector<288x128xf32>
    %18 = tpu.matmul %15, %17, %cst_22 {dimension_numbers = #tpu.dot_dimension_numbers<[1], [0], [0], [1], [0, 0, 1, 1], [], []>} : vector<288x8xf32>, vector<8x128xf32>, vector<288x128xf32> -> vector<288x128xf32>
    %c0_23 = arith.constant 0 : index
    %c0_24 = arith.constant 0 : index
    %19 = vector.load %arg4[%c0_23, %c0_24] : memref<288x128xf32, #tpu.memory_space<vmem>>, vector<288x128xf32>
    %20 = arith.addf %19, %18 : vector<288x128xf32>
    %c0_25 = arith.constant 0 : index
    %c0_26 = arith.constant 0 : index
    %21 = vector.load %arg4[%c0_25, %c0_26] : memref<288x128xf32, #tpu.memory_space<vmem>>, vector<288x128xf32>
    tpu.vector_store %arg4[%c0_25, %c0_26], %20 {strides = array<i32>} : memref<288x128xf32, #tpu.memory_space<vmem>>, vector<288x128xf32>,
    %c0_27 = arith.constant 0 : index
    %c18 = arith.constant 18 : index
    %c0_28 = arith.constant 0 : index
    %22 = vector.load %arg1[%c0_27, %c18, %c0_28] : memref<1x342x8xf32, #tpu.memory_space<vmem>>, vector<1x288x8xf32>
    %23 = vector.shape_cast %22 : vector<1x288x8xf32> to vector<288x8xf32>
    %c3 = arith.constant 3 : index
    %c0_29 = arith.constant 0 : index
    %c0_30 = arith.constant 0 : index
    %24 = vector.load %arg2[%c3, %c0_29, %c0_30] : memref<9x8x128xf32, #tpu.memory_space<vmem>>, vector<1x8x128xf32>
    %25 = vector.shape_cast %24 : vector<1x8x128xf32> to vector<8x128xf32>
    %cst_31 = arith.constant dense<0.000000e+00> : vector<288x128xf32>
    %26 = tpu.matmul %23, %25, %cst_31 {dimension_numbers = #tpu.dot_dimension_numbers<[1], [0], [0], [1], [0, 0, 1, 1], [], []>} : vector<288x8xf32>, vector<8x128xf32>, vector<288x128xf32> -> vector<288x128xf32>
    %c0_32 = arith.constant 0 : index
    %c0_33 = arith.constant 0 : index
    %27 = vector.load %arg4[%c0_32, %c0_33] : memref<288x128xf32, #tpu.memory_space<vmem>>, vector<288x128xf32>
    %28 = arith.addf %27, %26 : vector<288x128xf32>
    %c0_34 = arith.constant 0 : index
    %c0_35 = arith.constant 0 : index
    %29 = vector.load %arg4[%c0_34, %c0_35] : memref<288x128xf32, #tpu.memory_space<vmem>>, vector<288x128xf32>
    tpu.vector_store %arg4[%c0_34, %c0_35], %28 {strides = array<i32>} : memref<288x128xf32, #tpu.memory_space<vmem>>, vector<288x128xf32>,
    %c0_36 = arith.constant 0 : index
    %c19 = arith.constant 19 : index
    %c0_37 = arith.constant 0 : index
    %30 = vector.load %arg1[%c0_36, %c19, %c0_37] : memref<1x342x8xf32, #tpu.memory_space<vmem>>, vector<1x288x8xf32>
    %31 = vector.shape_cast %30 : vector<1x288x8xf32> to vector<288x8xf32>
    %c4 = arith.constant 4 : index
    %c0_38 = arith.constant 0 : index
    %c0_39 = arith.constant 0 : index
    %32 = vector.load %arg2[%c4, %c0_38, %c0_39] : memref<9x8x128xf32, #tpu.memory_space<vmem>>, vector<1x8x128xf32>
    %33 = vector.shape_cast %32 : vector<1x8x128xf32> to vector<8x128xf32>
    %cst_40 = arith.constant dense<0.000000e+00> : vector<288x128xf32>
    %34 = tpu.matmul %31, %33, %cst_40 {dimension_numbers = #tpu.dot_dimension_numbers<[1], [0], [0], [1], [0, 0, 1, 1], [], []>} : vector<288x8xf32>, vector<8x128xf32>, vector<288x128xf32> -> vector<288x128xf32>
    %c0_41 = arith.constant 0 : index
    %c0_42 = arith.constant 0 : index
    %35 = vector.load %arg4[%c0_41, %c0_42] : memref<288x128xf32, #tpu.memory_space<vmem>>, vector<288x128xf32>
    %36 = arith.addf %35, %34 : vector<288x128xf32>
    %c0_43 = arith.constant 0 : index
    %c0_44 = arith.constant 0 : index
    %37 = vector.load %arg4[%c0_43, %c0_44] : memref<288x128xf32, #tpu.memory_space<vmem>>, vector<288x128xf32>
    tpu.vector_store %arg4[%c0_43, %c0_44], %36 {strides = array<i32>} : memref<288x128xf32, #tpu.memory_space<vmem>>, vector<288x128xf32>,
    %c0_45 = arith.constant 0 : index
    %c20 = arith.constant 20 : index
    %c0_46 = arith.constant 0 : index
    %38 = vector.load %arg1[%c0_45, %c20, %c0_46] : memref<1x342x8xf32, #tpu.memory_space<vmem>>, vector<1x288x8xf32>
    %39 = vector.shape_cast %38 : vector<1x288x8xf32> to vector<288x8xf32>
    %c5 = arith.constant 5 : index
    %c0_47 = arith.constant 0 : index
    %c0_48 = arith.constant 0 : index
    %40 = vector.load %arg2[%c5, %c0_47, %c0_48] : memref<9x8x128xf32, #tpu.memory_space<vmem>>, vector<1x8x128xf32>
    %41 = vector.shape_cast %40 : vector<1x8x128xf32> to vector<8x128xf32>
    %cst_49 = arith.constant dense<0.000000e+00> : vector<288x128xf32>
    %42 = tpu.matmul %39, %41, %cst_49 {dimension_numbers = #tpu.dot_dimension_numbers<[1], [0], [0], [1], [0, 0, 1, 1], [], []>} : vector<288x8xf32>, vector<8x128xf32>, vector<288x128xf32> -> vector<288x128xf32>
    %c0_50 = arith.constant 0 : index
    %c0_51 = arith.constant 0 : index
    %43 = vector.load %arg4[%c0_50, %c0_51] : memref<288x128xf32, #tpu.memory_space<vmem>>, vector<288x128xf32>
    %44 = arith.addf %43, %42 : vector<288x128xf32>
    %c0_52 = arith.constant 0 : index
    %c0_53 = arith.constant 0 : index
    %45 = vector.load %arg4[%c0_52, %c0_53] : memref<288x128xf32, #tpu.memory_space<vmem>>, vector<288x128xf32>
    tpu.vector_store %arg4[%c0_52, %c0_53], %44 {strides = array<i32>} : memref<288x128xf32, #tpu.memory_space<vmem>>, vector<288x128xf32>,
    %c0_54 = arith.constant 0 : index
    %c36 = arith.constant 36 : index
    %c0_55 = arith.constant 0 : index
    %46 = vector.load %arg1[%c0_54, %c36, %c0_55] : memref<1x342x8xf32, #tpu.memory_space<vmem>>, vector<1x288x8xf32>
    %47 = vector.shape_cast %46 : vector<1x288x8xf32> to vector<288x8xf32>
    %c6 = arith.constant 6 : index
    %c0_56 = arith.constant 0 : index
    %c0_57 = arith.constant 0 : index
    %48 = vector.load %arg2[%c6, %c0_56, %c0_57] : memref<9x8x128xf32, #tpu.memory_space<vmem>>, vector<1x8x128xf32>
    %49 = vector.shape_cast %48 : vector<1x8x128xf32> to vector<8x128xf32>
    %cst_58 = arith.constant dense<0.000000e+00> : vector<288x128xf32>
    %50 = tpu.matmul %47, %49, %cst_58 {dimension_numbers = #tpu.dot_dimension_numbers<[1], [0], [0], [1], [0, 0, 1, 1], [], []>} : vector<288x8xf32>, vector<8x128xf32>, vector<288x128xf32> -> vector<288x128xf32>
    %c0_59 = arith.constant 0 : index
    %c0_60 = arith.constant 0 : index
    %51 = vector.load %arg4[%c0_59, %c0_60] : memref<288x128xf32, #tpu.memory_space<vmem>>, vector<288x128xf32>
    %52 = arith.addf %51, %50 : vector<288x128xf32>
    %c0_61 = arith.constant 0 : index
    %c0_62 = arith.constant 0 : index
    %53 = vector.load %arg4[%c0_61, %c0_62] : memref<288x128xf32, #tpu.memory_space<vmem>>, vector<288x128xf32>
    tpu.vector_store %arg4[%c0_61, %c0_62], %52 {strides = array<i32>} : memref<288x128xf32, #tpu.memory_space<vmem>>, vector<288x128xf32>,
    %c0_63 = arith.constant 0 : index
    %c37 = arith.constant 37 : index
    %c0_64 = arith.constant 0 : index
    %54 = vector.load %arg1[%c0_63, %c37, %c0_64] : memref<1x342x8xf32, #tpu.memory_space<vmem>>, vector<1x288x8xf32>
    %55 = vector.shape_cast %54 : vector<1x288x8xf32> to vector<288x8xf32>
    %c7 = arith.constant 7 : index
    %c0_65 = arith.constant 0 : index
    %c0_66 = arith.constant 0 : index
    %56 = vector.load %arg2[%c7, %c0_65, %c0_66] : memref<9x8x128xf32, #tpu.memory_space<vmem>>, vector<1x8x128xf32>
    %57 = vector.shape_cast %56 : vector<1x8x128xf32> to vector<8x128xf32>
    %cst_67 = arith.constant dense<0.000000e+00> : vector<288x128xf32>
    %58 = tpu.matmul %55, %57, %cst_67 {dimension_numbers = #tpu.dot_dimension_numbers<[1], [0], [0], [1], [0, 0, 1, 1], [], []>} : vector<288x8xf32>, vector<8x128xf32>, vector<288x128xf32> -> vector<288x128xf32>
    %c0_68 = arith.constant 0 : index
    %c0_69 = arith.constant 0 : index
    %59 = vector.load %arg4[%c0_68, %c0_69] : memref<288x128xf32, #tpu.memory_space<vmem>>, vector<288x128xf32>
    %60 = arith.addf %59, %58 : vector<288x128xf32>
    %c0_70 = arith.constant 0 : index
    %c0_71 = arith.constant 0 : index
    %61 = vector.load %arg4[%c0_70, %c0_71] : memref<288x128xf32, #tpu.memory_space<vmem>>, vector<288x128xf32>
    tpu.vector_store %arg4[%c0_70, %c0_71], %60 {strides = array<i32>} : memref<288x128xf32, #tpu.memory_space<vmem>>, vector<288x128xf32>,
    %c0_72 = arith.constant 0 : index
    %c38 = arith.constant 38 : index
    %c0_73 = arith.constant 0 : index
    %62 = vector.load %arg1[%c0_72, %c38, %c0_73] : memref<1x342x8xf32, #tpu.memory_space<vmem>>, vector<1x288x8xf32>
    %63 = vector.shape_cast %62 : vector<1x288x8xf32> to vector<288x8xf32>
    %c8 = arith.constant 8 : index
    %c0_74 = arith.constant 0 : index
    %c0_75 = arith.constant 0 : index
    %64 = vector.load %arg2[%c8, %c0_74, %c0_75] : memref<9x8x128xf32, #tpu.memory_space<vmem>>, vector<1x8x128xf32>
    %65 = vector.shape_cast %64 : vector<1x8x128xf32> to vector<8x128xf32>
    %cst_76 = arith.constant dense<0.000000e+00> : vector<288x128xf32>
    %66 = tpu.matmul %63, %65, %cst_76 {dimension_numbers = #tpu.dot_dimension_numbers<[1], [0], [0], [1], [0, 0, 1, 1], [], []>} : vector<288x8xf32>, vector<8x128xf32>, vector<288x128xf32> -> vector<288x128xf32>
    %c0_77 = arith.constant 0 : index
    %c0_78 = arith.constant 0 : index
    %67 = vector.load %arg4[%c0_77, %c0_78] : memref<288x128xf32, #tpu.memory_space<vmem>>, vector<288x128xf32>
    %68 = arith.addf %67, %66 : vector<288x128xf32>
    %c0_79 = arith.constant 0 : index
    %c0_80 = arith.constant 0 : index
    %69 = vector.load %arg4[%c0_79, %c0_80] : memref<288x128xf32, #tpu.memory_space<vmem>>, vector<288x128xf32>
    tpu.vector_store %arg4[%c0_79, %c0_80], %68 {strides = array<i32>} : memref<288x128xf32, #tpu.memory_space<vmem>>, vector<288x128xf32>,
    %c0_81 = arith.constant 0 : index
    %c0_82 = arith.constant 0 : index
    %70 = vector.load %arg4[%c0_81, %c0_82] : memref<288x128xf32, #tpu.memory_space<vmem>>, vector<288x128xf32>
    %c0_83 = arith.constant 0 : index
    %c0_84 = arith.constant 0 : index
    %71 = vector.load %arg3[%c0_83, %c0_84] : memref<288x1xf32, #tpu.memory_space<vmem>>, vector<288x1xf32>
    %72 = vector.broadcast %71 : vector<288x1xf32> to vector<288x128xf32>
    %73 = arith.mulf %70, %72 : vector<288x128xf32>
    %cst_85 = arith.constant dense<0.000000e+00> : vector<128xf32>
    %74 = vector.multi_reduction <add>, %73, %cst_85 [0] : vector<288x128xf32> to vector<128xf32>
    %75 = vector.shape_cast %74 : vector<128xf32> to vector<1x128xf32>
    %76 = arith.mulf %73, %70 : vector<288x128xf32>
    %cst_86 = arith.constant dense<0.000000e+00> : vector<128xf32>
    %77 = vector.multi_reduction <add>, %76, %cst_86 [0] : vector<288x128xf32> to vector<128xf32>
    %78 = vector.shape_cast %77 : vector<128xf32> to vector<1x128xf32>
    %cst_87 = arith.constant 0.000000e+00 : f32
    %79 = vector.broadcast %cst_87 : f32 to vector<6x128xf32>
    %80 = tpu.concatenate %75, %78, %79 in 0 : vector<1x128xf32>, vector<1x128xf32>, vector<6x128xf32> -> vector<8x128xf32>
    %81 = vector.shape_cast %80 : vector<8x128xf32> to vector<1x8x128xf32>
    %c0_88 = arith.constant 0 : index
    %c0_89 = arith.constant 0 : index
    %c0_90 = arith.constant 0 : index
    %82 = vector.load %arg5[%c0_88, %c0_89, %c0_90] : memref<1x8x128xf32, #tpu.memory_space<vmem>>, vector<1x8x128xf32>
    tpu.vector_store %arg5[%c0_88, %c0_89, %c0_90], %81 {strides = array<i32>} : memref<1x8x128xf32, #tpu.memory_space<vmem>>, vector<1x8x128xf32>,
    return
  }
  func.func @transform_0(%arg0: i32) -> (i32, i32, i32) {
    %c0_i32 = arith.constant 0 : i32
    %c0_i32_0 = arith.constant 0 : i32
    %c0_i32_1 = arith.constant 0 : i32
    return %arg0, %c0_i32, %c0_i32_0 : i32, i32, i32
  }
  func.func @transform_1(%arg0: i32) -> (i32, i32, i32) {
    %c0_i32 = arith.constant 0 : i32
    %c0_i32_0 = arith.constant 0 : i32
    %c0_i32_1 = arith.constant 0 : i32
    %c0_i32_2 = arith.constant 0 : i32
    return %c0_i32, %c0_i32_0, %c0_i32_1 : i32, i32, i32
  }
  func.func @transform_2(%arg0: i32) -> (i32, i32) {
    %c0_i32 = arith.constant 0 : i32
    %c0_i32_0 = arith.constant 0 : i32
    %c0_i32_1 = arith.constant 0 : i32
    return %c0_i32, %c0_i32_0 : i32, i32
  }
  func.func @transform_3(%arg0: i32) -> (i32, i32) {
    %c0_i32 = arith.constant 0 : i32
    %c0_i32_0 = arith.constant 0 : i32
    return %arg0, %c0_i32 : i32, i32
  }
  func.func @transform_4(%arg0: i32) -> (i32, i32, i32) {
    %c0_i32 = arith.constant 0 : i32
    %c0_i32_0 = arith.constant 0 : i32
    %c0_i32_1 = arith.constant 0 : i32
    return %arg0, %c0_i32, %c0_i32_0 : i32, i32, i32
  }
}

</mosaic_0001>

<llo_original>
// kernel: tpu_custom_call.1
$region0: #{tpu_custom_call.1}
  #allocation0 [shape = 'u32[]', space=smem, size = 0x4, offset = 0x4, fixed_abs, tag = 'smem constant byte address 0x4 - core index']
  #allocation1 [shape = 'u32[144,128]{1,0:T(1,128)}', space=vmem, size = 0x12000, scoped, tag = 'internal scratch']
  %s0 = inlined_call_operand.vmem [shape: f32[2,342,8], index: 0, kind: input, shape index: {}]
  %s1 = inlined_call_operand.vmem [shape: f32[9,8,128], index: 1, kind: input, shape index: {}]
  %s2 = inlined_call_operand.vmem [shape: f32[288,1], index: 2, kind: input, shape index: {}]
  %s3 = inlined_call_operand.hbm [shape: f32[576,128], index: 3, kind: output, shape index: {0}]
  %s4 = inlined_call_operand.hbm [shape: f32[2,8,128], index: 4, kind: output, shape index: {1}]
  %5 = xla_tuple %s3, %s4
  %s6 = sld [smem:[#allocation0]]
  $region53: #{tpu_custom_call.1} parent=0
    _
  %s8 = ssub.s32 1, %s6
  %s9 = scalar_select 0, %s8, %s6
  $region1: #{tpu_custom_call.1} parent=0
    #allocation2 [shape = 'u8[294912]{0}', space=vmem, size = 0x48000, scoped, tag = 'output window, operand 0']
    #allocation3 [shape = 's32[2]{0}', space=sflag, size = 0x8, scoped, tag = 'scoped memory for tpu_custom_call.1']
    #allocation4 [shape = 'u8[8192]{0}', space=vmem, size = 0x2000, scoped, tag = 'output window, operand 1']
    #allocation5 [shape = 's32[2]{0}', space=sflag, size = 0x8, scoped, tag = 'scoped memory for tpu_custom_call.1']
    %10 = vsyncpa [#allocation3], 0
    %s11 = scalar_lea.sflag [#allocation3], 1
    %12 = vsyncpa %s11, 0
    %13 = vsyncpa [#allocation5], 0
    %s14 = scalar_lea.sflag [#allocation5], 1
    %15 = vsyncpa %s14, 0
    loop: start=0, step=1, limit=4
    $region2: #{tpu_custom_call.1} parent=1 // loop_pre_header
      _
    $region3: #{tpu_custom_call.1} parent=1 // loop_header
      %s17 = sphi 0, %s21
      %p18 = scmp.ge.s32.totalorder %s17, 4
      %s27 = sphi 0, %s29
      %s30 = sphi 0, %s27
      %s31 = sphi 0, %s30
      %s47 = sphi 0, %s31
      %s51 = sphi 0, %s51
      %s53 = sphi 0, %s51
      %s54 = sphi 0, %s53
      %s68 = sphi 0, %s54
      %s72 = sphi 0, %s72
      %s74 = sphi 0, %s72
      %s75 = sphi 0, %s74
      %s89 = sphi 0, %s75
      %s95 = sphi 0, %s97
      %s98 = sphi 0, %s95
      %s99 = sphi 0, %s98
      %s115 = sphi 0, %s99
      %s121 = sphi 0, %s123
      %s124 = sphi 0, %s121
      %s125 = sphi 0, %s124
      %s141 = sphi 0, %s125
    $region4: #{tpu_custom_call.1} parent=1 // loop_header_branch
      %20 = sbr.rel (%p18) target = $region8
    $region5: #{tpu_custom_call.1} parent=1 // loop_body
      %s22 = ssub.s32 %s17, 1
      %s23 = ssub.s32 %s17, 2
      %s24 = sadd.s32 %s17, 1
      %s25 = ssub.s32 %s17, %s24
      %p26 = scmp.eq.s32.totalorder %s25, 0
      %s28 = sadd.s32 %s27, 1
      %s29 = scalar_select %p26, %s27, %s28
      %p32 = pneg %p26
      %p33 = scmp.eq.s32.totalorder %s17, 1
      %p34 = por %p32, %p33
      %p35 = scmp.ne.s32.totalorder %s27, %s30
      %p36 = scmp.eq.s32.totalorder %s17, 0
      %p37 = por %p35, %p36
      %p38 = scmp.ne.s32.totalorder %s27, %s30
      %p39 = scmp.eq.s32.totalorder %s22, 1
      %p40 = por %p38, %p39
      %p41 = scmp.ne.s32.totalorder %s30, %s31
      %p42 = scmp.eq.s32.totalorder %s22, 0
      %p43 = por %p41, %p42
      %p44 = scmp.ne.s32.totalorder %s30, %s31
      %p45 = scmp.eq.s32.totalorder %s23, 1
      %p46 = por %p44, %p45
      %p48 = scmp.ne.s32.totalorder %s31, %s47
      %p49 = scmp.eq.s32.totalorder %s23, 0
      %p50 = por %p48, %p49
      %s52 = sadd.s32 %s51, 1
      %p55 = scmp.eq.s32.totalorder %s17, 1
      %p56 = scmp.ne.s32.totalorder %s51, %s53
      %p57 = scmp.eq.s32.totalorder %s17, 0
      %p58 = por %p56, %p57
      %p59 = scmp.ne.s32.totalorder %s51, %s53
      %p60 = scmp.eq.s32.totalorder %s22, 1
      %p61 = por %p59, %p60
      %p62 = scmp.ne.s32.totalorder %s53, %s54
      %p63 = scmp.eq.s32.totalorder %s22, 0
      %p64 = por %p62, %p63
      %p65 = scmp.ne.s32.totalorder %s53, %s54
      %p66 = scmp.eq.s32.totalorder %s23, 1
      %p67 = por %p65, %p66
      %p69 = scmp.ne.s32.totalorder %s54, %s68
      %p70 = scmp.eq.s32.totalorder %s23, 0
      %p71 = por %p69, %p70
      %s73 = sadd.s32 %s72, 1
      %p76 = scmp.eq.s32.totalorder %s17, 1
      %p77 = scmp.ne.s32.totalorder %s72, %s74
      %p78 = scmp.eq.s32.totalorder %s17, 0
      %p79 = por %p77, %p78
      %p80 = scmp.ne.s32.totalorder %s72, %s74
      %p81 = scmp.eq.s32.totalorder %s22, 1
      %p82 = por %p80, %p81
      %p83 = scmp.ne.s32.totalorder %s74, %s75
      %p84 = scmp.eq.s32.totalorder %s22, 0
      %p85 = por %p83, %p84
      %p86 = scmp.ne.s32.totalorder %s74, %s75
      %p87 = scmp.eq.s32.totalorder %s23, 1
      %p88 = por %p86, %p87
      %p90 = scmp.ne.s32.totalorder %s75, %s89
      %p91 = scmp.eq.s32.totalorder %s23, 0
      %p92 = por %p90, %p91
      %s93 = ssub.s32 %s17, %s24
      %p94 = scmp.eq.s32.totalorder %s93, 0
      %s96 = sadd.s32 %s95, 1
      %s97 = scalar_select %p94, %s95, %s96
      %p100 = pneg %p94
      %p101 = scmp.eq.s32.totalorder %s17, 1
      %p102 = por %p100, %p101
      %p103 = scmp.ne.s32.totalorder %s95, %s98
      %p104 = scmp.eq.s32.totalorder %s17, 0
      %p105 = por %p103, %p104
      %p106 = scmp.ne.s32.totalorder %s95, %s98
      %p107 = scmp.eq.s32.totalorder %s22, 1
      %p108 = por %p106, %p107
      %p109 = scmp.ne.s32.totalorder %s98, %s99
      %p110 = scmp.eq.s32.totalorder %s22, 0
      %p111 = por %p109, %p110
      %p112 = scmp.ne.s32.totalorder %s98, %s99
      %p113 = scmp.eq.s32.totalorder %s23, 1
      %p114 = por %p112, %p113
      %p116 = scmp.ne.s32.totalorder %s99, %s115
      %p117 = scmp.eq.s32.totalorder %s23, 0
      %p118 = por %p116, %p117
      %s119 = ssub.s32 %s17, %s24
      %p120 = scmp.eq.s32.totalorder %s119, 0
      %s122 = sadd.s32 %s121, 1
      %s123 = scalar_select %p120, %s121, %s122
      %p126 = pneg %p120
      %p127 = scmp.eq.s32.totalorder %s17, 1
      %p128 = por %p126, %p127
      %p129 = scmp.ne.s32.totalorder %s121, %s124
      %p130 = scmp.eq.s32.totalorder %s17, 0
      %p131 = por %p129, %p130
      %p132 = scmp.ne.s32.totalorder %s121, %s124
      %p133 = scmp.eq.s32.totalorder %s22, 1
      %p134 = por %p132, %p133
      %p135 = scmp.ne.s32.totalorder %s124, %s125
      %p136 = scmp.eq.s32.totalorder %s22, 0
      %p137 = por %p135, %p136
      %p138 = scmp.ne.s32.totalorder %s124, %s125
      %p139 = scmp.eq.s32.totalorder %s23, 1
      %p140 = por %p138, %p139
      %p142 = scmp.ne.s32.totalorder %s125, %s141
      %p143 = scmp.eq.s32.totalorder %s23, 0
      %p144 = por %p142, %p143
      %p145 = scmp.le.s32.totalorder 1, %s17
      %p146 = scmp.lt.s32.totalorder %s17, 3
      %p147 = pnand %p145, %p146
      %p148 = pneg %p147
      // Predicated region
      $region9: #{tpu_custom_call.1} parent=5 // pred_check
        _
      $region10: #{tpu_custom_call.1} parent=5 // pred_check_branch
        %150 = sbr.rel (%p147) target = $region12
      $region11: #{tpu_custom_call.1} parent=5 // pred_region
        %s151 = ssub.s32 %s17, 1
        // Predicated region
        $region13: #{tpu_custom_call.1} parent=11 // pred_check
          %p152 = pneg %p64
        $region14: #{tpu_custom_call.1} parent=11 // pred_check_branch
          %154 = sbr.rel (%p152) target = $region16
        $region15: #{tpu_custom_call.1} parent=11 // pred_region
          _
        $region16: #{tpu_custom_call.1} parent=11 // pred_fallthru
          _
        // Predicated region
        $region17: #{tpu_custom_call.1} parent=11 // pred_check
          %p155 = pneg %p85
        $region18: #{tpu_custom_call.1} parent=11 // pred_check_branch
          %157 = sbr.rel (%p155) target = $region20
        $region19: #{tpu_custom_call.1} parent=11 // pred_region
          _
        $region20: #{tpu_custom_call.1} parent=11 // pred_fallthru
          _
      $region12: #{tpu_custom_call.1} parent=5 // pred_fallthru
        _
      %p158 = scmp.lt.s32.totalorder %s17, 2
      // Predicated region
      $region21: #{tpu_custom_call.1} parent=5 // pred_check
        %p159 = pneg %p158
      $region22: #{tpu_custom_call.1} parent=5 // pred_check_branch
        %161 = sbr.rel (%p159) target = $region24
      $region23: #{tpu_custom_call.1} parent=5 // pred_region
        // Predicated region
        $region25: #{tpu_custom_call.1} parent=23 // pred_check
          %p162 = pneg %p37
        $region26: #{tpu_custom_call.1} parent=23 // pred_check_branch
          %164 = sbr.rel (%p162) target = $region28
        $region27: #{tpu_custom_call.1} parent=23 // pred_region
          %p165 = scmp.lt.s32.totalorder %s17, 1
          %s166 = scalar_select %p165, %s17, 1
          %s167 = smul.addr %s166, 43
          %s168 = smul.addr %s167, 8
          %s169 = scalar_lea.vmem %s0, %s168
        $region28: #{tpu_custom_call.1} parent=23 // pred_fallthru
          _
      $region24: #{tpu_custom_call.1} parent=5 // pred_fallthru
        _
      %p170 = scmp.le.s32.totalorder 1, %s17
      %p171 = scmp.lt.s32.totalorder %s17, 3
      %p172 = pnand %p170, %p171
      %p173 = pneg %p172
      // Predicated region
      $region29: #{tpu_custom_call.1} parent=5 // pred_check
        _
      $region30: #{tpu_custom_call.1} parent=5 // pred_check_branch
        %175 = sbr.rel (%p172) target = $region32
      $region31: #{tpu_custom_call.1} parent=5 // pred_region
        %s176 = ssub.s32 %s17, 1
        %p177 = scmp.lt.s32.totalorder %s22, 1
        %s178 = scalar_select %p177, %s22, 1
        %s179 = smul.addr %s178, 43
        %s180 = smul.addr %s179, 8
        %s181 = scalar_lea.vmem %s0, %s180
        %p182 = pneg %p43
        %p183 = pneg %p40
        %p184 = pneg %p64
        %p185 = pneg %p61
        %p186 = pneg %p85
        %p187 = pneg %p82
        %p188 = pneg %p111
        %p189 = pneg %p108
        %s190 = sand.u32 %s98, 1
        %s191 = scalar_lea.sflag [#allocation3], %s190
        %s192 = sand.u32 %s98, 1
        %s193 = smul.addr %s192, 288
        %s194 = scalar_lea.vmem [#allocation2], %s193
        %p195 = pneg %p137
        %p196 = pneg %p134
        %s197 = sand.u32 %s124, 1
        %s198 = scalar_lea.sflag [#allocation5], %s197
        %s199 = sand.u32 %s124, 1
        %s200 = smul.addr %s199, 8
        %s201 = scalar_lea.vmem [#allocation4], %s200
        %p202 = scmp.lt.s32.totalorder %s22, 1
        %s203 = scalar_select %p202, %s22, 1
        %s204 = smul.addr %s203, 43
        %s205 = smul.addr %s204, 8
        %s206 = scalar_lea.vmem %s0, %s205
        %s207 = smul.u32 36, %s22
        %v208 = vld [vmem:[%s206] sm:$0xff]
        %v209 = vld [vmem:[%s206 + $0x8] sm:$0xff]
        %v210 = vld [vmem:[%s206 + $0x10] sm:$0xff]
        %v211 = vld [vmem:[%s206 + $0x18] sm:$0xff]
        %v212 = vld [vmem:[%s206 + $0x20] sm:$0xff]
        %v213 = vld [vmem:[%s206 + $0x28] sm:$0xff]
        %v214 = vld [vmem:[%s206 + $0x30] sm:$0xff]
        %v215 = vld [vmem:[%s206 + $0x38] sm:$0xff]
        %v216 = vld [vmem:[%s206 + $0x40] sm:$0xff]
        %v217 = vld [vmem:[%s206 + $0x48] sm:$0xff]
        %v218 = vld [vmem:[%s206 + $0x50] sm:$0xff]
        %v219 = vld [vmem:[%s206 + $0x58] sm:$0xff]
        %v220 = vld [vmem:[%s206 + $0x60] sm:$0xff]
        %v221 = vld [vmem:[%s206 + $0x68] sm:$0xff]
        %v222 = vld [vmem:[%s206 + $0x70] sm:$0xff]
        %v223 = vld [vmem:[%s206 + $0x78] sm:$0xff]
        %v224 = vld [vmem:[%s206 + $0x80] sm:$0xff]
        %v225 = vld [vmem:[%s206 + $0x88] sm:$0xff]
        %v226 = vld [vmem:[%s206 + $0x90] sm:$0xff]
        %v227 = vld [vmem:[%s206 + $0x98] sm:$0xff]
        %v228 = vld [vmem:[%s206 + $0xa0] sm:$0xff]
        %v229 = vld [vmem:[%s206 + $0xa8] sm:$0xff]
        %v230 = vld [vmem:[%s206 + $0xb0] sm:$0xff]
        %v231 = vld [vmem:[%s206 + $0xb8] sm:$0xff]
        %v232 = vld [vmem:[%s206 + $0xc0] sm:$0xff]
        %v233 = vld [vmem:[%s206 + $0xc8] sm:$0xff]
        %v234 = vld [vmem:[%s206 + $0xd0] sm:$0xff]
        %v235 = vld [vmem:[%s206 + $0xd8] sm:$0xff]
        %v236 = vld [vmem:[%s206 + $0xe0] sm:$0xff]
        %v237 = vld [vmem:[%s206 + $0xe8] sm:$0xff]
        %v238 = vld [vmem:[%s206 + $0xf0] sm:$0xff]
        %v239 = vld [vmem:[%s206 + $0xf8] sm:$0xff]
        %v240 = vld [vmem:[%s206 + $0x100] sm:$0xff]
        %v241 = vld [vmem:[%s206 + $0x108] sm:$0xff]
        %v242 = vld [vmem:[%s206 + $0x110] sm:$0xff]
        %v243 = vld [vmem:[%s206 + $0x118] sm:$0xff]
        %v244 = vld [vmem:[%s1] sm:$0xff]
        %vm245 = vcmask 64512
        %v247 = vsel %vm245, %v208, 0
        %v250 = vsel %vm245, %v209, 0
        %v253 = vsel %vm245, %v210, 0
        %v256 = vsel %vm245, %v211, 0
        %v259 = vsel %vm245, %v212, 0
        %v262 = vsel %vm245, %v213, 0
        %v265 = vsel %vm245, %v214, 0
        %v268 = vsel %vm245, %v215, 0
        %v271 = vsel %vm245, %v216, 0
        %v274 = vsel %vm245, %v217, 0
        %v277 = vsel %vm245, %v218, 0
        %v280 = vsel %vm245, %v219, 0
        %v283 = vsel %vm245, %v220, 0
        %v286 = vsel %vm245, %v221, 0
        %v289 = vsel %vm245, %v222, 0
        %v292 = vsel %vm245, %v223, 0
        %v295 = vsel %vm245, %v224, 0
        %v298 = vsel %vm245, %v225, 0
        %v301 = vsel %vm245, %v226, 0
        %v304 = vsel %vm245, %v227, 0
        %v307 = vsel %vm245, %v228, 0
        %v310 = vsel %vm245, %v229, 0
        %v313 = vsel %vm245, %v230, 0
        %v316 = vsel %vm245, %v231, 0
        %v319 = vsel %vm245, %v232, 0
        %v322 = vsel %vm245, %v233, 0
        %v325 = vsel %vm245, %v234, 0
        %v328 = vsel %vm245, %v235, 0
        %v331 = vsel %vm245, %v236, 0
        %v334 = vsel %vm245, %v237, 0
        %v337 = vsel %vm245, %v238, 0
        %v340 = vsel %vm245, %v239, 0
        %v343 = vsel %vm245, %v240, 0
        %v346 = vsel %vm245, %v241, 0
        %v349 = vsel %vm245, %v242, 0
        %v352 = vsel %vm245, %v243, 0
        %354 = vmatprep.subr.mxu0 0.0
        %355 = vmatpush1.msra.mxu0 %v244
        %356 = vmatprep.subr.mxu0 0.0
        %357 = vmatpush1.msra.mxu0 0.0
        %358 = vmatprep.subr.mxu0 0.0
        %359 = vmatpush1.msra.mxu0 0.0
        %360 = vmatprep.subr.mxu0 0.0
        %361 = vmatpush1.msra.mxu0 0.0
        %362 = vmatprep.subr.mxu0 0.0
        %363 = vmatpush1.msra.mxu0 0.0
        %364 = vmatprep.subr.mxu0 0.0
        %365 = vmatpush1.msra.mxu0 0.0
        %366 = vmatprep.subr.mxu0 0.0
        %367 = vmatpush1.msra.mxu0 0.0
        %368 = vmatprep.subr.mxu0 0.0
        %369 = vmatpush1.msra.mxu0 0.0
        %370 = vmatprep.subr.mxu0 0.0
        %371 = vmatpush1.msra.mxu0 0.0
        %372 = vmatprep.subr.mxu0 0.0
        %373 = vmatpush1.msra.mxu0 0.0
        %374 = vmatprep.subr.mxu0 0.0
        %375 = vmatpush1.msra.mxu0 0.0
        %376 = vmatprep.subr.mxu0 0.0
        %377 = vmatpush1.msra.mxu0 0.0
        %378 = vmatprep.subr.mxu0 0.0
        %379 = vmatpush1.msra.mxu0 0.0
        %380 = vmatprep.subr.mxu0 0.0
        %381 = vmatpush1.msra.mxu0 0.0
        %382 = vmatprep.subr.mxu0 0.0
        %383 = vmatpush1.msra.mxu0 0.0
        %384 = vmatprep.subr.mxu0 0.0
        %385 = vmatpush1.msra.mxu0 0.0
        %386 = vmatprep.subr.mxu0 0.0
        %387 = vmatpush1.msra.mxu0 0.0
        %388 = vmatprep.subr.mxu0 0.0
        %389 = vmatpush1.msra.mxu0 0.0
        %390 = vmatprep.subr.mxu0 0.0
        %391 = vmatpush1.msra.mxu0 0.0
        %392 = vmatprep.subr.mxu0 0.0
        %393 = vmatpush1.msra.mxu0 0.0
        %394 = vmatprep.subr.mxu0 0.0
        %395 = vmatpush1.msra.mxu0 0.0
        %396 = vmatprep.subr.mxu0 0.0
        %397 = vmatpush1.msra.mxu0 0.0
        %398 = vmatprep.subr.mxu0 0.0
        %399 = vmatpush1.msra.mxu0 0.0
        %400 = vmatprep.subr.mxu0 0.0
        %401 = vmatpush1.msra.mxu0 0.0
        %402 = vmatprep.subr.mxu0 0.0
        %403 = vmatpush1.msra.mxu0 0.0
        %404 = vmatprep.subr.mxu0 0.0
        %405 = vmatpush1.msra.mxu0 0.0
        %406 = vmatprep.subr.mxu0 0.0
        %407 = vmatpush1.msra.mxu0 0.0
        %408 = vmatprep.subr.mxu0 0.0
        %409 = vmatpush1.msra.mxu0 0.0
        %410 = vmatprep.subr.mxu0 0.0
        %411 = vmatpush1.msra.mxu0 0.0
        %412 = vmatprep.subr.mxu0 0.0
        %413 = vmatpush1.msra.mxu0 0.0
        %414 = vmatprep.subr.mxu0 0.0
        %415 = vmatpush1.msra.mxu0 0.0
        %416 = vmatprep.subr.mxu0 0.0
        %417 = vmatpush1.msra.mxu0 0.0
        %418 = vmatprep.mubr.f32.mxu0 0.0
        %419 = vmatmul.mubr.f32.gmra.mrb[0].mxu0 %v247
        %v420 = vpop.f32.mrb[0].mxu0
        %v421 = vadd.f32 0.0, %v420
        %v422 = vpop.f32.mrb[0].mxu0
        %423 = vmatprep.mubr.f32.mxu0 0.0
        %424 = vmatmul.mubr.f32.gmra.mrb[0].mxu0 %v250
        %v425 = vpop.f32.mrb[0].mxu0
        %v426 = vadd.f32 0.0, %v425
        %v427 = vpop.f32.mrb[0].mxu0
        %428 = vmatprep.mubr.f32.mxu0 0.0
        %429 = vmatmul.mubr.f32.gmra.mrb[0].mxu0 %v253
        %v430 = vpop.f32.mrb[0].mxu0
        %v431 = vadd.f32 0.0, %v430
        %v432 = vpop.f32.mrb[0].mxu0
        %433 = vmatprep.mubr.f32.mxu0 0.0
        %434 = vmatmul.mubr.f32.gmra.mrb[0].mxu0 %v256
        %v435 = vpop.f32.mrb[0].mxu0
        %v436 = vadd.f32 0.0, %v435
        %v437 = vpop.f32.mrb[0].mxu0
        %438 = vmatprep.mubr.f32.mxu0 0.0
        %439 = vmatmul.mubr.f32.gmra.mrb[0].mxu0 %v259
        %v440 = vpop.f32.mrb[0].mxu0
        %v441 = vadd.f32 0.0, %v440
        %v442 = vpop.f32.mrb[0].mxu0
        %443 = vmatprep.mubr.f32.mxu0 0.0
        %444 = vmatmul.mubr.f32.gmra.mrb[0].mxu0 %v262
        %v445 = vpop.f32.mrb[0].mxu0
        %v446 = vadd.f32 0.0, %v445
        %v447 = vpop.f32.mrb[0].mxu0
        %448 = vmatprep.mubr.f32.mxu0 0.0
        %449 = vmatmul.mubr.f32.gmra.mrb[0].mxu0 %v265
        %v450 = vpop.f32.mrb[0].mxu0
        %v451 = vadd.f32 0.0, %v450
        %v452 = vpop.f32.mrb[0].mxu0
        %453 = vmatprep.mubr.f32.mxu0 0.0
        %454 = vmatmul.mubr.f32.gmra.mrb[0].mxu0 %v268
        %v455 = vpop.f32.mrb[0].mxu0
        %v456 = vadd.f32 0.0, %v455
        %v457 = vpop.f32.mrb[0].mxu0
        %458 = vmatprep.mubr.f32.mxu0 0.0
        %459 = vmatmul.mubr.f32.gmra.mrb[0].mxu0 %v271
        %v460 = vpop.f32.mrb[0].mxu0
        %v461 = vadd.f32 0.0, %v460
        %v462 = vpop.f32.mrb[0].mxu0
        %463 = vmatprep.mubr.f32.mxu0 0.0
        %464 = vmatmul.mubr.f32.gmra.mrb[0].mxu0 %v274
        %v465 = vpop.f32.mrb[0].mxu0
        %v466 = vadd.f32 0.0, %v465
        %v467 = vpop.f32.mrb[0].mxu0
        %468 = vmatprep.mubr.f32.mxu0 0.0
        %469 = vmatmul.mubr.f32.gmra.mrb[0].mxu0 %v277
        %v470 = vpop.f32.mrb[0].mxu0
        %v471 = vadd.f32 0.0, %v470
        %v472 = vpop.f32.mrb[0].mxu0
        %473 = vmatprep.mubr.f32.mxu0 0.0
        %474 = vmatmul.mubr.f32.gmra.mrb[0].mxu0 %v280
        %v475 = vpop.f32.mrb[0].mxu0
        %v476 = vadd.f32 0.0, %v475
        %v477 = vpop.f32.mrb[0].mxu0
        %478 = vmatprep.mubr.f32.mxu0 0.0
        %479 = vmatmul.mubr.f32.gmra.mrb[0].mxu0 %v283
        %v480 = vpop.f32.mrb[0].mxu0
        %v481 = vadd.f32 0.0, %v480
        %v482 = vpop.f32.mrb[0].mxu0
        %483 = vmatprep.mubr.f32.mxu0 0.0
        %484 = vmatmul.mubr.f32.gmra.mrb[0].mxu0 %v286
        %v485 = vpop.f32.mrb[0].mxu0
        %v486 = vadd.f32 0.0, %v485
        %v487 = vpop.f32.mrb[0].mxu0
        %488 = vmatprep.mubr.f32.mxu0 0.0
        %489 = vmatmul.mubr.f32.gmra.mrb[0].mxu0 %v289
        %v490 = vpop.f32.mrb[0].mxu0
        %v491 = vadd.f32 0.0, %v490
        %v492 = vpop.f32.mrb[0].mxu0
        %493 = vmatprep.mubr.f32.mxu0 0.0
        %494 = vmatmul.mubr.f32.gmra.mrb[0].mxu0 %v292
        %v495 = vpop.f32.mrb[0].mxu0
        %v496 = vadd.f32 0.0, %v495
        %v497 = vpop.f32.mrb[0].mxu0
        %498 = vmatprep.mubr.f32.mxu0 0.0
        %499 = vmatmul.mubr.f32.gmra.mrb[0].mxu0 %v295
        %v500 = vpop.f32.mrb[0].mxu0
        %v501 = vadd.f32 0.0, %v500
        %v502 = vpop.f32.mrb[0].mxu0
        %503 = vmatprep.mubr.f32.mxu0 0.0
        %504 = vmatmul.mubr.f32.gmra.mrb[0].mxu0 %v298
        %v505 = vpop.f32.mrb[0].mxu0
        %v506 = vadd.f32 0.0, %v505
        %v507 = vpop.f32.mrb[0].mxu0
        %508 = vmatprep.mubr.f32.mxu0 0.0
        %509 = vmatmul.mubr.f32.gmra.mrb[0].mxu0 %v301
        %v510 = vpop.f32.mrb[0].mxu0
        %v511 = vadd.f32 0.0, %v510
        %v512 = vpop.f32.mrb[0].mxu0
        %513 = vmatprep.mubr.f32.mxu0 0.0
        %514 = vmatmul.mubr.f32.gmra.mrb[0].mxu0 %v304
        %v515 = vpop.f32.mrb[0].mxu0
        %v516 = vadd.f32 0.0, %v515
        %v517 = vpop.f32.mrb[0].mxu0
        %518 = vmatprep.mubr.f32.mxu0 0.0
        %519 = vmatmul.mubr.f32.gmra.mrb[0].mxu0 %v307
        %v520 = vpop.f32.mrb[0].mxu0
        %v521 = vadd.f32 0.0, %v520
        %v522 = vpop.f32.mrb[0].mxu0
        %523 = vmatprep.mubr.f32.mxu0 0.0
        %524 = vmatmul.mubr.f32.gmra.mrb[0].mxu0 %v310
        %v525 = vpop.f32.mrb[0].mxu0
        %v526 = vadd.f32 0.0, %v525
        %v527 = vpop.f32.mrb[0].mxu0
        %528 = vmatprep.mubr.f32.mxu0 0.0
        %529 = vmatmul.mubr.f32.gmra.mrb[0].mxu0 %v313
        %v530 = vpop.f32.mrb[0].mxu0
        %v531 = vadd.f32 0.0, %v530
        %v532 = vpop.f32.mrb[0].mxu0
        %533 = vmatprep.mubr.f32.mxu0 0.0
        %534 = vmatmul.mubr.f32.gmra.mrb[0].mxu0 %v316
        %v535 = vpop.f32.mrb[0].mxu0
        %v536 = vadd.f32 0.0, %v535
        %v537 = vpop.f32.mrb[0].mxu0
        %538 = vmatprep.mubr.f32.mxu0 0.0
        %539 = vmatmul.mubr.f32.gmra.mrb[0].mxu0 %v319
        %v540 = vpop.f32.mrb[0].mxu0
        %v541 = vadd.f32 0.0, %v540
        %v542 = vpop.f32.mrb[0].mxu0
        %543 = vmatprep.mubr.f32.mxu0 0.0
        %544 = vmatmul.mubr.f32.gmra.mrb[0].mxu0 %v322
        %v545 = vpop.f32.mrb[0].mxu0
        %v546 = vadd.f32 0.0, %v545
        %v547 = vpop.f32.mrb[0].mxu0
        %548 = vmatprep.mubr.f32.mxu0 0.0
        %549 = vmatmul.mubr.f32.gmra.mrb[0].mxu0 %v325
        %v550 = vpop.f32.mrb[0].mxu0
        %v551 = vadd.f32 0.0, %v550
        %v552 = vpop.f32.mrb[0].mxu0
        %553 = vmatprep.mubr.f32.mxu0 0.0
        %554 = vmatmul.mubr.f32.gmra.mrb[0].mxu0 %v328
        %v555 = vpop.f32.mrb[0].mxu0
        %v556 = vadd.f32 0.0, %v555
        %v557 = vpop.f32.mrb[0].mxu0
        %558 = vmatprep.mubr.f32.mxu0 0.0
        %559 = vmatmul.mubr.f32.gmra.mrb[0].mxu0 %v331
        %v560 = vpop.f32.mrb[0].mxu0
        %v561 = vadd.f32 0.0, %v560
        %v562 = vpop.f32.mrb[0].mxu0
        %563 = vmatprep.mubr.f32.mxu0 0.0
        %564 = vmatmul.mubr.f32.gmra.mrb[0].mxu0 %v334
        %v565 = vpop.f32.mrb[0].mxu0
        %v566 = vadd.f32 0.0, %v565
        %v567 = vpop.f32.mrb[0].mxu0
        %568 = vmatprep.mubr.f32.mxu0 0.0
        %569 = vmatmul.mubr.f32.gmra.mrb[0].mxu0 %v337
        %v570 = vpop.f32.mrb[0].mxu0
        %v571 = vadd.f32 0.0, %v570
        %v572 = vpop.f32.mrb[0].mxu0
        %573 = vmatprep.mubr.f32.mxu0 0.0
        %574 = vmatmul.mubr.f32.gmra.mrb[0].mxu0 %v340
        %v575 = vpop.f32.mrb[0].mxu0
        %v576 = vadd.f32 0.0, %v575
        %v577 = vpop.f32.mrb[0].mxu0
        %578 = vmatprep.mubr.f32.mxu0 0.0
        %579 = vmatmul.mubr.f32.gmra.mrb[0].mxu0 %v343
        %v580 = vpop.f32.mrb[0].mxu0
        %v581 = vadd.f32 0.0, %v580
        %v582 = vpop.f32.mrb[0].mxu0
        %583 = vmatprep.mubr.f32.mxu0 0.0
        %584 = vmatmul.mubr.f32.gmra.mrb[0].mxu0 %v346
        %v585 = vpop.f32.mrb[0].mxu0
        %v586 = vadd.f32 0.0, %v585
        %v587 = vpop.f32.mrb[0].mxu0
        %588 = vmatprep.mubr.f32.mxu0 0.0
        %589 = vmatmul.mubr.f32.gmra.mrb[0].mxu0 %v349
        %v590 = vpop.f32.mrb[0].mxu0
        %v591 = vadd.f32 0.0, %v590
        %v592 = vpop.f32.mrb[0].mxu0
        %593 = vmatprep.mubr.f32.mxu0 0.0
        %594 = vmatmul.mubr.f32.gmra.mrb[0].mxu0 %v352
        %v595 = vpop.f32.mrb[0].mxu0
        %v596 = vadd.f32 0.0, %v595
        %v597 = vpop.f32.mrb[0].mxu0
        %598 = vdwg.mxu0
        %599 = vst [vmem:[%s194] sm:$0xff] %v421
        %600 = vst [vmem:[%s194 + $0x8] sm:$0xff] %v426
        %601 = vst [vmem:[%s194 + $0x10] sm:$0xff] %v431
        %602 = vst [vmem:[%s194 + $0x18] sm:$0xff] %v436
        %603 = vst [vmem:[%s194 + $0x20] sm:$0xff] %v441
        %604 = vst [vmem:[%s194 + $0x28] sm:$0xff] %v446
        %605 = vst [vmem:[%s194 + $0x30] sm:$0xff] %v451
        %606 = vst [vmem:[%s194 + $0x38] sm:$0xff] %v456
        %607 = vst [vmem:[%s194 + $0x40] sm:$0xff] %v461
        %608 = vst [vmem:[%s194 + $0x48] sm:$0xff] %v466
        %609 = vst [vmem:[%s194 + $0x50] sm:$0xff] %v471
        %610 = vst [vmem:[%s194 + $0x58] sm:$0xff] %v476
        %611 = vst [vmem:[%s194 + $0x60] sm:$0xff] %v481
        %612 = vst [vmem:[%s194 + $0x68] sm:$0xff] %v486
        %613 = vst [vmem:[%s194 + $0x70] sm:$0xff] %v491
        %614 = vst [vmem:[%s194 + $0x78] sm:$0xff] %v496
        %615 = vst [vmem:[%s194 + $0x80] sm:$0xff] %v501
        %616 = vst [vmem:[%s194 + $0x88] sm:$0xff] %v506
        %617 = vst [vmem:[%s194 + $0x90] sm:$0xff] %v511
        %618 = vst [vmem:[%s194 + $0x98] sm:$0xff] %v516
        %619 = vst [vmem:[%s194 + $0xa0] sm:$0xff] %v521
        %620 = vst [vmem:[%s194 + $0xa8] sm:$0xff] %v526
        %621 = vst [vmem:[%s194 + $0xb0] sm:$0xff] %v531
        %622 = vst [vmem:[%s194 + $0xb8] sm:$0xff] %v536
        %623 = vst [vmem:[%s194 + $0xc0] sm:$0xff] %v541
        %624 = vst [vmem:[%s194 + $0xc8] sm:$0xff] %v546
        %625 = vst [vmem:[%s194 + $0xd0] sm:$0xff] %v551
        %626 = vst [vmem:[%s194 + $0xd8] sm:$0xff] %v556
        %627 = vst [vmem:[%s194 + $0xe0] sm:$0xff] %v561
        %628 = vst [vmem:[%s194 + $0xe8] sm:$0xff] %v566
        %629 = vst [vmem:[%s194 + $0xf0] sm:$0xff] %v571
        %630 = vst [vmem:[%s194 + $0xf8] sm:$0xff] %v576
        %631 = vst [vmem:[%s194 + $0x100] sm:$0xff] %v581
        %632 = vst [vmem:[%s194 + $0x108] sm:$0xff] %v586
        %633 = vst [vmem:[%s194 + $0x110] sm:$0xff] %v591
        %634 = vst [vmem:[%s194 + $0x118] sm:$0xff] %v596
        %v635 = vld [vmem:[%s206 + $0x1] sm:$0xff]
        %v636 = vld [vmem:[%s206 + $0x9] sm:$0xff]
        %v637 = vld [vmem:[%s206 + $0x11] sm:$0xff]
        %v638 = vld [vmem:[%s206 + $0x19] sm:$0xff]
        %v639 = vld [vmem:[%s206 + $0x21] sm:$0xff]
        %v640 = vld [vmem:[%s206 + $0x29] sm:$0xff]
        %v641 = vld [vmem:[%s206 + $0x31] sm:$0xff]
        %v642 = vld [vmem:[%s206 + $0x39] sm:$0xff]
        %v643 = vld [vmem:[%s206 + $0x41] sm:$0xff]
        %v644 = vld [vmem:[%s206 + $0x49] sm:$0xff]
        %v645 = vld [vmem:[%s206 + $0x51] sm:$0xff]
        %v646 = vld [vmem:[%s206 + $0x59] sm:$0xff]
        %v647 = vld [vmem:[%s206 + $0x61] sm:$0xff]
        %v648 = vld [vmem:[%s206 + $0x69] sm:$0xff]
        %v649 = vld [vmem:[%s206 + $0x71] sm:$0xff]
        %v650 = vld [vmem:[%s206 + $0x79] sm:$0xff]
        %v651 = vld [vmem:[%s206 + $0x81] sm:$0xff]
        %v652 = vld [vmem:[%s206 + $0x89] sm:$0xff]
        %v653 = vld [vmem:[%s206 + $0x91] sm:$0xff]
        %v654 = vld [vmem:[%s206 + $0x99] sm:$0xff]
        %v655 = vld [vmem:[%s206 + $0xa1] sm:$0xff]
        %v656 = vld [vmem:[%s206 + $0xa9] sm:$0xff]
        %v657 = vld [vmem:[%s206 + $0xb1] sm:$0xff]
        %v658 = vld [vmem:[%s206 + $0xb9] sm:$0xff]
        %v659 = vld [vmem:[%s206 + $0xc1] sm:$0xff]
        %v660 = vld [vmem:[%s206 + $0xc9] sm:$0xff]
        %v661 = vld [vmem:[%s206 + $0xd1] sm:$0xff]
        %v662 = vld [vmem:[%s206 + $0xd9] sm:$0xff]
        %v663 = vld [vmem:[%s206 + $0xe1] sm:$0xff]
        %v664 = vld [vmem:[%s206 + $0xe9] sm:$0xff]
        %v665 = vld [vmem:[%s206 + $0xf1] sm:$0xff]
        %v666 = vld [vmem:[%s206 + $0xf9] sm:$0xff]
        %v667 = vld [vmem:[%s206 + $0x101] sm:$0xff]
        %v668 = vld [vmem:[%s206 + $0x109] sm:$0xff]
        %v669 = vld [vmem:[%s206 + $0x111] sm:$0xff]
        %v670 = vld [vmem:[%s206 + $0x119] sm:$0xff]
        %s671 = scalar_lea.vmem %s1, 8
        %v672 = vld [vmem:[%s671] sm:$0xff]
        %v674 = vsel %vm245, %v635, 0
        %v677 = vsel %vm245, %v636, 0
        %v680 = vsel %vm245, %v637, 0
        %v683 = vsel %vm245, %v638, 0
        %v686 = vsel %vm245, %v639, 0
        %v689 = vsel %vm245, %v640, 0
        %v692 = vsel %vm245, %v641, 0
        %v695 = vsel %vm245, %v642, 0
        %v698 = vsel %vm245, %v643, 0
        %v701 = vsel %vm245, %v644, 0
        %v704 = vsel %vm245, %v645, 0
        %v707 = vsel %vm245, %v646, 0
        %v710 = vsel %vm245, %v647, 0
        %v713 = vsel %vm245, %v648, 0
        %v716 = vsel %vm245, %v649, 0
        %v719 = vsel %vm245, %v650, 0
        %v722 = vsel %vm245, %v651, 0
        %v725 = vsel %vm245, %v652, 0
        %v728 = vsel %vm245, %v653, 0
        %v731 = vsel %vm245, %v654, 0
        %v734 = vsel %vm245, %v655, 0
        %v737 = vsel %vm245, %v656, 0
        %v740 = vsel %vm245, %v657, 0
        %v743 = vsel %vm245, %v658, 0
        %v746 = vsel %vm245, %v659, 0
        %v749 = vsel %vm245, %v660, 0
        %v752 = vsel %vm245, %v661, 0
        %v755 = vsel %vm245, %v662, 0
        %v758 = vsel %vm245, %v663, 0
        %v761 = vsel %vm245, %v664, 0
        %v764 = vsel %vm245, %v665, 0
        %v767 = vsel %vm245, %v666, 0
        %v770 = vsel %vm245, %v667, 0
        %v773 = vsel %vm245, %v668, 0
        %v776 = vsel %vm245, %v669, 0
        %v779 = vsel %vm245, %v670, 0
        %781 = vmatprep.subr.mxu0 0.0
        %782 = vmatpush1.msra.mxu0 %v672
        %783 = vmatprep.subr.mxu0 0.0
        %784 = vmatpush1.msra.mxu0 0.0
        %785 = vmatprep.subr.mxu0 0.0
        %786 = vmatpush1.msra.mxu0 0.0
        %787 = vmatprep.subr.mxu0 0.0
        %788 = vmatpush1.msra.mxu0 0.0
        %789 = vmatprep.subr.mxu0 0.0
        %790 = vmatpush1.msra.mxu0 0.0
        %791 = vmatprep.subr.mxu0 0.0
        %792 = vmatpush1.msra.mxu0 0.0
        %793 = vmatprep.subr.mxu0 0.0
        %794 = vmatpush1.msra.mxu0 0.0
        %795 = vmatprep.subr.mxu0 0.0
        %796 = vmatpush1.msra.mxu0 0.0
        %797 = vmatprep.subr.mxu0 0.0
        %798 = vmatpush1.msra.mxu0 0.0
        %799 = vmatprep.subr.mxu0 0.0
        %800 = vmatpush1.msra.mxu0 0.0
        %801 = vmatprep.subr.mxu0 0.0
        %802 = vmatpush1.msra.mxu0 0.0
        %803 = vmatprep.subr.mxu0 0.0
        %804 = vmatpush1.msra.mxu0 0.0
        %805 = vmatprep.subr.mxu0 0.0
        %806 = vmatpush1.msra.mxu0 0.0
        %807 = vmatprep.subr.mxu0 0.0
        %808 = vmatpush1.msra.mxu0 0.0
        %809 = vmatprep.subr.mxu0 0.0
        %810 = vmatpush1.msra.mxu0 0.0
        %811 = vmatprep.subr.mxu0 0.0
        %812 = vmatpush1.msra.mxu0 0.0
        %813 = vmatprep.subr.mxu0 0.0
        %814 = vmatpush1.msra.mxu0 0.0
        %815 = vmatprep.subr.mxu0 0.0
        %816 = vmatpush1.msra.mxu0 0.0
        %817 = vmatprep.subr.mxu0 0.0
        %818 = vmatpush1.msra.mxu0 0.0
        %819 = vmatprep.subr.mxu0 0.0
        %820 = vmatpush1.msra.mxu0 0.0
        %821 = vmatprep.subr.mxu0 0.0
        %822 = vmatpush1.msra.mxu0 0.0
        %823 = vmatprep.subr.mxu0 0.0
        %824 = vmatpush1.msra.mxu0 0.0
        %825 = vmatprep.subr.mxu0 0.0
        %826 = vmatpush1.msra.mxu0 0.0
        %827 = vmatprep.subr.mxu0 0.0
        %828 = vmatpush1.msra.mxu0 0.0
        %829 = vmatprep.subr.mxu0 0.0
        %830 = vmatpush1.msra.mxu0 0.0
        %831 = vmatprep.subr.mxu0 0.0
        %832 = vmatpush1.msra.mxu0 0.0
        %833 = vmatprep.subr.mxu0 0.0
        %834 = vmatpush1.msra.mxu0 0.0
        %835 = vmatprep.subr.mxu0 0.0
        %836 = vmatpush1.msra.mxu0 0.0
        %837 = vmatprep.subr.mxu0 0.0
        %838 = vmatpush1.msra.mxu0 0.0
        %839 = vmatprep.subr.mxu0 0.0
        %840 = vmatpush1.msra.mxu0 0.0
        %841 = vmatprep.subr.mxu0 0.0
        %842 = vmatpush1.msra.mxu0 0.0
        %843 = vmatprep.subr.mxu0 0.0
        %844 = vmatpush1.msra.mxu0 0.0
        %845 = vmatprep.mubr.f32.mxu0 0.0
        %846 = vmatmul.mubr.f32.gmra.mrb[0].mxu0 %v674
        %v847 = vpop.f32.mrb[0].mxu0
        %v848 = vadd.f32 0.0, %v847
        %v849 = vpop.f32.mrb[0].mxu0
        %850 = vmatprep.mubr.f32.mxu0 0.0
        %851 = vmatmul.mubr.f32.gmra.mrb[0].mxu0 %v677
        %v852 = vpop.f32.mrb[0].mxu0
        %v853 = vadd.f32 0.0, %v852
        %v854 = vpop.f32.mrb[0].mxu0
        %855 = vmatprep.mubr.f32.mxu0 0.0
        %856 = vmatmul.mubr.f32.gmra.mrb[0].mxu0 %v680
        %v857 = vpop.f32.mrb[0].mxu0
        %v858 = vadd.f32 0.0, %v857
        %v859 = vpop.f32.mrb[0].mxu0
        %860 = vmatprep.mubr.f32.mxu0 0.0
        %861 = vmatmul.mubr.f32.gmra.mrb[0].mxu0 %v683
        %v862 = vpop.f32.mrb[0].mxu0
        %v863 = vadd.f32 0.0, %v862
        %v864 = vpop.f32.mrb[0].mxu0
        %865 = vmatprep.mubr.f32.mxu0 0.0
        %866 = vmatmul.mubr.f32.gmra.mrb[0].mxu0 %v686
        %v867 = vpop.f32.mrb[0].mxu0
        %v868 = vadd.f32 0.0, %v867
        %v869 = vpop.f32.mrb[0].mxu0
        %870 = vmatprep.mubr.f32.mxu0 0.0
        %871 = vmatmul.mubr.f32.gmra.mrb[0].mxu0 %v689
        %v872 = vpop.f32.mrb[0].mxu0
        %v873 = vadd.f32 0.0, %v872
        %v874 = vpop.f32.mrb[0].mxu0
        %875 = vmatprep.mubr.f32.mxu0 0.0
        %876 = vmatmul.mubr.f32.gmra.mrb[0].mxu0 %v692
        %v877 = vpop.f32.mrb[0].mxu0
        %v878 = vadd.f32 0.0, %v877
        %v879 = vpop.f32.mrb[0].mxu0
        %880 = vmatprep.mubr.f32.mxu0 0.0
        %881 = vmatmul.mubr.f32.gmra.mrb[0].mxu0 %v695
        %v882 = vpop.f32.mrb[0].mxu0
        %v883 = vadd.f32 0.0, %v882
        %v884 = vpop.f32.mrb[0].mxu0
        %885 = vmatprep.mubr.f32.mxu0 0.0
        %886 = vmatmul.mubr.f32.gmra.mrb[0].mxu0 %v698
        %v887 = vpop.f32.mrb[0].mxu0
        %v888 = vadd.f32 0.0, %v887
        %v889 = vpop.f32.mrb[0].mxu0
        %890 = vmatprep.mubr.f32.mxu0 0.0
        %891 = vmatmul.mubr.f32.gmra.mrb[0].mxu0 %v701
        %v892 = vpop.f32.mrb[0].mxu0
        %v893 = vadd.f32 0.0, %v892
        %v894 = vpop.f32.mrb[0].mxu0
        %895 = vmatprep.mubr.f32.mxu0 0.0
        %896 = vmatmul.mubr.f32.gmra.mrb[0].mxu0 %v704
        %v897 = vpop.f32.mrb[0].mxu0
        %v898 = vadd.f32 0.0, %v897
        %v899 = vpop.f32.mrb[0].mxu0
        %900 = vmatprep.mubr.f32.mxu0 0.0
        %901 = vmatmul.mubr.f32.gmra.mrb[0].mxu0 %v707
        %v902 = vpop.f32.mrb[0].mxu0
        %v903 = vadd.f32 0.0, %v902
        %v904 = vpop.f32.mrb[0].mxu0
        %905 = vmatprep.mubr.f32.mxu0 0.0
        %906 = vmatmul.mubr.f32.gmra.mrb[0].mxu0 %v710
        %v907 = vpop.f32.mrb[0].mxu0
        %v908 = vadd.f32 0.0, %v907
        %v909 = vpop.f32.mrb[0].mxu0
        %910 = vmatprep.mubr.f32.mxu0 0.0
        %911 = vmatmul.mubr.f32.gmra.mrb[0].mxu0 %v713
        %v912 = vpop.f32.mrb[0].mxu0
        %v913 = vadd.f32 0.0, %v912
        %v914 = vpop.f32.mrb[0].mxu0
        %915 = vmatprep.mubr.f32.mxu0 0.0
        %916 = vmatmul.mubr.f32.gmra.mrb[0].mxu0 %v716
        %v917 = vpop.f32.mrb[0].mxu0
        %v918 = vadd.f32 0.0, %v917
        %v919 = vpop.f32.mrb[0].mxu0
        %920 = vmatprep.mubr.f32.mxu0 0.0
        %921 = vmatmul.mubr.f32.gmra.mrb[0].mxu0 %v719
        %v922 = vpop.f32.mrb[0].mxu0
        %v923 = vadd.f32 0.0, %v922
        %v924 = vpop.f32.mrb[0].mxu0
        %925 = vmatprep.mubr.f32.mxu0 0.0
        %926 = vmatmul.mubr.f32.gmra.mrb[0].mxu0 %v722
        %v927 = vpop.f32.mrb[0].mxu0
        %v928 = vadd.f32 0.0, %v927
        %v929 = vpop.f32.mrb[0].mxu0
        %930 = vmatprep.mubr.f32.mxu0 0.0
        %931 = vmatmul.mubr.f32.gmra.mrb[0].mxu0 %v725
        %v932 = vpop.f32.mrb[0].mxu0
        %v933 = vadd.f32 0.0, %v932
        %v934 = vpop.f32.mrb[0].mxu0
        %935 = vmatprep.mubr.f32.mxu0 0.0
        %936 = vmatmul.mubr.f32.gmra.mrb[0].mxu0 %v728
        %v937 = vpop.f32.mrb[0].mxu0
        %v938 = vadd.f32 0.0, %v937
        %v939 = vpop.f32.mrb[0].mxu0
        %940 = vmatprep.mubr.f32.mxu0 0.0
        %941 = vmatmul.mubr.f32.gmra.mrb[0].mxu0 %v731
        %v942 = vpop.f32.mrb[0].mxu0
        %v943 = vadd.f32 0.0, %v942
        %v944 = vpop.f32.mrb[0].mxu0
        %945 = vmatprep.mubr.f32.mxu0 0.0
        %946 = vmatmul.mubr.f32.gmra.mrb[0].mxu0 %v734
        %v947 = vpop.f32.mrb[0].mxu0
        %v948 = vadd.f32 0.0, %v947
        %v949 = vpop.f32.mrb[0].mxu0
        %950 = vmatprep.mubr.f32.mxu0 0.0
        %951 = vmatmul.mubr.f32.gmra.mrb[0].mxu0 %v737
        %v952 = vpop.f32.mrb[0].mxu0
        %v953 = vadd.f32 0.0, %v952
        %v954 = vpop.f32.mrb[0].mxu0
        %955 = vmatprep.mubr.f32.mxu0 0.0
        %956 = vmatmul.mubr.f32.gmra.mrb[0].mxu0 %v740
        %v957 = vpop.f32.mrb[0].mxu0
        %v958 = vadd.f32 0.0, %v957
        %v959 = vpop.f32.mrb[0].mxu0
        %960 = vmatprep.mubr.f32.mxu0 0.0
        %961 = vmatmul.mubr.f32.gmra.mrb[0].mxu0 %v743
        %v962 = vpop.f32.mrb[0].mxu0
        %v963 = vadd.f32 0.0, %v962
        %v964 = vpop.f32.mrb[0].mxu0
        %965 = vmatprep.mubr.f32.mxu0 0.0
        %966 = vmatmul.mubr.f32.gmra.mrb[0].mxu0 %v746
        %v967 = vpop.f32.mrb[0].mxu0
        %v968 = vadd.f32 0.0, %v967
        %v969 = vpop.f32.mrb[0].mxu0
        %970 = vmatprep.mubr.f32.mxu0 0.0
        %971 = vmatmul.mubr.f32.gmra.mrb[0].mxu0 %v749
        %v972 = vpop.f32.mrb[0].mxu0
        %v973 = vadd.f32 0.0, %v972
        %v974 = vpop.f32.mrb[0].mxu0
        %975 = vmatprep.mubr.f32.mxu0 0.0
        %976 = vmatmul.mubr.f32.gmra.mrb[0].mxu0 %v752
        %v977 = vpop.f32.mrb[0].mxu0
        %v978 = vadd.f32 0.0, %v977
        %v979 = vpop.f32.mrb[0].mxu0
        %980 = vmatprep.mubr.f32.mxu0 0.0
        %981 = vmatmul.mubr.f32.gmra.mrb[0].mxu0 %v755
        %v982 = vpop.f32.mrb[0].mxu0
        %v983 = vadd.f32 0.0, %v982
        %v984 = vpop.f32.mrb[0].mxu0
        %985 = vmatprep.mubr.f32.mxu0 0.0
        %986 = vmatmul.mubr.f32.gmra.mrb[0].mxu0 %v758
        %v987 = vpop.f32.mrb[0].mxu0
        %v988 = vadd.f32 0.0, %v987
        %v989 = vpop.f32.mrb[0].mxu0
        %990 = vmatprep.mubr.f32.mxu0 0.0
        %991 = vmatmul.mubr.f32.gmra.mrb[0].mxu0 %v761
        %v992 = vpop.f32.mrb[0].mxu0
        %v993 = vadd.f32 0.0, %v992
        %v994 = vpop.f32.mrb[0].mxu0
        %995 = vmatprep.mubr.f32.mxu0 0.0
        %996 = vmatmul.mubr.f32.gmra.mrb[0].mxu0 %v764
        %v997 = vpop.f32.mrb[0].mxu0
        %v998 = vadd.f32 0.0, %v997
        %v999 = vpop.f32.mrb[0].mxu0
        %1000 = vmatprep.mubr.f32.mxu0 0.0
        %1001 = vmatmul.mubr.f32.gmra.mrb[0].mxu0 %v767
        %v1002 = vpop.f32.mrb[0].mxu0
        %v1003 = vadd.f32 0.0, %v1002
        %v1004 = vpop.f32.mrb[0].mxu0
        %1005 = vmatprep.mubr.f32.mxu0 0.0
        %1006 = vmatmul.mubr.f32.gmra.mrb[0].mxu0 %v770
        %v1007 = vpop.f32.mrb[0].mxu0
        %v1008 = vadd.f32 0.0, %v1007
        %v1009 = vpop.f32.mrb[0].mxu0
        %1010 = vmatprep.mubr.f32.mxu0 0.0
        %1011 = vmatmul.mubr.f32.gmra.mrb[0].mxu0 %v773
        %v1012 = vpop.f32.mrb[0].mxu0
        %v1013 = vadd.f32 0.0, %v1012
        %v1014 = vpop.f32.mrb[0].mxu0
        %1015 = vmatprep.mubr.f32.mxu0 0.0
        %1016 = vmatmul.mubr.f32.gmra.mrb[0].mxu0 %v776
        %v1017 = vpop.f32.mrb[0].mxu0
        %v1018 = vadd.f32 0.0, %v1017
        %v1019 = vpop.f32.mrb[0].mxu0
        %1020 = vmatprep.mubr.f32.mxu0 0.0
        %1021 = vmatmul.mubr.f32.gmra.mrb[0].mxu0 %v779
        %v1022 = vpop.f32.mrb[0].mxu0
        %v1023 = vadd.f32 0.0, %v1022
        %v1024 = vpop.f32.mrb[0].mxu0
        %1025 = vdwg.mxu0
        %v1026 = vld [vmem:[%s194] sm:$0xff]
        %v1027 = vld [vmem:[%s194 + $0x8] sm:$0xff]
        %v1028 = vld [vmem:[%s194 + $0x10] sm:$0xff]
        %v1029 = vld [vmem:[%s194 + $0x18] sm:$0xff]
        %v1030 = vld [vmem:[%s194 + $0x20] sm:$0xff]
        %v1031 = vld [vmem:[%s194 + $0x28] sm:$0xff]
        %v1032 = vld [vmem:[%s194 + $0x30] sm:$0xff]
        %v1033 = vld [vmem:[%s194 + $0x38] sm:$0xff]
        %v1034 = vld [vmem:[%s194 + $0x40] sm:$0xff]
        %v1035 = vld [vmem:[%s194 + $0x48] sm:$0xff]
        %v1036 = vld [vmem:[%s194 + $0x50] sm:$0xff]
        %v1037 = vld [vmem:[%s194 + $0x58] sm:$0xff]
        %v1038 = vld [vmem:[%s194 + $0x60] sm:$0xff]
        %v1039 = vld [vmem:[%s194 + $0x68] sm:$0xff]
        %v1040 = vld [vmem:[%s194 + $0x70] sm:$0xff]
        %v1041 = vld [vmem:[%s194 + $0x78] sm:$0xff]
        %v1042 = vld [vmem:[%s194 + $0x80] sm:$0xff]
        %v1043 = vld [vmem:[%s194 + $0x88] sm:$0xff]
        %v1044 = vld [vmem:[%s194 + $0x90] sm:$0xff]
        %v1045 = vld [vmem:[%s194 + $0x98] sm:$0xff]
        %v1046 = vld [vmem:[%s194 + $0xa0] sm:$0xff]
        %v1047 = vld [vmem:[%s194 + $0xa8] sm:$0xff]
        %v1048 = vld [vmem:[%s194 + $0xb0] sm:$0xff]
        %v1049 = vld [vmem:[%s194 + $0xb8] sm:$0xff]
        %v1050 = vld [vmem:[%s194 + $0xc0] sm:$0xff]
        %v1051 = vld [vmem:[%s194 + $0xc8] sm:$0xff]
        %v1052 = vld [vmem:[%s194 + $0xd0] sm:$0xff]
        %v1053 = vld [vmem:[%s194 + $0xd8] sm:$0xff]
        %v1054 = vld [vmem:[%s194 + $0xe0] sm:$0xff]
        %v1055 = vld [vmem:[%s194 + $0xe8] sm:$0xff]
        %v1056 = vld [vmem:[%s194 + $0xf0] sm:$0xff]
        %v1057 = vld [vmem:[%s194 + $0xf8] sm:$0xff]
        %v1058 = vld [vmem:[%s194 + $0x100] sm:$0xff]
        %v1059 = vld [vmem:[%s194 + $0x108] sm:$0xff]
        %v1060 = vld [vmem:[%s194 + $0x110] sm:$0xff]
        %v1061 = vld [vmem:[%s194 + $0x118] sm:$0xff]
        %v1062 = vadd.f32 %v1026, %v848
        %v1063 = vadd.f32 %v1027, %v853
        %v1064 = vadd.f32 %v1028, %v858
        %v1065 = vadd.f32 %v1029, %v863
        %v1066 = vadd.f32 %v1030, %v868
        %v1067 = vadd.f32 %v1031, %v873
        %v1068 = vadd.f32 %v1032, %v878
        %v1069 = vadd.f32 %v1033, %v883
        %v1070 = vadd.f32 %v1034, %v888
        %v1071 = vadd.f32 %v1035, %v893
        %v1072 = vadd.f32 %v1036, %v898
        %v1073 = vadd.f32 %v1037, %v903
        %v1074 = vadd.f32 %v1038, %v908
        %v1075 = vadd.f32 %v1039, %v913
        %v1076 = vadd.f32 %v1040, %v918
        %v1077 = vadd.f32 %v1041, %v923
        %v1078 = vadd.f32 %v1042, %v928
        %v1079 = vadd.f32 %v1043, %v933
        %v1080 = vadd.f32 %v1044, %v938
        %v1081 = vadd.f32 %v1045, %v943
        %v1082 = vadd.f32 %v1046, %v948
        %v1083 = vadd.f32 %v1047, %v953
        %v1084 = vadd.f32 %v1048, %v958
        %v1085 = vadd.f32 %v1049, %v963
        %v1086 = vadd.f32 %v1050, %v968
        %v1087 = vadd.f32 %v1051, %v973
        %v1088 = vadd.f32 %v1052, %v978
        %v1089 = vadd.f32 %v1053, %v983
        %v1090 = vadd.f32 %v1054, %v988
        %v1091 = vadd.f32 %v1055, %v993
        %v1092 = vadd.f32 %v1056, %v998
        %v1093 = vadd.f32 %v1057, %v1003
        %v1094 = vadd.f32 %v1058, %v1008
        %v1095 = vadd.f32 %v1059, %v1013
        %v1096 = vadd.f32 %v1060, %v1018
        %v1097 = vadd.f32 %v1061, %v1023
        %1098 = vst [vmem:[%s194] sm:$0xff] %v1062
        %1099 = vst [vmem:[%s194 + $0x8] sm:$0xff] %v1063
        %1100 = vst [vmem:[%s194 + $0x10] sm:$0xff] %v1064
        %1101 = vst [vmem:[%s194 + $0x18] sm:$0xff] %v1065
        %1102 = vst [vmem:[%s194 + $0x20] sm:$0xff] %v1066
        %1103 = vst [vmem:[%s194 + $0x28] sm:$0xff] %v1067
        %1104 = vst [vmem:[%s194 + $0x30] sm:$0xff] %v1068
        %1105 = vst [vmem:[%s194 + $0x38] sm:$0xff] %v1069
        %1106 = vst [vmem:[%s194 + $0x40] sm:$0xff] %v1070
        %1107 = vst [vmem:[%s194 + $0x48] sm:$0xff] %v1071
        %1108 = vst [vmem:[%s194 + $0x50] sm:$0xff] %v1072
        %1109 = vst [vmem:[%s194 + $0x58] sm:$0xff] %v1073
        %1110 = vst [vmem:[%s194 + $0x60] sm:$0xff] %v1074
        %1111 = vst [vmem:[%s194 + $0x68] sm:$0xff] %v1075
        %1112 = vst [vmem:[%s194 + $0x70] sm:$0xff] %v1076
        %1113 = vst [vmem:[%s194 + $0x78] sm:$0xff] %v1077
        %1114 = vst [vmem:[%s194 + $0x80] sm:$0xff] %v1078
        %1115 = vst [vmem:[%s194 + $0x88] sm:$0xff] %v1079
        %1116 = vst [vmem:[%s194 + $0x90] sm:$0xff] %v1080
        %1117 = vst [vmem:[%s194 + $0x98] sm:$0xff] %v1081
        %1118 = vst [vmem:[%s194 + $0xa0] sm:$0xff] %v1082
        %1119 = vst [vmem:[%s194 + $0xa8] sm:$0xff] %v1083
        %1120 = vst [vmem:[%s194 + $0xb0] sm:$0xff] %v1084
        %1121 = vst [vmem:[%s194 + $0xb8] sm:$0xff] %v1085
        %1122 = vst [vmem:[%s194 + $0xc0] sm:$0xff] %v1086
        %1123 = vst [vmem:[%s194 + $0xc8] sm:$0xff] %v1087
        %1124 = vst [vmem:[%s194 + $0xd0] sm:$0xff] %v1088
        %1125 = vst [vmem:[%s194 + $0xd8] sm:$0xff] %v1089
        %1126 = vst [vmem:[%s194 + $0xe0] sm:$0xff] %v1090
        %1127 = vst [vmem:[%s194 + $0xe8] sm:$0xff] %v1091
        %1128 = vst [vmem:[%s194 + $0xf0] sm:$0xff] %v1092
        %1129 = vst [vmem:[%s194 + $0xf8] sm:$0xff] %v1093
        %1130 = vst [vmem:[%s194 + $0x100] sm:$0xff] %v1094
        %1131 = vst [vmem:[%s194 + $0x108] sm:$0xff] %v1095
        %1132 = vst [vmem:[%s194 + $0x110] sm:$0xff] %v1096
        %1133 = vst [vmem:[%s194 + $0x118] sm:$0xff] %v1097
        %v1134 = vld [vmem:[%s206 + $0x2] sm:$0xff]
        %v1135 = vld [vmem:[%s206 + $0xa] sm:$0xff]
        %v1136 = vld [vmem:[%s206 + $0x12] sm:$0xff]
        %v1137 = vld [vmem:[%s206 + $0x1a] sm:$0xff]
        %v1138 = vld [vmem:[%s206 + $0x22] sm:$0xff]
        %v1139 = vld [vmem:[%s206 + $0x2a] sm:$0xff]
        %v1140 = vld [vmem:[%s206 + $0x32] sm:$0xff]
        %v1141 = vld [vmem:[%s206 + $0x3a] sm:$0xff]
        %v1142 = vld [vmem:[%s206 + $0x42] sm:$0xff]
        %v1143 = vld [vmem:[%s206 + $0x4a] sm:$0xff]
        %v1144 = vld [vmem:[%s206 + $0x52] sm:$0xff]
        %v1145 = vld [vmem:[%s206 + $0x5a] sm:$0xff]
        %v1146 = vld [vmem:[%s206 + $0x62] sm:$0xff]
        %v1147 = vld [vmem:[%s206 + $0x6a] sm:$0xff]
        %v1148 = vld [vmem:[%s206 + $0x72] sm:$0xff]
        %v1149 = vld [vmem:[%s206 + $0x7a] sm:$0xff]
        %v1150 = vld [vmem:[%s206 + $0x82] sm:$0xff]
        %v1151 = vld [vmem:[%s206 + $0x8a] sm:$0xff]
        %v1152 = vld [vmem:[%s206 + $0x92] sm:$0xff]
        %v1153 = vld [vmem:[%s206 + $0x9a] sm:$0xff]
        %v1154 = vld [vmem:[%s206 + $0xa2] sm:$0xff]
        %v1155 = vld [vmem:[%s206 + $0xaa] sm:$0xff]
        %v1156 = vld [vmem:[%s206 + $0xb2] sm:$0xff]
        %v1157 = vld [vmem:[%s206 + $0xba] sm:$0xff]
        %v1158 = vld [vmem:[%s206 + $0xc2] sm:$0xff]
        %v1159 = vld [vmem:[%s206 + $0xca] sm:$0xff]
        %v1160 = vld [vmem:[%s206 + $0xd2] sm:$0xff]
        %v1161 = vld [vmem:[%s206 + $0xda] sm:$0xff]
        %v1162 = vld [vmem:[%s206 + $0xe2] sm:$0xff]
        %v1163 = vld [vmem:[%s206 + $0xea] sm:$0xff]
        %v1164 = vld [vmem:[%s206 + $0xf2] sm:$0xff]
        %v1165 = vld [vmem:[%s206 + $0xfa] sm:$0xff]
        %v1166 = vld [vmem:[%s206 + $0x102] sm:$0xff]
        %v1167 = vld [vmem:[%s206 + $0x10a] sm:$0xff]
        %v1168 = vld [vmem:[%s206 + $0x112] sm:$0xff]
        %v1169 = vld [vmem:[%s206 + $0x11a] sm:$0xff]
        %s1170 = scalar_lea.vmem %s1, 16
        %v1171 = vld [vmem:[%s1170] sm:$0xff]
        %v1173 = vsel %vm245, %v1134, 0
        %v1176 = vsel %vm245, %v1135, 0
        %v1179 = vsel %vm245, %v1136, 0
        %v1182 = vsel %vm245, %v1137, 0
        %v1185 = vsel %vm245, %v1138, 0
        %v1188 = vsel %vm245, %v1139, 0
        %v1191 = vsel %vm245, %v1140, 0
        %v1194 = vsel %vm245, %v1141, 0
        %v1197 = vsel %vm245, %v1142, 0
        %v1200 = vsel %vm245, %v1143, 0
        %v1203 = vsel %vm245, %v1144, 0
        %v1206 = vsel %vm245, %v1145, 0
        %v1209 = vsel %vm245, %v1146, 0
        %v1212 = vsel %vm245, %v1147, 0
        %v1215 = vsel %vm245, %v1148, 0
        %v1218 = vsel %vm245, %v1149, 0
        %v1221 = vsel %vm245, %v1150, 0
        %v1224 = vsel %vm245, %v1151, 0
        %v1227 = vsel %vm245, %v1152, 0
        %v1230 = vsel %vm245, %v1153, 0
        %v1233 = vsel %vm245, %v1154, 0
        %v1236 = vsel %vm245, %v1155, 0
        %v1239 = vsel %vm245, %v1156, 0
        %v1242 = vsel %vm245, %v1157, 0
        %v1245 = vsel %vm245, %v1158, 0
        %v1248 = vsel %vm245, %v1159, 0
        %v1251 = vsel %vm245, %v1160, 0
        %v1254 = vsel %vm245, %v1161, 0
        %v1257 = vsel %vm245, %v1162, 0
        %v1260 = vsel %vm245, %v1163, 0
        %v1263 = vsel %vm245, %v1164, 0
        %v1266 = vsel %vm245, %v1165, 0
        %v1269 = vsel %vm245, %v1166, 0
        %v1272 = vsel %vm245, %v1167, 0
        %v1275 = vsel %vm245, %v1168, 0
        %v1278 = vsel %vm245, %v1169, 0
        %1280 = vmatprep.subr.mxu0 0.0
        %1281 = vmatpush1.msra.mxu0 %v1171
        %1282 = vmatprep.subr.mxu0 0.0
        %1283 = vmatpush1.msra.mxu0 0.0
        %1284 = vmatprep.subr.mxu0 0.0
        %1285 = vmatpush1.msra.mxu0 0.0
        %1286 = vmatprep.subr.mxu0 0.0
        %1287 = vmatpush1.msra.mxu0 0.0
        %1288 = vmatprep.subr.mxu0 0.0
        %1289 = vmatpush1.msra.mxu0 0.0
        %1290 = vmatprep.subr.mxu0 0.0
        %1291 = vmatpush1.msra.mxu0 0.0
        %1292 = vmatprep.subr.mxu0 0.0
        %1293 = vmatpush1.msra.mxu0 0.0
        %1294 = vmatprep.subr.mxu0 0.0
        %1295 = vmatpush1.msra.mxu0 0.0
        %1296 = vmatprep.subr.mxu0 0.0
        %1297 = vmatpush1.msra.mxu0 0.0
        %1298 = vmatprep.subr.mxu0 0.0
        %1299 = vmatpush1.msra.mxu0 0.0
        %1300 = vmatprep.subr.mxu0 0.0
        %1301 = vmatpush1.msra.mxu0 0.0
        %1302 = vmatprep.subr.mxu0 0.0
        %1303 = vmatpush1.msra.mxu0 0.0
        %1304 = vmatprep.subr.mxu0 0.0
        %1305 = vmatpush1.msra.mxu0 0.0
        %1306 = vmatprep.subr.mxu0 0.0
        %1307 = vmatpush1.msra.mxu0 0.0
        %1308 = vmatprep.subr.mxu0 0.0
        %1309 = vmatpush1.msra.mxu0 0.0
        %1310 = vmatprep.subr.mxu0 0.0
        %1311 = vmatpush1.msra.mxu0 0.0
        %1312 = vmatprep.subr.mxu0 0.0
        %1313 = vmatpush1.msra.mxu0 0.0
        %1314 = vmatprep.subr.mxu0 0.0
        %1315 = vmatpush1.msra.mxu0 0.0
        %1316 = vmatprep.subr.mxu0 0.0
        %1317 = vmatpush1.msra.mxu0 0.0
        %1318 = vmatprep.subr.mxu0 0.0
        %1319 = vmatpush1.msra.mxu0 0.0
        %1320 = vmatprep.subr.mxu0 0.0
        %1321 = vmatpush1.msra.mxu0 0.0
        %1322 = vmatprep.subr.mxu0 0.0
        %1323 = vmatpush1.msra.mxu0 0.0
        %1324 = vmatprep.subr.mxu0 0.0
        %1325 = vmatpush1.msra.mxu0 0.0
        %1326 = vmatprep.subr.mxu0 0.0
        %1327 = vmatpush1.msra.mxu0 0.0
        %1328 = vmatprep.subr.mxu0 0.0
        %1329 = vmatpush1.msra.mxu0 0.0
        %1330 = vmatprep.subr.mxu0 0.0
        %1331 = vmatpush1.msra.mxu0 0.0
        %1332 = vmatprep.subr.mxu0 0.0
        %1333 = vmatpush1.msra.mxu0 0.0
        %1334 = vmatprep.subr.mxu0 0.0
        %1335 = vmatpush1.msra.mxu0 0.0
        %1336 = vmatprep.subr.mxu0 0.0
        %1337 = vmatpush1.msra.mxu0 0.0
        %1338 = vmatprep.subr.mxu0 0.0
        %1339 = vmatpush1.msra.mxu0 0.0
        %1340 = vmatprep.subr.mxu0 0.0
        %1341 = vmatpush1.msra.mxu0 0.0
        %1342 = vmatprep.subr.mxu0 0.0
        %1343 = vmatpush1.msra.mxu0 0.0
        %1344 = vmatprep.mubr.f32.mxu0 0.0
        %1345 = vmatmul.mubr.f32.gmra.mrb[0].mxu0 %v1173
        %v1346 = vpop.f32.mrb[0].mxu0
        %v1347 = vadd.f32 0.0, %v1346
        %v1348 = vpop.f32.mrb[0].mxu0
        %1349 = vmatprep.mubr.f32.mxu0 0.0
        %1350 = vmatmul.mubr.f32.gmra.mrb[0].mxu0 %v1176
        %v1351 = vpop.f32.mrb[0].mxu0
        %v1352 = vadd.f32 0.0, %v1351
        %v1353 = vpop.f32.mrb[0].mxu0
        %1354 = vmatprep.mubr.f32.mxu0 0.0
        %1355 = vmatmul.mubr.f32.gmra.mrb[0].mxu0 %v1179
        %v1356 = vpop.f32.mrb[0].mxu0
        %v1357 = vadd.f32 0.0, %v1356
        %v1358 = vpop.f32.mrb[0].mxu0
        %1359 = vmatprep.mubr.f32.mxu0 0.0
        %1360 = vmatmul.mubr.f32.gmra.mrb[0].mxu0 %v1182
        %v1361 = vpop.f32.mrb[0].mxu0
        %v1362 = vadd.f32 0.0, %v1361
        %v1363 = vpop.f32.mrb[0].mxu0
        %1364 = vmatprep.mubr.f32.mxu0 0.0
        %1365 = vmatmul.mubr.f32.gmra.mrb[0].mxu0 %v1185
        %v1366 = vpop.f32.mrb[0].mxu0
        %v1367 = vadd.f32 0.0, %v1366
        %v1368 = vpop.f32.mrb[0].mxu0
        %1369 = vmatprep.mubr.f32.mxu0 0.0
        %1370 = vmatmul.mubr.f32.gmra.mrb[0].mxu0 %v1188
        %v1371 = vpop.f32.mrb[0].mxu0
        %v1372 = vadd.f32 0.0, %v1371
        %v1373 = vpop.f32.mrb[0].mxu0
        %1374 = vmatprep.mubr.f32.mxu0 0.0
        %1375 = vmatmul.mubr.f32.gmra.mrb[0].mxu0 %v1191
        %v1376 = vpop.f32.mrb[0].mxu0
        %v1377 = vadd.f32 0.0, %v1376
        %v1378 = vpop.f32.mrb[0].mxu0
        %1379 = vmatprep.mubr.f32.mxu0 0.0
        %1380 = vmatmul.mubr.f32.gmra.mrb[0].mxu0 %v1194
        %v1381 = vpop.f32.mrb[0].mxu0
        %v1382 = vadd.f32 0.0, %v1381
        %v1383 = vpop.f32.mrb[0].mxu0
        %1384 = vmatprep.mubr.f32.mxu0 0.0
        %1385 = vmatmul.mubr.f32.gmra.mrb[0].mxu0 %v1197
        %v1386 = vpop.f32.mrb[0].mxu0
        %v1387 = vadd.f32 0.0, %v1386
        %v1388 = vpop.f32.mrb[0].mxu0
        %1389 = vmatprep.mubr.f32.mxu0 0.0
        %1390 = vmatmul.mubr.f32.gmra.mrb[0].mxu0 %v1200
        %v1391 = vpop.f32.mrb[0].mxu0
        %v1392 = vadd.f32 0.0, %v1391
        %v1393 = vpop.f32.mrb[0].mxu0
        %1394 = vmatprep.mubr.f32.mxu0 0.0
        %1395 = vmatmul.mubr.f32.gmra.mrb[0].mxu0 %v1203
        %v1396 = vpop.f32.mrb[0].mxu0
        %v1397 = vadd.f32 0.0, %v1396
        %v1398 = vpop.f32.mrb[0].mxu0
        %1399 = vmatprep.mubr.f32.mxu0 0.0
        %1400 = vmatmul.mubr.f32.gmra.mrb[0].mxu0 %v1206
        %v1401 = vpop.f32.mrb[0].mxu0
        %v1402 = vadd.f32 0.0, %v1401
        %v1403 = vpop.f32.mrb[0].mxu0
        %1404 = vmatprep.mubr.f32.mxu0 0.0
        %1405 = vmatmul.mubr.f32.gmra.mrb[0].mxu0 %v1209
        %v1406 = vpop.f32.mrb[0].mxu0
        %v1407 = vadd.f32 0.0, %v1406
        %v1408 = vpop.f32.mrb[0].mxu0
        %1409 = vmatprep.mubr.f32.mxu0 0.0
        %1410 = vmatmul.mubr.f32.gmra.mrb[0].mxu0 %v1212
        %v1411 = vpop.f32.mrb[0].mxu0
        %v1412 = vadd.f32 0.0, %v1411
        %v1413 = vpop.f32.mrb[0].mxu0
        %1414 = vmatprep.mubr.f32.mxu0 0.0
        %1415 = vmatmul.mubr.f32.gmra.mrb[0].mxu0 %v1215
        %v1416 = vpop.f32.mrb[0].mxu0
        %v1417 = vadd.f32 0.0, %v1416
        %v1418 = vpop.f32.mrb[0].mxu0
        %1419 = vmatprep.mubr.f32.mxu0 0.0
        %1420 = vmatmul.mubr.f32.gmra.mrb[0].mxu0 %v1218
        %v1421 = vpop.f32.mrb[0].mxu0
        %v1422 = vadd.f32 0.0, %v1421
        %v1423 = vpop.f32.mrb[0].mxu0
        %1424 = vmatprep.mubr.f32.mxu0 0.0
        %1425 = vmatmul.mubr.f32.gmra.mrb[0].mxu0 %v1221
        %v1426 = vpop.f32.mrb[0].mxu0
        %v1427 = vadd.f32 0.0, %v1426
        %v1428 = vpop.f32.mrb[0].mxu0
        %1429 = vmatprep.mubr.f32.mxu0 0.0
        %1430 = vmatmul.mubr.f32.gmra.mrb[0].mxu0 %v1224
        %v1431 = vpop.f32.mrb[0].mxu0
        %v1432 = vadd.f32 0.0, %v1431
        %v1433 = vpop.f32.mrb[0].mxu0
        %1434 = vmatprep.mubr.f32.mxu0 0.0
        %1435 = vmatmul.mubr.f32.gmra.mrb[0].mxu0 %v1227
        %v1436 = vpop.f32.mrb[0].mxu0
        %v1437 = vadd.f32 0.0, %v1436
        %v1438 = vpop.f32.mrb[0].mxu0
        %1439 = vmatprep.mubr.f32.mxu0 0.0
        %1440 = vmatmul.mubr.f32.gmra.mrb[0].mxu0 %v1230
        %v1441 = vpop.f32.mrb[0].mxu0
        %v1442 = vadd.f32 0.0, %v1441
        %v1443 = vpop.f32.mrb[0].mxu0
        %1444 = vmatprep.mubr.f32.mxu0 0.0
        %1445 = vmatmul.mubr.f32.gmra.mrb[0].mxu0 %v1233
        %v1446 = vpop.f32.mrb[0].mxu0
        %v1447 = vadd.f32 0.0, %v1446
        %v1448 = vpop.f32.mrb[0].mxu0
        %1449 = vmatprep.mubr.f32.mxu0 0.0
        %1450 = vmatmul.mubr.f32.gmra.mrb[0].mxu0 %v1236
        %v1451 = vpop.f32.mrb[0].mxu0
        %v1452 = vadd.f32 0.0, %v1451
        %v1453 = vpop.f32.mrb[0].mxu0
        %1454 = vmatprep.mubr.f32.mxu0 0.0
        %1455 = vmatmul.mubr.f32.gmra.mrb[0].mxu0 %v1239
        %v1456 = vpop.f32.mrb[0].mxu0
        %v1457 = vadd.f32 0.0, %v1456
        %v1458 = vpop.f32.mrb[0].mxu0
        %1459 = vmatprep.mubr.f32.mxu0 0.0
        %1460 = vmatmul.mubr.f32.gmra.mrb[0].mxu0 %v1242
        %v1461 = vpop.f32.mrb[0].mxu0
        %v1462 = vadd.f32 0.0, %v1461
        %v1463 = vpop.f32.mrb[0].mxu0
        %1464 = vmatprep.mubr.f32.mxu0 0.0
        %1465 = vmatmul.mubr.f32.gmra.mrb[0].mxu0 %v1245
        %v1466 = vpop.f32.mrb[0].mxu0
        %v1467 = vadd.f32 0.0, %v1466
        %v1468 = vpop.f32.mrb[0].mxu0
        %1469 = vmatprep.mubr.f32.mxu0 0.0
        %1470 = vmatmul.mubr.f32.gmra.mrb[0].mxu0 %v1248
        %v1471 = vpop.f32.mrb[0].mxu0
        %v1472 = vadd.f32 0.0, %v1471
        %v1473 = vpop.f32.mrb[0].mxu0
        %1474 = vmatprep.mubr.f32.mxu0 0.0
        %1475 = vmatmul.mubr.f32.gmra.mrb[0].mxu0 %v1251
        %v1476 = vpop.f32.mrb[0].mxu0
        %v1477 = vadd.f32 0.0, %v1476
        %v1478 = vpop.f32.mrb[0].mxu0
        %1479 = vmatprep.mubr.f32.mxu0 0.0
        %1480 = vmatmul.mubr.f32.gmra.mrb[0].mxu0 %v1254
        %v1481 = vpop.f32.mrb[0].mxu0
        %v1482 = vadd.f32 0.0, %v1481
        %v1483 = vpop.f32.mrb[0].mxu0
        %1484 = vmatprep.mubr.f32.mxu0 0.0
        %1485 = vmatmul.mubr.f32.gmra.mrb[0].mxu0 %v1257
        %v1486 = vpop.f32.mrb[0].mxu0
        %v1487 = vadd.f32 0.0, %v1486
        %v1488 = vpop.f32.mrb[0].mxu0
        %1489 = vmatprep.mubr.f32.mxu0 0.0
        %1490 = vmatmul.mubr.f32.gmra.mrb[0].mxu0 %v1260
        %v1491 = vpop.f32.mrb[0].mxu0
        %v1492 = vadd.f32 0.0, %v1491
        %v1493 = vpop.f32.mrb[0].mxu0
        %1494 = vmatprep.mubr.f32.mxu0 0.0
        %1495 = vmatmul.mubr.f32.gmra.mrb[0].mxu0 %v1263
        %v1496 = vpop.f32.mrb[0].mxu0
        %v1497 = vadd.f32 0.0, %v1496
        %v1498 = vpop.f32.mrb[0].mxu0
        %1499 = vmatprep.mubr.f32.mxu0 0.0
        %1500 = vmatmul.mubr.f32.gmra.mrb[0].mxu0 %v1266
        %v1501 = vpop.f32.mrb[0].mxu0
        %v1502 = vadd.f32 0.0, %v1501
        %v1503 = vpop.f32.mrb[0].mxu0
        %1504 = vmatprep.mubr.f32.mxu0 0.0
        %1505 = vmatmul.mubr.f32.gmra.mrb[0].mxu0 %v1269
        %v1506 = vpop.f32.mrb[0].mxu0
        %v1507 = vadd.f32 0.0, %v1506
        %v1508 = vpop.f32.mrb[0].mxu0
        %1509 = vmatprep.mubr.f32.mxu0 0.0
        %1510 = vmatmul.mubr.f32.gmra.mrb[0].mxu0 %v1272
        %v1511 = vpop.f32.mrb[0].mxu0
        %v1512 = vadd.f32 0.0, %v1511
        %v1513 = vpop.f32.mrb[0].mxu0
        %1514 = vmatprep.mubr.f32.mxu0 0.0
        %1515 = vmatmul.mubr.f32.gmra.mrb[0].mxu0 %v1275
        %v1516 = vpop.f32.mrb[0].mxu0
        %v1517 = vadd.f32 0.0, %v1516
        %v1518 = vpop.f32.mrb[0].mxu0
        %1519 = vmatprep.mubr.f32.mxu0 0.0
        %1520 = vmatmul.mubr.f32.gmra.mrb[0].mxu0 %v1278
        %v1521 = vpop.f32.mrb[0].mxu0
        %v1522 = vadd.f32 0.0, %v1521
        %v1523 = vpop.f32.mrb[0].mxu0
        %1524 = vdwg.mxu0
        %v1525 = vld [vmem:[%s194] sm:$0xff]
        %v1526 = vld [vmem:[%s194 + $0x8] sm:$0xff]
        %v1527 = vld [vmem:[%s194 + $0x10] sm:$0xff]
        %v1528 = vld [vmem:[%s194 + $0x18] sm:$0xff]
        %v1529 = vld [vmem:[%s194 + $0x20] sm:$0xff]
        %v1530 = vld [vmem:[%s194 + $0x28] sm:$0xff]
        %v1531 = vld [vmem:[%s194 + $0x30] sm:$0xff]
        %v1532 = vld [vmem:[%s194 + $0x38] sm:$0xff]
        %v1533 = vld [vmem:[%s194 + $0x40] sm:$0xff]
        %v1534 = vld [vmem:[%s194 + $0x48] sm:$0xff]
        %v1535 = vld [vmem:[%s194 + $0x50] sm:$0xff]
        %v1536 = vld [vmem:[%s194 + $0x58] sm:$0xff]
        %v1537 = vld [vmem:[%s194 + $0x60] sm:$0xff]
        %v1538 = vld [vmem:[%s194 + $0x68] sm:$0xff]
        %v1539 = vld [vmem:[%s194 + $0x70] sm:$0xff]
        %v1540 = vld [vmem:[%s194 + $0x78] sm:$0xff]
        %v1541 = vld [vmem:[%s194 + $0x80] sm:$0xff]
        %v1542 = vld [vmem:[%s194 + $0x88] sm:$0xff]
        %v1543 = vld [vmem:[%s194 + $0x90] sm:$0xff]
        %v1544 = vld [vmem:[%s194 + $0x98] sm:$0xff]
        %v1545 = vld [vmem:[%s194 + $0xa0] sm:$0xff]
        %v1546 = vld [vmem:[%s194 + $0xa8] sm:$0xff]
        %v1547 = vld [vmem:[%s194 + $0xb0] sm:$0xff]
        %v1548 = vld [vmem:[%s194 + $0xb8] sm:$0xff]
        %v1549 = vld [vmem:[%s194 + $0xc0] sm:$0xff]
        %v1550 = vld [vmem:[%s194 + $0xc8] sm:$0xff]
        %v1551 = vld [vmem:[%s194 + $0xd0] sm:$0xff]
        %v1552 = vld [vmem:[%s194 + $0xd8] sm:$0xff]
        %v1553 = vld [vmem:[%s194 + $0xe0] sm:$0xff]
        %v1554 = vld [vmem:[%s194 + $0xe8] sm:$0xff]
        %v1555 = vld [vmem:[%s194 + $0xf0] sm:$0xff]
        %v1556 = vld [vmem:[%s194 + $0xf8] sm:$0xff]
        %v1557 = vld [vmem:[%s194 + $0x100] sm:$0xff]
        %v1558 = vld [vmem:[%s194 + $0x108] sm:$0xff]
        %v1559 = vld [vmem:[%s194 + $0x110] sm:$0xff]
        %v1560 = vld [vmem:[%s194 + $0x118] sm:$0xff]
        %v1561 = vadd.f32 %v1525, %v1347
        %v1562 = vadd.f32 %v1526, %v1352
        %v1563 = vadd.f32 %v1527, %v1357
        %v1564 = vadd.f32 %v1528, %v1362
        %v1565 = vadd.f32 %v1529, %v1367
        %v1566 = vadd.f32 %v1530, %v1372
        %v1567 = vadd.f32 %v1531, %v1377
        %v1568 = vadd.f32 %v1532, %v1382
        %v1569 = vadd.f32 %v1533, %v1387
        %v1570 = vadd.f32 %v1534, %v1392
        %v1571 = vadd.f32 %v1535, %v1397
        %v1572 = vadd.f32 %v1536, %v1402
        %v1573 = vadd.f32 %v1537, %v1407
        %v1574 = vadd.f32 %v1538, %v1412
        %v1575 = vadd.f32 %v1539, %v1417
        %v1576 = vadd.f32 %v1540, %v1422
        %v1577 = vadd.f32 %v1541, %v1427
        %v1578 = vadd.f32 %v1542, %v1432
        %v1579 = vadd.f32 %v1543, %v1437
        %v1580 = vadd.f32 %v1544, %v1442
        %v1581 = vadd.f32 %v1545, %v1447
        %v1582 = vadd.f32 %v1546, %v1452
        %v1583 = vadd.f32 %v1547, %v1457
        %v1584 = vadd.f32 %v1548, %v1462
        %v1585 = vadd.f32 %v1549, %v1467
        %v1586 = vadd.f32 %v1550, %v1472
        %v1587 = vadd.f32 %v1551, %v1477
        %v1588 = vadd.f32 %v1552, %v1482
        %v1589 = vadd.f32 %v1553, %v1487
        %v1590 = vadd.f32 %v1554, %v1492
        %v1591 = vadd.f32 %v1555, %v1497
        %v1592 = vadd.f32 %v1556, %v1502
        %v1593 = vadd.f32 %v1557, %v1507
        %v1594 = vadd.f32 %v1558, %v1512
        %v1595 = vadd.f32 %v1559, %v1517
        %v1596 = vadd.f32 %v1560, %v1522
        %1597 = vst [vmem:[%s194] sm:$0xff] %v1561
        %1598 = vst [vmem:[%s194 + $0x8] sm:$0xff] %v1562
        %1599 = vst [vmem:[%s194 + $0x10] sm:$0xff] %v1563
        %1600 = vst [vmem:[%s194 + $0x18] sm:$0xff] %v1564
        %1601 = vst [vmem:[%s194 + $0x20] sm:$0xff] %v1565
        %1602 = vst [vmem:[%s194 + $0x28] sm:$0xff] %v1566
        %1603 = vst [vmem:[%s194 + $0x30] sm:$0xff] %v1567
        %1604 = vst [vmem:[%s194 + $0x38] sm:$0xff] %v1568
        %1605 = vst [vmem:[%s194 + $0x40] sm:$0xff] %v1569
        %1606 = vst [vmem:[%s194 + $0x48] sm:$0xff] %v1570
        %1607 = vst [vmem:[%s194 + $0x50] sm:$0xff] %v1571
        %1608 = vst [vmem:[%s194 + $0x58] sm:$0xff] %v1572
        %1609 = vst [vmem:[%s194 + $0x60] sm:$0xff] %v1573
        %1610 = vst [vmem:[%s194 + $0x68] sm:$0xff] %v1574
        %1611 = vst [vmem:[%s194 + $0x70] sm:$0xff] %v1575
        %1612 = vst [vmem:[%s194 + $0x78] sm:$0xff] %v1576
        %1613 = vst [vmem:[%s194 + $0x80] sm:$0xff] %v1577
        %1614 = vst [vmem:[%s194 + $0x88] sm:$0xff] %v1578
        %1615 = vst [vmem:[%s194 + $0x90] sm:$0xff] %v1579
        %1616 = vst [vmem:[%s194 + $0x98] sm:$0xff] %v1580
        %1617 = vst [vmem:[%s194 + $0xa0] sm:$0xff] %v1581
        %1618 = vst [vmem:[%s194 + $0xa8] sm:$0xff] %v1582
        %1619 = vst [vmem:[%s194 + $0xb0] sm:$0xff] %v1583
        %1620 = vst [vmem:[%s194 + $0xb8] sm:$0xff] %v1584
        %1621 = vst [vmem:[%s194 + $0xc0] sm:$0xff] %v1585
        %1622 = vst [vmem:[%s194 + $0xc8] sm:$0xff] %v1586
        %1623 = vst [vmem:[%s194 + $0xd0] sm:$0xff] %v1587
        %1624 = vst [vmem:[%s194 + $0xd8] sm:$0xff] %v1588
        %1625 = vst [vmem:[%s194 + $0xe0] sm:$0xff] %v1589
        %1626 = vst [vmem:[%s194 + $0xe8] sm:$0xff] %v1590
        %1627 = vst [vmem:[%s194 + $0xf0] sm:$0xff] %v1591
        %1628 = vst [vmem:[%s194 + $0xf8] sm:$0xff] %v1592
        %1629 = vst [vmem:[%s194 + $0x100] sm:$0xff] %v1593
        %1630 = vst [vmem:[%s194 + $0x108] sm:$0xff] %v1594
        %1631 = vst [vmem:[%s194 + $0x110] sm:$0xff] %v1595
        %1632 = vst [vmem:[%s194 + $0x118] sm:$0xff] %v1596
        %v1633 = vld [vmem:[%s206 + $0x12] sm:$0xff]
        %v1634 = vld [vmem:[%s206 + $0x1a] sm:$0xff]
        %v1635 = vld [vmem:[%s206 + $0x22] sm:$0xff]
        %v1636 = vld [vmem:[%s206 + $0x2a] sm:$0xff]
        %v1637 = vld [vmem:[%s206 + $0x32] sm:$0xff]
        %v1638 = vld [vmem:[%s206 + $0x3a] sm:$0xff]
        %v1639 = vld [vmem:[%s206 + $0x42] sm:$0xff]
        %v1640 = vld [vmem:[%s206 + $0x4a] sm:$0xff]
        %v1641 = vld [vmem:[%s206 + $0x52] sm:$0xff]
        %v1642 = vld [vmem:[%s206 + $0x5a] sm:$0xff]
        %v1643 = vld [vmem:[%s206 + $0x62] sm:$0xff]
        %v1644 = vld [vmem:[%s206 + $0x6a] sm:$0xff]
        %v1645 = vld [vmem:[%s206 + $0x72] sm:$0xff]
        %v1646 = vld [vmem:[%s206 + $0x7a] sm:$0xff]
        %v1647 = vld [vmem:[%s206 + $0x82] sm:$0xff]
        %v1648 = vld [vmem:[%s206 + $0x8a] sm:$0xff]
        %v1649 = vld [vmem:[%s206 + $0x92] sm:$0xff]
        %v1650 = vld [vmem:[%s206 + $0x9a] sm:$0xff]
        %v1651 = vld [vmem:[%s206 + $0xa2] sm:$0xff]
        %v1652 = vld [vmem:[%s206 + $0xaa] sm:$0xff]
        %v1653 = vld [vmem:[%s206 + $0xb2] sm:$0xff]
        %v1654 = vld [vmem:[%s206 + $0xba] sm:$0xff]
        %v1655 = vld [vmem:[%s206 + $0xc2] sm:$0xff]
        %v1656 = vld [vmem:[%s206 + $0xca] sm:$0xff]
        %v1657 = vld [vmem:[%s206 + $0xd2] sm:$0xff]
        %v1658 = vld [vmem:[%s206 + $0xda] sm:$0xff]
        %v1659 = vld [vmem:[%s206 + $0xe2] sm:$0xff]
        %v1660 = vld [vmem:[%s206 + $0xea] sm:$0xff]
        %v1661 = vld [vmem:[%s206 + $0xf2] sm:$0xff]
        %v1662 = vld [vmem:[%s206 + $0xfa] sm:$0xff]
        %v1663 = vld [vmem:[%s206 + $0x102] sm:$0xff]
        %v1664 = vld [vmem:[%s206 + $0x10a] sm:$0xff]
        %v1665 = vld [vmem:[%s206 + $0x112] sm:$0xff]
        %v1666 = vld [vmem:[%s206 + $0x11a] sm:$0xff]
        %v1667 = vld [vmem:[%s206 + $0x122] sm:$0xff]
        %v1668 = vld [vmem:[%s206 + $0x12a] sm:$0xff]
        %s1669 = scalar_lea.vmem %s1, 24
        %v1670 = vld [vmem:[%s1669] sm:$0xff]
        %v1672 = vsel %vm245, %v1633, 0
        %v1675 = vsel %vm245, %v1634, 0
        %v1678 = vsel %vm245, %v1635, 0
        %v1681 = vsel %vm245, %v1636, 0
        %v1684 = vsel %vm245, %v1637, 0
        %v1687 = vsel %vm245, %v1638, 0
        %v1690 = vsel %vm245, %v1639, 0
        %v1693 = vsel %vm245, %v1640, 0
        %v1696 = vsel %vm245, %v1641, 0
        %v1699 = vsel %vm245, %v1642, 0
        %v1702 = vsel %vm245, %v1643, 0
        %v1705 = vsel %vm245, %v1644, 0
        %v1708 = vsel %vm245, %v1645, 0
        %v1711 = vsel %vm245, %v1646, 0
        %v1714 = vsel %vm245, %v1647, 0
        %v1717 = vsel %vm245, %v1648, 0
        %v1720 = vsel %vm245, %v1649, 0
        %v1723 = vsel %vm245, %v1650, 0
        %v1726 = vsel %vm245, %v1651, 0
        %v1729 = vsel %vm245, %v1652, 0
        %v1732 = vsel %vm245, %v1653, 0
        %v1735 = vsel %vm245, %v1654, 0
        %v1738 = vsel %vm245, %v1655, 0
        %v1741 = vsel %vm245, %v1656, 0
        %v1744 = vsel %vm245, %v1657, 0
        %v1747 = vsel %vm245, %v1658, 0
        %v1750 = vsel %vm245, %v1659, 0
        %v1753 = vsel %vm245, %v1660, 0
        %v1756 = vsel %vm245, %v1661, 0
        %v1759 = vsel %vm245, %v1662, 0
        %v1762 = vsel %vm245, %v1663, 0
        %v1765 = vsel %vm245, %v1664, 0
        %v1768 = vsel %vm245, %v1665, 0
        %v1771 = vsel %vm245, %v1666, 0
        %v1774 = vsel %vm245, %v1667, 0
        %v1777 = vsel %vm245, %v1668, 0
        %1779 = vmatprep.subr.mxu0 0.0
        %1780 = vmatpush1.msra.mxu0 %v1670
        %1781 = vmatprep.subr.mxu0 0.0
        %1782 = vmatpush1.msra.mxu0 0.0
        %1783 = vmatprep.subr.mxu0 0.0
        %1784 = vmatpush1.msra.mxu0 0.0
        %1785 = vmatprep.subr.mxu0 0.0
        %1786 = vmatpush1.msra.mxu0 0.0
        %1787 = vmatprep.subr.mxu0 0.0
        %1788 = vmatpush1.msra.mxu0 0.0
        %1789 = vmatprep.subr.mxu0 0.0
        %1790 = vmatpush1.msra.mxu0 0.0
        %1791 = vmatprep.subr.mxu0 0.0
        %1792 = vmatpush1.msra.mxu0 0.0
        %1793 = vmatprep.subr.mxu0 0.0
        %1794 = vmatpush1.msra.mxu0 0.0
        %1795 = vmatprep.subr.mxu0 0.0
        %1796 = vmatpush1.msra.mxu0 0.0
        %1797 = vmatprep.subr.mxu0 0.0
        %1798 = vmatpush1.msra.mxu0 0.0
        %1799 = vmatprep.subr.mxu0 0.0
        %1800 = vmatpush1.msra.mxu0 0.0
        %1801 = vmatprep.subr.mxu0 0.0
        %1802 = vmatpush1.msra.mxu0 0.0
        %1803 = vmatprep.subr.mxu0 0.0
        %1804 = vmatpush1.msra.mxu0 0.0
        %1805 = vmatprep.subr.mxu0 0.0
        %1806 = vmatpush1.msra.mxu0 0.0
        %1807 = vmatprep.subr.mxu0 0.0
        %1808 = vmatpush1.msra.mxu0 0.0
        %1809 = vmatprep.subr.mxu0 0.0
        %1810 = vmatpush1.msra.mxu0 0.0
        %1811 = vmatprep.subr.mxu0 0.0
        %1812 = vmatpush1.msra.mxu0 0.0
        %1813 = vmatprep.subr.mxu0 0.0
        %1814 = vmatpush1.msra.mxu0 0.0
        %1815 = vmatprep.subr.mxu0 0.0
        %1816 = vmatpush1.msra.mxu0 0.0
        %1817 = vmatprep.subr.mxu0 0.0
        %1818 = vmatpush1.msra.mxu0 0.0
        %1819 = vmatprep.subr.mxu0 0.0
        %1820 = vmatpush1.msra.mxu0 0.0
        %1821 = vmatprep.subr.mxu0 0.0
        %1822 = vmatpush1.msra.mxu0 0.0
        %1823 = vmatprep.subr.mxu0 0.0
        %1824 = vmatpush1.msra.mxu0 0.0
        %1825 = vmatprep.subr.mxu0 0.0
        %1826 = vmatpush1.msra.mxu0 0.0
        %1827 = vmatprep.subr.mxu0 0.0
        %1828 = vmatpush1.msra.mxu0 0.0
        %1829 = vmatprep.subr.mxu0 0.0
        %1830 = vmatpush1.msra.mxu0 0.0
        %1831 = vmatprep.subr.mxu0 0.0
        %1832 = vmatpush1.msra.mxu0 0.0
        %1833 = vmatprep.subr.mxu0 0.0
        %1834 = vmatpush1.msra.mxu0 0.0
        %1835 = vmatprep.subr.mxu0 0.0
        %1836 = vmatpush1.msra.mxu0 0.0
        %1837 = vmatprep.subr.mxu0 0.0
        %1838 = vmatpush1.msra.mxu0 0.0
        %1839 = vmatprep.subr.mxu0 0.0
        %1840 = vmatpush1.msra.mxu0 0.0
        %1841 = vmatprep.subr.mxu0 0.0
        %1842 = vmatpush1.msra.mxu0 0.0
        %1843 = vmatprep.mubr.f32.mxu0 0.0
        %1844 = vmatmul.mubr.f32.gmra.mrb[0].mxu0 %v1672
        %v1845 = vpop.f32.mrb[0].mxu0
        %v1846 = vadd.f32 0.0, %v1845
        %v1847 = vpop.f32.mrb[0].mxu0
        %1848 = vmatprep.mubr.f32.mxu0 0.0
        %1849 = vmatmul.mubr.f32.gmra.mrb[0].mxu0 %v1675
        %v1850 = vpop.f32.mrb[0].mxu0
        %v1851 = vadd.f32 0.0, %v1850
        %v1852 = vpop.f32.mrb[0].mxu0
        %1853 = vmatprep.mubr.f32.mxu0 0.0
        %1854 = vmatmul.mubr.f32.gmra.mrb[0].mxu0 %v1678
        %v1855 = vpop.f32.mrb[0].mxu0
        %v1856 = vadd.f32 0.0, %v1855
        %v1857 = vpop.f32.mrb[0].mxu0
        %1858 = vmatprep.mubr.f32.mxu0 0.0
        %1859 = vmatmul.mubr.f32.gmra.mrb[0].mxu0 %v1681
        %v1860 = vpop.f32.mrb[0].mxu0
        %v1861 = vadd.f32 0.0, %v1860
        %v1862 = vpop.f32.mrb[0].mxu0
        %1863 = vmatprep.mubr.f32.mxu0 0.0
        %1864 = vmatmul.mubr.f32.gmra.mrb[0].mxu0 %v1684
        %v1865 = vpop.f32.mrb[0].mxu0
        %v1866 = vadd.f32 0.0, %v1865
        %v1867 = vpop.f32.mrb[0].mxu0
        %1868 = vmatprep.mubr.f32.mxu0 0.0
        %1869 = vmatmul.mubr.f32.gmra.mrb[0].mxu0 %v1687
        %v1870 = vpop.f32.mrb[0].mxu0
        %v1871 = vadd.f32 0.0, %v1870
        %v1872 = vpop.f32.mrb[0].mxu0
        %1873 = vmatprep.mubr.f32.mxu0 0.0
        %1874 = vmatmul.mubr.f32.gmra.mrb[0].mxu0 %v1690
        %v1875 = vpop.f32.mrb[0].mxu0
        %v1876 = vadd.f32 0.0, %v1875
        %v1877 = vpop.f32.mrb[0].mxu0
        %1878 = vmatprep.mubr.f32.mxu0 0.0
        %1879 = vmatmul.mubr.f32.gmra.mrb[0].mxu0 %v1693
        %v1880 = vpop.f32.mrb[0].mxu0
        %v1881 = vadd.f32 0.0, %v1880
        %v1882 = vpop.f32.mrb[0].mxu0
        %1883 = vmatprep.mubr.f32.mxu0 0.0
        %1884 = vmatmul.mubr.f32.gmra.mrb[0].mxu0 %v1696
        %v1885 = vpop.f32.mrb[0].mxu0
        %v1886 = vadd.f32 0.0, %v1885
        %v1887 = vpop.f32.mrb[0].mxu0
        %1888 = vmatprep.mubr.f32.mxu0 0.0
        %1889 = vmatmul.mubr.f32.gmra.mrb[0].mxu0 %v1699
        %v1890 = vpop.f32.mrb[0].mxu0
        %v1891 = vadd.f32 0.0, %v1890
        %v1892 = vpop.f32.mrb[0].mxu0
        %1893 = vmatprep.mubr.f32.mxu0 0.0
        %1894 = vmatmul.mubr.f32.gmra.mrb[0].mxu0 %v1702
        %v1895 = vpop.f32.mrb[0].mxu0
        %v1896 = vadd.f32 0.0, %v1895
        %v1897 = vpop.f32.mrb[0].mxu0
        %1898 = vmatprep.mubr.f32.mxu0 0.0
        %1899 = vmatmul.mubr.f32.gmra.mrb[0].mxu0 %v1705
        %v1900 = vpop.f32.mrb[0].mxu0
        %v1901 = vadd.f32 0.0, %v1900
        %v1902 = vpop.f32.mrb[0].mxu0
        %1903 = vmatprep.mubr.f32.mxu0 0.0
        %1904 = vmatmul.mubr.f32.gmra.mrb[0].mxu0 %v1708
        %v1905 = vpop.f32.mrb[0].mxu0
        %v1906 = vadd.f32 0.0, %v1905
        %v1907 = vpop.f32.mrb[0].mxu0
        %1908 = vmatprep.mubr.f32.mxu0 0.0
        %1909 = vmatmul.mubr.f32.gmra.mrb[0].mxu0 %v1711
        %v1910 = vpop.f32.mrb[0].mxu0
        %v1911 = vadd.f32 0.0, %v1910
        %v1912 = vpop.f32.mrb[0].mxu0
        %1913 = vmatprep.mubr.f32.mxu0 0.0
        %1914 = vmatmul.mubr.f32.gmra.mrb[0].mxu0 %v1714
        %v1915 = vpop.f32.mrb[0].mxu0
        %v1916 = vadd.f32 0.0, %v1915
        %v1917 = vpop.f32.mrb[0].mxu0
        %1918 = vmatprep.mubr.f32.mxu0 0.0
        %1919 = vmatmul.mubr.f32.gmra.mrb[0].mxu0 %v1717
        %v1920 = vpop.f32.mrb[0].mxu0
        %v1921 = vadd.f32 0.0, %v1920
        %v1922 = vpop.f32.mrb[0].mxu0
        %1923 = vmatprep.mubr.f32.mxu0 0.0
        %1924 = vmatmul.mubr.f32.gmra.mrb[0].mxu0 %v1720
        %v1925 = vpop.f32.mrb[0].mxu0
        %v1926 = vadd.f32 0.0, %v1925
        %v1927 = vpop.f32.mrb[0].mxu0
        %1928 = vmatprep.mubr.f32.mxu0 0.0
        %1929 = vmatmul.mubr.f32.gmra.mrb[0].mxu0 %v1723
        %v1930 = vpop.f32.mrb[0].mxu0
        %v1931 = vadd.f32 0.0, %v1930
        %v1932 = vpop.f32.mrb[0].mxu0
        %1933 = vmatprep.mubr.f32.mxu0 0.0
        %1934 = vmatmul.mubr.f32.gmra.mrb[0].mxu0 %v1726
        %v1935 = vpop.f32.mrb[0].mxu0
        %v1936 = vadd.f32 0.0, %v1935
        %v1937 = vpop.f32.mrb[0].mxu0
        %1938 = vmatprep.mubr.f32.mxu0 0.0
        %1939 = vmatmul.mubr.f32.gmra.mrb[0].mxu0 %v1729
        %v1940 = vpop.f32.mrb[0].mxu0
        %v1941 = vadd.f32 0.0, %v1940
        %v1942 = vpop.f32.mrb[0].mxu0
        %1943 = vmatprep.mubr.f32.mxu0 0.0
        %1944 = vmatmul.mubr.f32.gmra.mrb[0].mxu0 %v1732
        %v1945 = vpop.f32.mrb[0].mxu0
        %v1946 = vadd.f32 0.0, %v1945
        %v1947 = vpop.f32.mrb[0].mxu0
        %1948 = vmatprep.mubr.f32.mxu0 0.0
        %1949 = vmatmul.mubr.f32.gmra.mrb[0].mxu0 %v1735
        %v1950 = vpop.f32.mrb[0].mxu0
        %v1951 = vadd.f32 0.0, %v1950
        %v1952 = vpop.f32.mrb[0].mxu0
        %1953 = vmatprep.mubr.f32.mxu0 0.0
        %1954 = vmatmul.mubr.f32.gmra.mrb[0].mxu0 %v1738
        %v1955 = vpop.f32.mrb[0].mxu0
        %v1956 = vadd.f32 0.0, %v1955
        %v1957 = vpop.f32.mrb[0].mxu0
        %1958 = vmatprep.mubr.f32.mxu0 0.0
        %1959 = vmatmul.mubr.f32.gmra.mrb[0].mxu0 %v1741
        %v1960 = vpop.f32.mrb[0].mxu0
        %v1961 = vadd.f32 0.0, %v1960
        %v1962 = vpop.f32.mrb[0].mxu0
        %1963 = vmatprep.mubr.f32.mxu0 0.0
        %1964 = vmatmul.mubr.f32.gmra.mrb[0].mxu0 %v1744
        %v1965 = vpop.f32.mrb[0].mxu0
        %v1966 = vadd.f32 0.0, %v1965
        %v1967 = vpop.f32.mrb[0].mxu0
        %1968 = vmatprep.mubr.f32.mxu0 0.0
        %1969 = vmatmul.mubr.f32.gmra.mrb[0].mxu0 %v1747
        %v1970 = vpop.f32.mrb[0].mxu0
        %v1971 = vadd.f32 0.0, %v1970
        %v1972 = vpop.f32.mrb[0].mxu0
        %1973 = vmatprep.mubr.f32.mxu0 0.0
        %1974 = vmatmul.mubr.f32.gmra.mrb[0].mxu0 %v1750
        %v1975 = vpop.f32.mrb[0].mxu0
        %v1976 = vadd.f32 0.0, %v1975
        %v1977 = vpop.f32.mrb[0].mxu0
        %1978 = vmatprep.mubr.f32.mxu0 0.0
        %1979 = vmatmul.mubr.f32.gmra.mrb[0].mxu0 %v1753
        %v1980 = vpop.f32.mrb[0].mxu0
        %v1981 = vadd.f32 0.0, %v1980
        %v1982 = vpop.f32.mrb[0].mxu0
        %1983 = vmatprep.mubr.f32.mxu0 0.0
        %1984 = vmatmul.mubr.f32.gmra.mrb[0].mxu0 %v1756
        %v1985 = vpop.f32.mrb[0].mxu0
        %v1986 = vadd.f32 0.0, %v1985
        %v1987 = vpop.f32.mrb[0].mxu0
        %1988 = vmatprep.mubr.f32.mxu0 0.0
        %1989 = vmatmul.mubr.f32.gmra.mrb[0].mxu0 %v1759
        %v1990 = vpop.f32.mrb[0].mxu0
        %v1991 = vadd.f32 0.0, %v1990
        %v1992 = vpop.f32.mrb[0].mxu0
        %1993 = vmatprep.mubr.f32.mxu0 0.0
        %1994 = vmatmul.mubr.f32.gmra.mrb[0].mxu0 %v1762
        %v1995 = vpop.f32.mrb[0].mxu0
        %v1996 = vadd.f32 0.0, %v1995
        %v1997 = vpop.f32.mrb[0].mxu0
        %1998 = vmatprep.mubr.f32.mxu0 0.0
        %1999 = vmatmul.mubr.f32.gmra.mrb[0].mxu0 %v1765
        %v2000 = vpop.f32.mrb[0].mxu0
        %v2001 = vadd.f32 0.0, %v2000
        %v2002 = vpop.f32.mrb[0].mxu0
        %2003 = vmatprep.mubr.f32.mxu0 0.0
        %2004 = vmatmul.mubr.f32.gmra.mrb[0].mxu0 %v1768
        %v2005 = vpop.f32.mrb[0].mxu0
        %v2006 = vadd.f32 0.0, %v2005
        %v2007 = vpop.f32.mrb[0].mxu0
        %2008 = vmatprep.mubr.f32.mxu0 0.0
        %2009 = vmatmul.mubr.f32.gmra.mrb[0].mxu0 %v1771
        %v2010 = vpop.f32.mrb[0].mxu0
        %v2011 = vadd.f32 0.0, %v2010
        %v2012 = vpop.f32.mrb[0].mxu0
        %2013 = vmatprep.mubr.f32.mxu0 0.0
        %2014 = vmatmul.mubr.f32.gmra.mrb[0].mxu0 %v1774
        %v2015 = vpop.f32.mrb[0].mxu0
        %v2016 = vadd.f32 0.0, %v2015
        %v2017 = vpop.f32.mrb[0].mxu0
        %2018 = vmatprep.mubr.f32.mxu0 0.0
        %2019 = vmatmul.mubr.f32.gmra.mrb[0].mxu0 %v1777
        %v2020 = vpop.f32.mrb[0].mxu0
        %v2021 = vadd.f32 0.0, %v2020
        %v2022 = vpop.f32.mrb[0].mxu0
        %2023 = vdwg.mxu0
        %v2024 = vld [vmem:[%s194] sm:$0xff]
        %v2025 = vld [vmem:[%s194 + $0x8] sm:$0xff]
        %v2026 = vld [vmem:[%s194 + $0x10] sm:$0xff]
        %v2027 = vld [vmem:[%s194 + $0x18] sm:$0xff]
        %v2028 = vld [vmem:[%s194 + $0x20] sm:$0xff]
        %v2029 = vld [vmem:[%s194 + $0x28] sm:$0xff]
        %v2030 = vld [vmem:[%s194 + $0x30] sm:$0xff]
        %v2031 = vld [vmem:[%s194 + $0x38] sm:$0xff]
        %v2032 = vld [vmem:[%s194 + $0x40] sm:$0xff]
        %v2033 = vld [vmem:[%s194 + $0x48] sm:$0xff]
        %v2034 = vld [vmem:[%s194 + $0x50] sm:$0xff]
        %v2035 = vld [vmem:[%s194 + $0x58] sm:$0xff]
        %v2036 = vld [vmem:[%s194 + $0x60] sm:$0xff]
        %v2037 = vld [vmem:[%s194 + $0x68] sm:$0xff]
        %v2038 = vld [vmem:[%s194 + $0x70] sm:$0xff]
        %v2039 = vld [vmem:[%s194 + $0x78] sm:$0xff]
        %v2040 = vld [vmem:[%s194 + $0x80] sm:$0xff]
        %v2041 = vld [vmem:[%s194 + $0x88] sm:$0xff]
        %v2042 = vld [vmem:[%s194 + $0x90] sm:$0xff]
        %v2043 = vld [vmem:[%s194 + $0x98] sm:$0xff]
        %v2044 = vld [vmem:[%s194 + $0xa0] sm:$0xff]
        %v2045 = vld [vmem:[%s194 + $0xa8] sm:$0xff]
        %v2046 = vld [vmem:[%s194 + $0xb0] sm:$0xff]
        %v2047 = vld [vmem:[%s194 + $0xb8] sm:$0xff]
        %v2048 = vld [vmem:[%s194 + $0xc0] sm:$0xff]
        %v2049 = vld [vmem:[%s194 + $0xc8] sm:$0xff]
        %v2050 = vld [vmem:[%s194 + $0xd0] sm:$0xff]
        %v2051 = vld [vmem:[%s194 + $0xd8] sm:$0xff]
        %v2052 = vld [vmem:[%s194 + $0xe0] sm:$0xff]
        %v2053 = vld [vmem:[%s194 + $0xe8] sm:$0xff]
        %v2054 = vld [vmem:[%s194 + $0xf0] sm:$0xff]
        %v2055 = vld [vmem:[%s194 + $0xf8] sm:$0xff]
        %v2056 = vld [vmem:[%s194 + $0x100] sm:$0xff]
        %v2057 = vld [vmem:[%s194 + $0x108] sm:$0xff]
        %v2058 = vld [vmem:[%s194 + $0x110] sm:$0xff]
        %v2059 = vld [vmem:[%s194 + $0x118] sm:$0xff]
        %v2060 = vadd.f32 %v2024, %v1846
        %v2061 = vadd.f32 %v2025, %v1851
        %v2062 = vadd.f32 %v2026, %v1856
        %v2063 = vadd.f32 %v2027, %v1861
        %v2064 = vadd.f32 %v2028, %v1866
        %v2065 = vadd.f32 %v2029, %v1871
        %v2066 = vadd.f32 %v2030, %v1876
        %v2067 = vadd.f32 %v2031, %v1881
        %v2068 = vadd.f32 %v2032, %v1886
        %v2069 = vadd.f32 %v2033, %v1891
        %v2070 = vadd.f32 %v2034, %v1896
        %v2071 = vadd.f32 %v2035, %v1901
        %v2072 = vadd.f32 %v2036, %v1906
        %v2073 = vadd.f32 %v2037, %v1911
        %v2074 = vadd.f32 %v2038, %v1916
        %v2075 = vadd.f32 %v2039, %v1921
        %v2076 = vadd.f32 %v2040, %v1926
        %v2077 = vadd.f32 %v2041, %v1931
        %v2078 = vadd.f32 %v2042, %v1936
        %v2079 = vadd.f32 %v2043, %v1941
        %v2080 = vadd.f32 %v2044, %v1946
        %v2081 = vadd.f32 %v2045, %v1951
        %v2082 = vadd.f32 %v2046, %v1956
        %v2083 = vadd.f32 %v2047, %v1961
        %v2084 = vadd.f32 %v2048, %v1966
        %v2085 = vadd.f32 %v2049, %v1971
        %v2086 = vadd.f32 %v2050, %v1976
        %v2087 = vadd.f32 %v2051, %v1981
        %v2088 = vadd.f32 %v2052, %v1986
        %v2089 = vadd.f32 %v2053, %v1991
        %v2090 = vadd.f32 %v2054, %v1996
        %v2091 = vadd.f32 %v2055, %v2001
        %v2092 = vadd.f32 %v2056, %v2006
        %v2093 = vadd.f32 %v2057, %v2011
        %v2094 = vadd.f32 %v2058, %v2016
        %v2095 = vadd.f32 %v2059, %v2021
        %2096 = vst [vmem:[%s194] sm:$0xff] %v2060
        %2097 = vst [vmem:[%s194 + $0x8] sm:$0xff] %v2061
        %2098 = vst [vmem:[%s194 + $0x10] sm:$0xff] %v2062
        %2099 = vst [vmem:[%s194 + $0x18] sm:$0xff] %v2063
        %2100 = vst [vmem:[%s194 + $0x20] sm:$0xff] %v2064
        %2101 = vst [vmem:[%s194 + $0x28] sm:$0xff] %v2065
        %2102 = vst [vmem:[%s194 + $0x30] sm:$0xff] %v2066
        %2103 = vst [vmem:[%s194 + $0x38] sm:$0xff] %v2067
        %2104 = vst [vmem:[%s194 + $0x40] sm:$0xff] %v2068
        %2105 = vst [vmem:[%s194 + $0x48] sm:$0xff] %v2069
        %2106 = vst [vmem:[%s194 + $0x50] sm:$0xff] %v2070
        %2107 = vst [vmem:[%s194 + $0x58] sm:$0xff] %v2071
        %2108 = vst [vmem:[%s194 + $0x60] sm:$0xff] %v2072
        %2109 = vst [vmem:[%s194 + $0x68] sm:$0xff] %v2073
        %2110 = vst [vmem:[%s194 + $0x70] sm:$0xff] %v2074
        %2111 = vst [vmem:[%s194 + $0x78] sm:$0xff] %v2075
        %2112 = vst [vmem:[%s194 + $0x80] sm:$0xff] %v2076
        %2113 = vst [vmem:[%s194 + $0x88] sm:$0xff] %v2077
        %2114 = vst [vmem:[%s194 + $0x90] sm:$0xff] %v2078
        %2115 = vst [vmem:[%s194 + $0x98] sm:$0xff] %v2079
        %2116 = vst [vmem:[%s194 + $0xa0] sm:$0xff] %v2080
        %2117 = vst [vmem:[%s194 + $0xa8] sm:$0xff] %v2081
        %2118 = vst [vmem:[%s194 + $0xb0] sm:$0xff] %v2082
        %2119 = vst [vmem:[%s194 + $0xb8] sm:$0xff] %v2083
        %2120 = vst [vmem:[%s194 + $0xc0] sm:$0xff] %v2084
        %2121 = vst [vmem:[%s194 + $0xc8] sm:$0xff] %v2085
        %2122 = vst [vmem:[%s194 + $0xd0] sm:$0xff] %v2086
        %2123 = vst [vmem:[%s194 + $0xd8] sm:$0xff] %v2087
        %2124 = vst [vmem:[%s194 + $0xe0] sm:$0xff] %v2088
        %2125 = vst [vmem:[%s194 + $0xe8] sm:$0xff] %v2089
        %2126 = vst [vmem:[%s194 + $0xf0] sm:$0xff] %v2090
        %2127 = vst [vmem:[%s194 + $0xf8] sm:$0xff] %v2091
        %2128 = vst [vmem:[%s194 + $0x100] sm:$0xff] %v2092
        %2129 = vst [vmem:[%s194 + $0x108] sm:$0xff] %v2093
        %2130 = vst [vmem:[%s194 + $0x110] sm:$0xff] %v2094
        %2131 = vst [vmem:[%s194 + $0x118] sm:$0xff] %v2095
        %v2132 = vld [vmem:[%s206 + $0x13] sm:$0xff]
        %v2133 = vld [vmem:[%s206 + $0x1b] sm:$0xff]
        %v2134 = vld [vmem:[%s206 + $0x23] sm:$0xff]
        %v2135 = vld [vmem:[%s206 + $0x2b] sm:$0xff]
        %v2136 = vld [vmem:[%s206 + $0x33] sm:$0xff]
        %v2137 = vld [vmem:[%s206 + $0x3b] sm:$0xff]
        %v2138 = vld [vmem:[%s206 + $0x43] sm:$0xff]
        %v2139 = vld [vmem:[%s206 + $0x4b] sm:$0xff]
        %v2140 = vld [vmem:[%s206 + $0x53] sm:$0xff]
        %v2141 = vld [vmem:[%s206 + $0x5b] sm:$0xff]
        %v2142 = vld [vmem:[%s206 + $0x63] sm:$0xff]
        %v2143 = vld [vmem:[%s206 + $0x6b] sm:$0xff]
        %v2144 = vld [vmem:[%s206 + $0x73] sm:$0xff]
        %v2145 = vld [vmem:[%s206 + $0x7b] sm:$0xff]
        %v2146 = vld [vmem:[%s206 + $0x83] sm:$0xff]
        %v2147 = vld [vmem:[%s206 + $0x8b] sm:$0xff]
        %v2148 = vld [vmem:[%s206 + $0x93] sm:$0xff]
        %v2149 = vld [vmem:[%s206 + $0x9b] sm:$0xff]
        %v2150 = vld [vmem:[%s206 + $0xa3] sm:$0xff]
        %v2151 = vld [vmem:[%s206 + $0xab] sm:$0xff]
        %v2152 = vld [vmem:[%s206 + $0xb3] sm:$0xff]
        %v2153 = vld [vmem:[%s206 + $0xbb] sm:$0xff]
        %v2154 = vld [vmem:[%s206 + $0xc3] sm:$0xff]
        %v2155 = vld [vmem:[%s206 + $0xcb] sm:$0xff]
        %v2156 = vld [vmem:[%s206 + $0xd3] sm:$0xff]
        %v2157 = vld [vmem:[%s206 + $0xdb] sm:$0xff]
        %v2158 = vld [vmem:[%s206 + $0xe3] sm:$0xff]
        %v2159 = vld [vmem:[%s206 + $0xeb] sm:$0xff]
        %v2160 = vld [vmem:[%s206 + $0xf3] sm:$0xff]
        %v2161 = vld [vmem:[%s206 + $0xfb] sm:$0xff]
        %v2162 = vld [vmem:[%s206 + $0x103] sm:$0xff]
        %v2163 = vld [vmem:[%s206 + $0x10b] sm:$0xff]
        %v2164 = vld [vmem:[%s206 + $0x113] sm:$0xff]
        %v2165 = vld [vmem:[%s206 + $0x11b] sm:$0xff]
        %v2166 = vld [vmem:[%s206 + $0x123] sm:$0xff]
        %v2167 = vld [vmem:[%s206 + $0x12b] sm:$0xff]
        %s2168 = scalar_lea.vmem %s1, 32
        %v2169 = vld [vmem:[%s2168] sm:$0xff]
        %v2171 = vsel %vm245, %v2132, 0
        %v2174 = vsel %vm245, %v2133, 0
        %v2177 = vsel %vm245, %v2134, 0
        %v2180 = vsel %vm245, %v2135, 0
        %v2183 = vsel %vm245, %v2136, 0
        %v2186 = vsel %vm245, %v2137, 0
        %v2189 = vsel %vm245, %v2138, 0
        %v2192 = vsel %vm245, %v2139, 0
        %v2195 = vsel %vm245, %v2140, 0
        %v2198 = vsel %vm245, %v2141, 0
        %v2201 = vsel %vm245, %v2142, 0
        %v2204 = vsel %vm245, %v2143, 0
        %v2207 = vsel %vm245, %v2144, 0
        %v2210 = vsel %vm245, %v2145, 0
        %v2213 = vsel %vm245, %v2146, 0
        %v2216 = vsel %vm245, %v2147, 0
        %v2219 = vsel %vm245, %v2148, 0
        %v2222 = vsel %vm245, %v2149, 0
        %v2225 = vsel %vm245, %v2150, 0
        %v2228 = vsel %vm245, %v2151, 0
        %v2231 = vsel %vm245, %v2152, 0
        %v2234 = vsel %vm245, %v2153, 0
        %v2237 = vsel %vm245, %v2154, 0
        %v2240 = vsel %vm245, %v2155, 0
        %v2243 = vsel %vm245, %v2156, 0
        %v2246 = vsel %vm245, %v2157, 0
        %v2249 = vsel %vm245, %v2158, 0
        %v2252 = vsel %vm245, %v2159, 0
        %v2255 = vsel %vm245, %v2160, 0
        %v2258 = vsel %vm245, %v2161, 0
        %v2261 = vsel %vm245, %v2162, 0
        %v2264 = vsel %vm245, %v2163, 0
        %v2267 = vsel %vm245, %v2164, 0
        %v2270 = vsel %vm245, %v2165, 0
        %v2273 = vsel %vm245, %v2166, 0
        %v2276 = vsel %vm245, %v2167, 0
        %2278 = vmatprep.subr.mxu0 0.0
        %2279 = vmatpush1.msra.mxu0 %v2169
        %2280 = vmatprep.subr.mxu0 0.0
        %2281 = vmatpush1.msra.mxu0 0.0
        %2282 = vmatprep.subr.mxu0 0.0
        %2283 = vmatpush1.msra.mxu0 0.0
        %2284 = vmatprep.subr.mxu0 0.0
        %2285 = vmatpush1.msra.mxu0 0.0
        %2286 = vmatprep.subr.mxu0 0.0
        %2287 = vmatpush1.msra.mxu0 0.0
        %2288 = vmatprep.subr.mxu0 0.0
        %2289 = vmatpush1.msra.mxu0 0.0
        %2290 = vmatprep.subr.mxu0 0.0
        %2291 = vmatpush1.msra.mxu0 0.0
        %2292 = vmatprep.subr.mxu0 0.0
        %2293 = vmatpush1.msra.mxu0 0.0
        %2294 = vmatprep.subr.mxu0 0.0
        %2295 = vmatpush1.msra.mxu0 0.0
        %2296 = vmatprep.subr.mxu0 0.0
        %2297 = vmatpush1.msra.mxu0 0.0
        %2298 = vmatprep.subr.mxu0 0.0
        %2299 = vmatpush1.msra.mxu0 0.0
        %2300 = vmatprep.subr.mxu0 0.0
        %2301 = vmatpush1.msra.mxu0 0.0
        %2302 = vmatprep.subr.mxu0 0.0
        %2303 = vmatpush1.msra.mxu0 0.0
        %2304 = vmatprep.subr.mxu0 0.0
        %2305 = vmatpush1.msra.mxu0 0.0
        %2306 = vmatprep.subr.mxu0 0.0
        %2307 = vmatpush1.msra.mxu0 0.0
        %2308 = vmatprep.subr.mxu0 0.0
        %2309 = vmatpush1.msra.mxu0 0.0
        %2310 = vmatprep.subr.mxu0 0.0
        %2311 = vmatpush1.msra.mxu0 0.0
        %2312 = vmatprep.subr.mxu0 0.0
        %2313 = vmatpush1.msra.mxu0 0.0
        %2314 = vmatprep.subr.mxu0 0.0
        %2315 = vmatpush1.msra.mxu0 0.0
        %2316 = vmatprep.subr.mxu0 0.0
        %2317 = vmatpush1.msra.mxu0 0.0
        %2318 = vmatprep.subr.mxu0 0.0
        %2319 = vmatpush1.msra.mxu0 0.0
        %2320 = vmatprep.subr.mxu0 0.0
        %2321 = vmatpush1.msra.mxu0 0.0
        %2322 = vmatprep.subr.mxu0 0.0
        %2323 = vmatpush1.msra.mxu0 0.0
        %2324 = vmatprep.subr.mxu0 0.0
        %2325 = vmatpush1.msra.mxu0 0.0
        %2326 = vmatprep.subr.mxu0 0.0
        %2327 = vmatpush1.msra.mxu0 0.0
        %2328 = vmatprep.subr.mxu0 0.0
        %2329 = vmatpush1.msra.mxu0 0.0
        %2330 = vmatprep.subr.mxu0 0.0
        %2331 = vmatpush1.msra.mxu0 0.0
        %2332 = vmatprep.subr.mxu0 0.0
        %2333 = vmatpush1.msra.mxu0 0.0
        %2334 = vmatprep.subr.mxu0 0.0
        %2335 = vmatpush1.msra.mxu0 0.0
        %2336 = vmatprep.subr.mxu0 0.0
        %2337 = vmatpush1.msra.mxu0 0.0
        %2338 = vmatprep.subr.mxu0 0.0
        %2339 = vmatpush1.msra.mxu0 0.0
        %2340 = vmatprep.subr.mxu0 0.0
        %2341 = vmatpush1.msra.mxu0 0.0
        %2342 = vmatprep.mubr.f32.mxu0 0.0
        %2343 = vmatmul.mubr.f32.gmra.mrb[0].mxu0 %v2171
        %v2344 = vpop.f32.mrb[0].mxu0
        %v2345 = vadd.f32 0.0, %v2344
        %v2346 = vpop.f32.mrb[0].mxu0
        %2347 = vmatprep.mubr.f32.mxu0 0.0
        %2348 = vmatmul.mubr.f32.gmra.mrb[0].mxu0 %v2174
        %v2349 = vpop.f32.mrb[0].mxu0
        %v2350 = vadd.f32 0.0, %v2349
        %v2351 = vpop.f32.mrb[0].mxu0
        %2352 = vmatprep.mubr.f32.mxu0 0.0
        %2353 = vmatmul.mubr.f32.gmra.mrb[0].mxu0 %v2177
        %v2354 = vpop.f32.mrb[0].mxu0
        %v2355 = vadd.f32 0.0, %v2354
        %v2356 = vpop.f32.mrb[0].mxu0
        %2357 = vmatprep.mubr.f32.mxu0 0.0
        %2358 = vmatmul.mubr.f32.gmra.mrb[0].mxu0 %v2180
        %v2359 = vpop.f32.mrb[0].mxu0
        %v2360 = vadd.f32 0.0, %v2359
        %v2361 = vpop.f32.mrb[0].mxu0
        %2362 = vmatprep.mubr.f32.mxu0 0.0
        %2363 = vmatmul.mubr.f32.gmra.mrb[0].mxu0 %v2183
        %v2364 = vpop.f32.mrb[0].mxu0
        %v2365 = vadd.f32 0.0, %v2364
        %v2366 = vpop.f32.mrb[0].mxu0
        %2367 = vmatprep.mubr.f32.mxu0 0.0
        %2368 = vmatmul.mubr.f32.gmra.mrb[0].mxu0 %v2186
        %v2369 = vpop.f32.mrb[0].mxu0
        %v2370 = vadd.f32 0.0, %v2369
        %v2371 = vpop.f32.mrb[0].mxu0
        %2372 = vmatprep.mubr.f32.mxu0 0.0
        %2373 = vmatmul.mubr.f32.gmra.mrb[0].mxu0 %v2189
        %v2374 = vpop.f32.mrb[0].mxu0
        %v2375 = vadd.f32 0.0, %v2374
        %v2376 = vpop.f32.mrb[0].mxu0
        %2377 = vmatprep.mubr.f32.mxu0 0.0
        %2378 = vmatmul.mubr.f32.gmra.mrb[0].mxu0 %v2192
        %v2379 = vpop.f32.mrb[0].mxu0
        %v2380 = vadd.f32 0.0, %v2379
        %v2381 = vpop.f32.mrb[0].mxu0
        %2382 = vmatprep.mubr.f32.mxu0 0.0
        %2383 = vmatmul.mubr.f32.gmra.mrb[0].mxu0 %v2195
        %v2384 = vpop.f32.mrb[0].mxu0
        %v2385 = vadd.f32 0.0, %v2384
        %v2386 = vpop.f32.mrb[0].mxu0
        %2387 = vmatprep.mubr.f32.mxu0 0.0
        %2388 = vmatmul.mubr.f32.gmra.mrb[0].mxu0 %v2198
        %v2389 = vpop.f32.mrb[0].mxu0
        %v2390 = vadd.f32 0.0, %v2389
        %v2391 = vpop.f32.mrb[0].mxu0
        %2392 = vmatprep.mubr.f32.mxu0 0.0
        %2393 = vmatmul.mubr.f32.gmra.mrb[0].mxu0 %v2201
        %v2394 = vpop.f32.mrb[0].mxu0
        %v2395 = vadd.f32 0.0, %v2394
        %v2396 = vpop.f32.mrb[0].mxu0
        %2397 = vmatprep.mubr.f32.mxu0 0.0
        %2398 = vmatmul.mubr.f32.gmra.mrb[0].mxu0 %v2204
        %v2399 = vpop.f32.mrb[0].mxu0
        %v2400 = vadd.f32 0.0, %v2399
        %v2401 = vpop.f32.mrb[0].mxu0
        %2402 = vmatprep.mubr.f32.mxu0 0.0
        %2403 = vmatmul.mubr.f32.gmra.mrb[0].mxu0 %v2207
        %v2404 = vpop.f32.mrb[0].mxu0
        %v2405 = vadd.f32 0.0, %v2404
        %v2406 = vpop.f32.mrb[0].mxu0
        %2407 = vmatprep.mubr.f32.mxu0 0.0
        %2408 = vmatmul.mubr.f32.gmra.mrb[0].mxu0 %v2210
        %v2409 = vpop.f32.mrb[0].mxu0
        %v2410 = vadd.f32 0.0, %v2409
        %v2411 = vpop.f32.mrb[0].mxu0
        %2412 = vmatprep.mubr.f32.mxu0 0.0
        %2413 = vmatmul.mubr.f32.gmra.mrb[0].mxu0 %v2213
        %v2414 = vpop.f32.mrb[0].mxu0
        %v2415 = vadd.f32 0.0, %v2414
        %v2416 = vpop.f32.mrb[0].mxu0
        %2417 = vmatprep.mubr.f32.mxu0 0.0
        %2418 = vmatmul.mubr.f32.gmra.mrb[0].mxu0 %v2216
        %v2419 = vpop.f32.mrb[0].mxu0
        %v2420 = vadd.f32 0.0, %v2419
        %v2421 = vpop.f32.mrb[0].mxu0
        %2422 = vmatprep.mubr.f32.mxu0 0.0
        %2423 = vmatmul.mubr.f32.gmra.mrb[0].mxu0 %v2219
        %v2424 = vpop.f32.mrb[0].mxu0
        %v2425 = vadd.f32 0.0, %v2424
        %v2426 = vpop.f32.mrb[0].mxu0
        %2427 = vmatprep.mubr.f32.mxu0 0.0
        %2428 = vmatmul.mubr.f32.gmra.mrb[0].mxu0 %v2222
        %v2429 = vpop.f32.mrb[0].mxu0
        %v2430 = vadd.f32 0.0, %v2429
        %v2431 = vpop.f32.mrb[0].mxu0
        %2432 = vmatprep.mubr.f32.mxu0 0.0
        %2433 = vmatmul.mubr.f32.gmra.mrb[0].mxu0 %v2225
        %v2434 = vpop.f32.mrb[0].mxu0
        %v2435 = vadd.f32 0.0, %v2434
        %v2436 = vpop.f32.mrb[0].mxu0
        %2437 = vmatprep.mubr.f32.mxu0 0.0
        %2438 = vmatmul.mubr.f32.gmra.mrb[0].mxu0 %v2228
        %v2439 = vpop.f32.mrb[0].mxu0
        %v2440 = vadd.f32 0.0, %v2439
        %v2441 = vpop.f32.mrb[0].mxu0
        %2442 = vmatprep.mubr.f32.mxu0 0.0
        %2443 = vmatmul.mubr.f32.gmra.mrb[0].mxu0 %v2231
        %v2444 = vpop.f32.mrb[0].mxu0
        %v2445 = vadd.f32 0.0, %v2444
        %v2446 = vpop.f32.mrb[0].mxu0
        %2447 = vmatprep.mubr.f32.mxu0 0.0
        %2448 = vmatmul.mubr.f32.gmra.mrb[0].mxu0 %v2234
        %v2449 = vpop.f32.mrb[0].mxu0
        %v2450 = vadd.f32 0.0, %v2449
        %v2451 = vpop.f32.mrb[0].mxu0
        %2452 = vmatprep.mubr.f32.mxu0 0.0
        %2453 = vmatmul.mubr.f32.gmra.mrb[0].mxu0 %v2237
        %v2454 = vpop.f32.mrb[0].mxu0
        %v2455 = vadd.f32 0.0, %v2454
        %v2456 = vpop.f32.mrb[0].mxu0
        %2457 = vmatprep.mubr.f32.mxu0 0.0
        %2458 = vmatmul.mubr.f32.gmra.mrb[0].mxu0 %v2240
        %v2459 = vpop.f32.mrb[0].mxu0
        %v2460 = vadd.f32 0.0, %v2459
        %v2461 = vpop.f32.mrb[0].mxu0
        %2462 = vmatprep.mubr.f32.mxu0 0.0
        %2463 = vmatmul.mubr.f32.gmra.mrb[0].mxu0 %v2243
        %v2464 = vpop.f32.mrb[0].mxu0
        %v2465 = vadd.f32 0.0, %v2464
        %v2466 = vpop.f32.mrb[0].mxu0
        %2467 = vmatprep.mubr.f32.mxu0 0.0
        %2468 = vmatmul.mubr.f32.gmra.mrb[0].mxu0 %v2246
        %v2469 = vpop.f32.mrb[0].mxu0
        %v2470 = vadd.f32 0.0, %v2469
        %v2471 = vpop.f32.mrb[0].mxu0
        %2472 = vmatprep.mubr.f32.mxu0 0.0
        %2473 = vmatmul.mubr.f32.gmra.mrb[0].mxu0 %v2249
        %v2474 = vpop.f32.mrb[0].mxu0
        %v2475 = vadd.f32 0.0, %v2474
        %v2476 = vpop.f32.mrb[0].mxu0
        %2477 = vmatprep.mubr.f32.mxu0 0.0
        %2478 = vmatmul.mubr.f32.gmra.mrb[0].mxu0 %v2252
        %v2479 = vpop.f32.mrb[0].mxu0
        %v2480 = vadd.f32 0.0, %v2479
        %v2481 = vpop.f32.mrb[0].mxu0
        %2482 = vmatprep.mubr.f32.mxu0 0.0
        %2483 = vmatmul.mubr.f32.gmra.mrb[0].mxu0 %v2255
        %v2484 = vpop.f32.mrb[0].mxu0
        %v2485 = vadd.f32 0.0, %v2484
        %v2486 = vpop.f32.mrb[0].mxu0
        %2487 = vmatprep.mubr.f32.mxu0 0.0
        %2488 = vmatmul.mubr.f32.gmra.mrb[0].mxu0 %v2258
        %v2489 = vpop.f32.mrb[0].mxu0
        %v2490 = vadd.f32 0.0, %v2489
        %v2491 = vpop.f32.mrb[0].mxu0
        %2492 = vmatprep.mubr.f32.mxu0 0.0
        %2493 = vmatmul.mubr.f32.gmra.mrb[0].mxu0 %v2261
        %v2494 = vpop.f32.mrb[0].mxu0
        %v2495 = vadd.f32 0.0, %v2494
        %v2496 = vpop.f32.mrb[0].mxu0
        %2497 = vmatprep.mubr.f32.mxu0 0.0
        %2498 = vmatmul.mubr.f32.gmra.mrb[0].mxu0 %v2264
        %v2499 = vpop.f32.mrb[0].mxu0
        %v2500 = vadd.f32 0.0, %v2499
        %v2501 = vpop.f32.mrb[0].mxu0
        %2502 = vmatprep.mubr.f32.mxu0 0.0
        %2503 = vmatmul.mubr.f32.gmra.mrb[0].mxu0 %v2267
        %v2504 = vpop.f32.mrb[0].mxu0
        %v2505 = vadd.f32 0.0, %v2504
        %v2506 = vpop.f32.mrb[0].mxu0
        %2507 = vmatprep.mubr.f32.mxu0 0.0
        %2508 = vmatmul.mubr.f32.gmra.mrb[0].mxu0 %v2270
        %v2509 = vpop.f32.mrb[0].mxu0
        %v2510 = vadd.f32 0.0, %v2509
        %v2511 = vpop.f32.mrb[0].mxu0
        %2512 = vmatprep.mubr.f32.mxu0 0.0
        %2513 = vmatmul.mubr.f32.gmra.mrb[0].mxu0 %v2273
        %v2514 = vpop.f32.mrb[0].mxu0
        %v2515 = vadd.f32 0.0, %v2514
        %v2516 = vpop.f32.mrb[0].mxu0
        %2517 = vmatprep.mubr.f32.mxu0 0.0
        %2518 = vmatmul.mubr.f32.gmra.mrb[0].mxu0 %v2276
        %v2519 = vpop.f32.mrb[0].mxu0
        %v2520 = vadd.f32 0.0, %v2519
        %v2521 = vpop.f32.mrb[0].mxu0
        %2522 = vdwg.mxu0
        %v2523 = vld [vmem:[%s194] sm:$0xff]
        %v2524 = vld [vmem:[%s194 + $0x8] sm:$0xff]
        %v2525 = vld [vmem:[%s194 + $0x10] sm:$0xff]
        %v2526 = vld [vmem:[%s194 + $0x18] sm:$0xff]
        %v2527 = vld [vmem:[%s194 + $0x20] sm:$0xff]
        %v2528 = vld [vmem:[%s194 + $0x28] sm:$0xff]
        %v2529 = vld [vmem:[%s194 + $0x30] sm:$0xff]
        %v2530 = vld [vmem:[%s194 + $0x38] sm:$0xff]
        %v2531 = vld [vmem:[%s194 + $0x40] sm:$0xff]
        %v2532 = vld [vmem:[%s194 + $0x48] sm:$0xff]
        %v2533 = vld [vmem:[%s194 + $0x50] sm:$0xff]
        %v2534 = vld [vmem:[%s194 + $0x58] sm:$0xff]
        %v2535 = vld [vmem:[%s194 + $0x60] sm:$0xff]
        %v2536 = vld [vmem:[%s194 + $0x68] sm:$0xff]
        %v2537 = vld [vmem:[%s194 + $0x70] sm:$0xff]
        %v2538 = vld [vmem:[%s194 + $0x78] sm:$0xff]
        %v2539 = vld [vmem:[%s194 + $0x80] sm:$0xff]
        %v2540 = vld [vmem:[%s194 + $0x88] sm:$0xff]
        %v2541 = vld [vmem:[%s194 + $0x90] sm:$0xff]
        %v2542 = vld [vmem:[%s194 + $0x98] sm:$0xff]
        %v2543 = vld [vmem:[%s194 + $0xa0] sm:$0xff]
        %v2544 = vld [vmem:[%s194 + $0xa8] sm:$0xff]
        %v2545 = vld [vmem:[%s194 + $0xb0] sm:$0xff]
        %v2546 = vld [vmem:[%s194 + $0xb8] sm:$0xff]
        %v2547 = vld [vmem:[%s194 + $0xc0] sm:$0xff]
        %v2548 = vld [vmem:[%s194 + $0xc8] sm:$0xff]
        %v2549 = vld [vmem:[%s194 + $0xd0] sm:$0xff]
        %v2550 = vld [vmem:[%s194 + $0xd8] sm:$0xff]
        %v2551 = vld [vmem:[%s194 + $0xe0] sm:$0xff]
        %v2552 = vld [vmem:[%s194 + $0xe8] sm:$0xff]
        %v2553 = vld [vmem:[%s194 + $0xf0] sm:$0xff]
        %v2554 = vld [vmem:[%s194 + $0xf8] sm:$0xff]
        %v2555 = vld [vmem:[%s194 + $0x100] sm:$0xff]
        %v2556 = vld [vmem:[%s194 + $0x108] sm:$0xff]
        %v2557 = vld [vmem:[%s194 + $0x110] sm:$0xff]
        %v2558 = vld [vmem:[%s194 + $0x118] sm:$0xff]
        %v2559 = vadd.f32 %v2523, %v2345
        %v2560 = vadd.f32 %v2524, %v2350
        %v2561 = vadd.f32 %v2525, %v2355
        %v2562 = vadd.f32 %v2526, %v2360
        %v2563 = vadd.f32 %v2527, %v2365
        %v2564 = vadd.f32 %v2528, %v2370
        %v2565 = vadd.f32 %v2529, %v2375
        %v2566 = vadd.f32 %v2530, %v2380
        %v2567 = vadd.f32 %v2531, %v2385
        %v2568 = vadd.f32 %v2532, %v2390
        %v2569 = vadd.f32 %v2533, %v2395
        %v2570 = vadd.f32 %v2534, %v2400
        %v2571 = vadd.f32 %v2535, %v2405
        %v2572 = vadd.f32 %v2536, %v2410
        %v2573 = vadd.f32 %v2537, %v2415
        %v2574 = vadd.f32 %v2538, %v2420
        %v2575 = vadd.f32 %v2539, %v2425
        %v2576 = vadd.f32 %v2540, %v2430
        %v2577 = vadd.f32 %v2541, %v2435
        %v2578 = vadd.f32 %v2542, %v2440
        %v2579 = vadd.f32 %v2543, %v2445
        %v2580 = vadd.f32 %v2544, %v2450
        %v2581 = vadd.f32 %v2545, %v2455
        %v2582 = vadd.f32 %v2546, %v2460
        %v2583 = vadd.f32 %v2547, %v2465
        %v2584 = vadd.f32 %v2548, %v2470
        %v2585 = vadd.f32 %v2549, %v2475
        %v2586 = vadd.f32 %v2550, %v2480
        %v2587 = vadd.f32 %v2551, %v2485
        %v2588 = vadd.f32 %v2552, %v2490
        %v2589 = vadd.f32 %v2553, %v2495
        %v2590 = vadd.f32 %v2554, %v2500
        %v2591 = vadd.f32 %v2555, %v2505
        %v2592 = vadd.f32 %v2556, %v2510
        %v2593 = vadd.f32 %v2557, %v2515
        %v2594 = vadd.f32 %v2558, %v2520
        %2595 = vst [vmem:[%s194] sm:$0xff] %v2559
        %2596 = vst [vmem:[%s194 + $0x8] sm:$0xff] %v2560
        %2597 = vst [vmem:[%s194 + $0x10] sm:$0xff] %v2561
        %2598 = vst [vmem:[%s194 + $0x18] sm:$0xff] %v2562
        %2599 = vst [vmem:[%s194 + $0x20] sm:$0xff] %v2563
        %2600 = vst [vmem:[%s194 + $0x28] sm:$0xff] %v2564
        %2601 = vst [vmem:[%s194 + $0x30] sm:$0xff] %v2565
        %2602 = vst [vmem:[%s194 + $0x38] sm:$0xff] %v2566
        %2603 = vst [vmem:[%s194 + $0x40] sm:$0xff] %v2567
        %2604 = vst [vmem:[%s194 + $0x48] sm:$0xff] %v2568
        %2605 = vst [vmem:[%s194 + $0x50] sm:$0xff] %v2569
        %2606 = vst [vmem:[%s194 + $0x58] sm:$0xff] %v2570
        %2607 = vst [vmem:[%s194 + $0x60] sm:$0xff] %v2571
        %2608 = vst [vmem:[%s194 + $0x68] sm:$0xff] %v2572
        %2609 = vst [vmem:[%s194 + $0x70] sm:$0xff] %v2573
        %2610 = vst [vmem:[%s194 + $0x78] sm:$0xff] %v2574
        %2611 = vst [vmem:[%s194 + $0x80] sm:$0xff] %v2575
        %2612 = vst [vmem:[%s194 + $0x88] sm:$0xff] %v2576
        %2613 = vst [vmem:[%s194 + $0x90] sm:$0xff] %v2577
        %2614 = vst [vmem:[%s194 + $0x98] sm:$0xff] %v2578
        %2615 = vst [vmem:[%s194 + $0xa0] sm:$0xff] %v2579
        %2616 = vst [vmem:[%s194 + $0xa8] sm:$0xff] %v2580
        %2617 = vst [vmem:[%s194 + $0xb0] sm:$0xff] %v2581
        %2618 = vst [vmem:[%s194 + $0xb8] sm:$0xff] %v2582
        %2619 = vst [vmem:[%s194 + $0xc0] sm:$0xff] %v2583
        %2620 = vst [vmem:[%s194 + $0xc8] sm:$0xff] %v2584
        %2621 = vst [vmem:[%s194 + $0xd0] sm:$0xff] %v2585
        %2622 = vst [vmem:[%s194 + $0xd8] sm:$0xff] %v2586
        %2623 = vst [vmem:[%s194 + $0xe0] sm:$0xff] %v2587
        %2624 = vst [vmem:[%s194 + $0xe8] sm:$0xff] %v2588
        %2625 = vst [vmem:[%s194 + $0xf0] sm:$0xff] %v2589
        %2626 = vst [vmem:[%s194 + $0xf8] sm:$0xff] %v2590
        %2627 = vst [vmem:[%s194 + $0x100] sm:$0xff] %v2591
        %2628 = vst [vmem:[%s194 + $0x108] sm:$0xff] %v2592
        %2629 = vst [vmem:[%s194 + $0x110] sm:$0xff] %v2593
        %2630 = vst [vmem:[%s194 + $0x118] sm:$0xff] %v2594
        %v2631 = vld [vmem:[%s206 + $0x14] sm:$0xff]
        %v2632 = vld [vmem:[%s206 + $0x1c] sm:$0xff]
        %v2633 = vld [vmem:[%s206 + $0x24] sm:$0xff]
        %v2634 = vld [vmem:[%s206 + $0x2c] sm:$0xff]
        %v2635 = vld [vmem:[%s206 + $0x34] sm:$0xff]
        %v2636 = vld [vmem:[%s206 + $0x3c] sm:$0xff]
        %v2637 = vld [vmem:[%s206 + $0x44] sm:$0xff]
        %v2638 = vld [vmem:[%s206 + $0x4c] sm:$0xff]
        %v2639 = vld [vmem:[%s206 + $0x54] sm:$0xff]
        %v2640 = vld [vmem:[%s206 + $0x5c] sm:$0xff]
        %v2641 = vld [vmem:[%s206 + $0x64] sm:$0xff]
        %v2642 = vld [vmem:[%s206 + $0x6c] sm:$0xff]
        %v2643 = vld [vmem:[%s206 + $0x74] sm:$0xff]
        %v2644 = vld [vmem:[%s206 + $0x7c] sm:$0xff]
        %v2645 = vld [vmem:[%s206 + $0x84] sm:$0xff]
        %v2646 = vld [vmem:[%s206 + $0x8c] sm:$0xff]
        %v2647 = vld [vmem:[%s206 + $0x94] sm:$0xff]
        %v2648 = vld [vmem:[%s206 + $0x9c] sm:$0xff]
        %v2649 = vld [vmem:[%s206 + $0xa4] sm:$0xff]
        %v2650 = vld [vmem:[%s206 + $0xac] sm:$0xff]
        %v2651 = vld [vmem:[%s206 + $0xb4] sm:$0xff]
        %v2652 = vld [vmem:[%s206 + $0xbc] sm:$0xff]
        %v2653 = vld [vmem:[%s206 + $0xc4] sm:$0xff]
        %v2654 = vld [vmem:[%s206 + $0xcc] sm:$0xff]
        %v2655 = vld [vmem:[%s206 + $0xd4] sm:$0xff]
        %v2656 = vld [vmem:[%s206 + $0xdc] sm:$0xff]
        %v2657 = vld [vmem:[%s206 + $0xe4] sm:$0xff]
        %v2658 = vld [vmem:[%s206 + $0xec] sm:$0xff]
        %v2659 = vld [vmem:[%s206 + $0xf4] sm:$0xff]
        %v2660 = vld [vmem:[%s206 + $0xfc] sm:$0xff]
        %v2661 = vld [vmem:[%s206 + $0x104] sm:$0xff]
        %v2662 = vld [vmem:[%s206 + $0x10c] sm:$0xff]
        %v2663 = vld [vmem:[%s206 + $0x114] sm:$0xff]
        %v2664 = vld [vmem:[%s206 + $0x11c] sm:$0xff]
        %v2665 = vld [vmem:[%s206 + $0x124] sm:$0xff]
        %v2666 = vld [vmem:[%s206 + $0x12c] sm:$0xff]
        %s2667 = scalar_lea.vmem %s1, 40
        %v2668 = vld [vmem:[%s2667] sm:$0xff]
        %v2670 = vsel %vm245, %v2631, 0
        %v2673 = vsel %vm245, %v2632, 0
        %v2676 = vsel %vm245, %v2633, 0
        %v2679 = vsel %vm245, %v2634, 0
        %v2682 = vsel %vm245, %v2635, 0
        %v2685 = vsel %vm245, %v2636, 0
        %v2688 = vsel %vm245, %v2637, 0
        %v2691 = vsel %vm245, %v2638, 0
        %v2694 = vsel %vm245, %v2639, 0
        %v2697 = vsel %vm245, %v2640, 0
        %v2700 = vsel %vm245, %v2641, 0
        %v2703 = vsel %vm245, %v2642, 0
        %v2706 = vsel %vm245, %v2643, 0
        %v2709 = vsel %vm245, %v2644, 0
        %v2712 = vsel %vm245, %v2645, 0
        %v2715 = vsel %vm245, %v2646, 0
        %v2718 = vsel %vm245, %v2647, 0
        %v2721 = vsel %vm245, %v2648, 0
        %v2724 = vsel %vm245, %v2649, 0
        %v2727 = vsel %vm245, %v2650, 0
        %v2730 = vsel %vm245, %v2651, 0
        %v2733 = vsel %vm245, %v2652, 0
        %v2736 = vsel %vm245, %v2653, 0
        %v2739 = vsel %vm245, %v2654, 0
        %v2742 = vsel %vm245, %v2655, 0
        %v2745 = vsel %vm245, %v2656, 0
        %v2748 = vsel %vm245, %v2657, 0
        %v2751 = vsel %vm245, %v2658, 0
        %v2754 = vsel %vm245, %v2659, 0
        %v2757 = vsel %vm245, %v2660, 0
        %v2760 = vsel %vm245, %v2661, 0
        %v2763 = vsel %vm245, %v2662, 0
        %v2766 = vsel %vm245, %v2663, 0
        %v2769 = vsel %vm245, %v2664, 0
        %v2772 = vsel %vm245, %v2665, 0
        %v2775 = vsel %vm245, %v2666, 0
        %2777 = vmatprep.subr.mxu0 0.0
        %2778 = vmatpush1.msra.mxu0 %v2668
        %2779 = vmatprep.subr.mxu0 0.0
        %2780 = vmatpush1.msra.mxu0 0.0
        %2781 = vmatprep.subr.mxu0 0.0
        %2782 = vmatpush1.msra.mxu0 0.0
        %2783 = vmatprep.subr.mxu0 0.0
        %2784 = vmatpush1.msra.mxu0 0.0
        %2785 = vmatprep.subr.mxu0 0.0
        %2786 = vmatpush1.msra.mxu0 0.0
        %2787 = vmatprep.subr.mxu0 0.0
        %2788 = vmatpush1.msra.mxu0 0.0
        %2789 = vmatprep.subr.mxu0 0.0
        %2790 = vmatpush1.msra.mxu0 0.0
        %2791 = vmatprep.subr.mxu0 0.0
        %2792 = vmatpush1.msra.mxu0 0.0
        %2793 = vmatprep.subr.mxu0 0.0
        %2794 = vmatpush1.msra.mxu0 0.0
        %2795 = vmatprep.subr.mxu0 0.0
        %2796 = vmatpush1.msra.mxu0 0.0
        %2797 = vmatprep.subr.mxu0 0.0
        %2798 = vmatpush1.msra.mxu0 0.0
        %2799 = vmatprep.subr.mxu0 0.0
        %2800 = vmatpush1.msra.mxu0 0.0
        %2801 = vmatprep.subr.mxu0 0.0
        %2802 = vmatpush1.msra.mxu0 0.0
        %2803 = vmatprep.subr.mxu0 0.0
        %2804 = vmatpush1.msra.mxu0 0.0
        %2805 = vmatprep.subr.mxu0 0.0
        %2806 = vmatpush1.msra.mxu0 0.0
        %2807 = vmatprep.subr.mxu0 0.0
        %2808 = vmatpush1.msra.mxu0 0.0
        %2809 = vmatprep.subr.mxu0 0.0
        %2810 = vmatpush1.msra.mxu0 0.0
        %2811 = vmatprep.subr.mxu0 0.0
        %2812 = vmatpush1.msra.mxu0 0.0
        %2813 = vmatprep.subr.mxu0 0.0
        %2814 = vmatpush1.msra.mxu0 0.0
        %2815 = vmatprep.subr.mxu0 0.0
        %2816 = vmatpush1.msra.mxu0 0.0
        %2817 = vmatprep.subr.mxu0 0.0
        %2818 = vmatpush1.msra.mxu0 0.0
        %2819 = vmatprep.subr.mxu0 0.0
        %2820 = vmatpush1.msra.mxu0 0.0
        %2821 = vmatprep.subr.mxu0 0.0
        %2822 = vmatpush1.msra.mxu0 0.0
        %2823 = vmatprep.subr.mxu0 0.0
        %2824 = vmatpush1.msra.mxu0 0.0
        %2825 = vmatprep.subr.mxu0 0.0
        %2826 = vmatpush1.msra.mxu0 0.0
        %2827 = vmatprep.subr.mxu0 0.0
        %2828 = vmatpush1.msra.mxu0 0.0
        %2829 = vmatprep.subr.mxu0 0.0
        %2830 = vmatpush1.msra.mxu0 0.0
        %2831 = vmatprep.subr.mxu0 0.0
        %2832 = vmatpush1.msra.mxu0 0.0
        %2833 = vmatprep.subr.mxu0 0.0
        %2834 = vmatpush1.msra.mxu0 0.0
        %2835 = vmatprep.subr.mxu0 0.0
        %2836 = vmatpush1.msra.mxu0 0.0
        %2837 = vmatprep.subr.mxu0 0.0
        %2838 = vmatpush1.msra.mxu0 0.0
        %2839 = vmatprep.subr.mxu0 0.0
        %2840 = vmatpush1.msra.mxu0 0.0
        %2841 = vmatprep.mubr.f32.mxu0 0.0
        %2842 = vmatmul.mubr.f32.gmra.mrb[0].mxu0 %v2670
        %v2843 = vpop.f32.mrb[0].mxu0
        %v2844 = vadd.f32 0.0, %v2843
        %v2845 = vpop.f32.mrb[0].mxu0
        %2846 = vmatprep.mubr.f32.mxu0 0.0
        %2847 = vmatmul.mubr.f32.gmra.mrb[0].mxu0 %v2673
        %v2848 = vpop.f32.mrb[0].mxu0
        %v2849 = vadd.f32 0.0, %v2848
        %v2850 = vpop.f32.mrb[0].mxu0
        %2851 = vmatprep.mubr.f32.mxu0 0.0
        %2852 = vmatmul.mubr.f32.gmra.mrb[0].mxu0 %v2676
        %v2853 = vpop.f32.mrb[0].mxu0
        %v2854 = vadd.f32 0.0, %v2853
        %v2855 = vpop.f32.mrb[0].mxu0
        %2856 = vmatprep.mubr.f32.mxu0 0.0
        %2857 = vmatmul.mubr.f32.gmra.mrb[0].mxu0 %v2679
        %v2858 = vpop.f32.mrb[0].mxu0
        %v2859 = vadd.f32 0.0, %v2858
        %v2860 = vpop.f32.mrb[0].mxu0
        %2861 = vmatprep.mubr.f32.mxu0 0.0
        %2862 = vmatmul.mubr.f32.gmra.mrb[0].mxu0 %v2682
        %v2863 = vpop.f32.mrb[0].mxu0
        %v2864 = vadd.f32 0.0, %v2863
        %v2865 = vpop.f32.mrb[0].mxu0
        %2866 = vmatprep.mubr.f32.mxu0 0.0
        %2867 = vmatmul.mubr.f32.gmra.mrb[0].mxu0 %v2685
        %v2868 = vpop.f32.mrb[0].mxu0
        %v2869 = vadd.f32 0.0, %v2868
        %v2870 = vpop.f32.mrb[0].mxu0
        %2871 = vmatprep.mubr.f32.mxu0 0.0
        %2872 = vmatmul.mubr.f32.gmra.mrb[0].mxu0 %v2688
        %v2873 = vpop.f32.mrb[0].mxu0
        %v2874 = vadd.f32 0.0, %v2873
        %v2875 = vpop.f32.mrb[0].mxu0
        %2876 = vmatprep.mubr.f32.mxu0 0.0
        %2877 = vmatmul.mubr.f32.gmra.mrb[0].mxu0 %v2691
        %v2878 = vpop.f32.mrb[0].mxu0
        %v2879 = vadd.f32 0.0, %v2878
        %v2880 = vpop.f32.mrb[0].mxu0
        %2881 = vmatprep.mubr.f32.mxu0 0.0
        %2882 = vmatmul.mubr.f32.gmra.mrb[0].mxu0 %v2694
        %v2883 = vpop.f32.mrb[0].mxu0
        %v2884 = vadd.f32 0.0, %v2883
        %v2885 = vpop.f32.mrb[0].mxu0
        %2886 = vmatprep.mubr.f32.mxu0 0.0
        %2887 = vmatmul.mubr.f32.gmra.mrb[0].mxu0 %v2697
        %v2888 = vpop.f32.mrb[0].mxu0
        %v2889 = vadd.f32 0.0, %v2888
        %v2890 = vpop.f32.mrb[0].mxu0
        %2891 = vmatprep.mubr.f32.mxu0 0.0
        %2892 = vmatmul.mubr.f32.gmra.mrb[0].mxu0 %v2700
        %v2893 = vpop.f32.mrb[0].mxu0
        %v2894 = vadd.f32 0.0, %v2893
        %v2895 = vpop.f32.mrb[0].mxu0
        %2896 = vmatprep.mubr.f32.mxu0 0.0
        %2897 = vmatmul.mubr.f32.gmra.mrb[0].mxu0 %v2703
        %v2898 = vpop.f32.mrb[0].mxu0
        %v2899 = vadd.f32 0.0, %v2898
        %v2900 = vpop.f32.mrb[0].mxu0
        %2901 = vmatprep.mubr.f32.mxu0 0.0
        %2902 = vmatmul.mubr.f32.gmra.mrb[0].mxu0 %v2706
        %v2903 = vpop.f32.mrb[0].mxu0
        %v2904 = vadd.f32 0.0, %v2903
        %v2905 = vpop.f32.mrb[0].mxu0
        %2906 = vmatprep.mubr.f32.mxu0 0.0
        %2907 = vmatmul.mubr.f32.gmra.mrb[0].mxu0 %v2709
        %v2908 = vpop.f32.mrb[0].mxu0
        %v2909 = vadd.f32 0.0, %v2908
        %v2910 = vpop.f32.mrb[0].mxu0
        %2911 = vmatprep.mubr.f32.mxu0 0.0
        %2912 = vmatmul.mubr.f32.gmra.mrb[0].mxu0 %v2712
        %v2913 = vpop.f32.mrb[0].mxu0
        %v2914 = vadd.f32 0.0, %v2913
        %v2915 = vpop.f32.mrb[0].mxu0
        %2916 = vmatprep.mubr.f32.mxu0 0.0
        %2917 = vmatmul.mubr.f32.gmra.mrb[0].mxu0 %v2715
        %v2918 = vpop.f32.mrb[0].mxu0
        %v2919 = vadd.f32 0.0, %v2918
        %v2920 = vpop.f32.mrb[0].mxu0
        %2921 = vmatprep.mubr.f32.mxu0 0.0
        %2922 = vmatmul.mubr.f32.gmra.mrb[0].mxu0 %v2718
        %v2923 = vpop.f32.mrb[0].mxu0
        %v2924 = vadd.f32 0.0, %v2923
        %v2925 = vpop.f32.mrb[0].mxu0
        %2926 = vmatprep.mubr.f32.mxu0 0.0
        %2927 = vmatmul.mubr.f32.gmra.mrb[0].mxu0 %v2721
        %v2928 = vpop.f32.mrb[0].mxu0
        %v2929 = vadd.f32 0.0, %v2928
        %v2930 = vpop.f32.mrb[0].mxu0
        %2931 = vmatprep.mubr.f32.mxu0 0.0
        %2932 = vmatmul.mubr.f32.gmra.mrb[0].mxu0 %v2724
        %v2933 = vpop.f32.mrb[0].mxu0
        %v2934 = vadd.f32 0.0, %v2933
        %v2935 = vpop.f32.mrb[0].mxu0
        %2936 = vmatprep.mubr.f32.mxu0 0.0
        %2937 = vmatmul.mubr.f32.gmra.mrb[0].mxu0 %v2727
        %v2938 = vpop.f32.mrb[0].mxu0
        %v2939 = vadd.f32 0.0, %v2938
        %v2940 = vpop.f32.mrb[0].mxu0
        %2941 = vmatprep.mubr.f32.mxu0 0.0
        %2942 = vmatmul.mubr.f32.gmra.mrb[0].mxu0 %v2730
        %v2943 = vpop.f32.mrb[0].mxu0
        %v2944 = vadd.f32 0.0, %v2943
        %v2945 = vpop.f32.mrb[0].mxu0
        %2946 = vmatprep.mubr.f32.mxu0 0.0
        %2947 = vmatmul.mubr.f32.gmra.mrb[0].mxu0 %v2733
        %v2948 = vpop.f32.mrb[0].mxu0
        %v2949 = vadd.f32 0.0, %v2948
        %v2950 = vpop.f32.mrb[0].mxu0
        %2951 = vmatprep.mubr.f32.mxu0 0.0
        %2952 = vmatmul.mubr.f32.gmra.mrb[0].mxu0 %v2736
        %v2953 = vpop.f32.mrb[0].mxu0
        %v2954 = vadd.f32 0.0, %v2953
        %v2955 = vpop.f32.mrb[0].mxu0
        %2956 = vmatprep.mubr.f32.mxu0 0.0
        %2957 = vmatmul.mubr.f32.gmra.mrb[0].mxu0 %v2739
        %v2958 = vpop.f32.mrb[0].mxu0
        %v2959 = vadd.f32 0.0, %v2958
        %v2960 = vpop.f32.mrb[0].mxu0
        %2961 = vmatprep.mubr.f32.mxu0 0.0
        %2962 = vmatmul.mubr.f32.gmra.mrb[0].mxu0 %v2742
        %v2963 = vpop.f32.mrb[0].mxu0
        %v2964 = vadd.f32 0.0, %v2963
        %v2965 = vpop.f32.mrb[0].mxu0
        %2966 = vmatprep.mubr.f32.mxu0 0.0
        %2967 = vmatmul.mubr.f32.gmra.mrb[0].mxu0 %v2745
        %v2968 = vpop.f32.mrb[0].mxu0
        %v2969 = vadd.f32 0.0, %v2968
        %v2970 = vpop.f32.mrb[0].mxu0
        %2971 = vmatprep.mubr.f32.mxu0 0.0
        %2972 = vmatmul.mubr.f32.gmra.mrb[0].mxu0 %v2748
        %v2973 = vpop.f32.mrb[0].mxu0
        %v2974 = vadd.f32 0.0, %v2973
        %v2975 = vpop.f32.mrb[0].mxu0
        %2976 = vmatprep.mubr.f32.mxu0 0.0
        %2977 = vmatmul.mubr.f32.gmra.mrb[0].mxu0 %v2751
        %v2978 = vpop.f32.mrb[0].mxu0
        %v2979 = vadd.f32 0.0, %v2978
        %v2980 = vpop.f32.mrb[0].mxu0
        %2981 = vmatprep.mubr.f32.mxu0 0.0
        %2982 = vmatmul.mubr.f32.gmra.mrb[0].mxu0 %v2754
        %v2983 = vpop.f32.mrb[0].mxu0
        %v2984 = vadd.f32 0.0, %v2983
        %v2985 = vpop.f32.mrb[0].mxu0
        %2986 = vmatprep.mubr.f32.mxu0 0.0
        %2987 = vmatmul.mubr.f32.gmra.mrb[0].mxu0 %v2757
        %v2988 = vpop.f32.mrb[0].mxu0
        %v2989 = vadd.f32 0.0, %v2988
        %v2990 = vpop.f32.mrb[0].mxu0
        %2991 = vmatprep.mubr.f32.mxu0 0.0
        %2992 = vmatmul.mubr.f32.gmra.mrb[0].mxu0 %v2760
        %v2993 = vpop.f32.mrb[0].mxu0
        %v2994 = vadd.f32 0.0, %v2993
        %v2995 = vpop.f32.mrb[0].mxu0
        %2996 = vmatprep.mubr.f32.mxu0 0.0
        %2997 = vmatmul.mubr.f32.gmra.mrb[0].mxu0 %v2763
        %v2998 = vpop.f32.mrb[0].mxu0
        %v2999 = vadd.f32 0.0, %v2998
        %v3000 = vpop.f32.mrb[0].mxu0
        %3001 = vmatprep.mubr.f32.mxu0 0.0
        %3002 = vmatmul.mubr.f32.gmra.mrb[0].mxu0 %v2766
        %v3003 = vpop.f32.mrb[0].mxu0
        %v3004 = vadd.f32 0.0, %v3003
        %v3005 = vpop.f32.mrb[0].mxu0
        %3006 = vmatprep.mubr.f32.mxu0 0.0
        %3007 = vmatmul.mubr.f32.gmra.mrb[0].mxu0 %v2769
        %v3008 = vpop.f32.mrb[0].mxu0
        %v3009 = vadd.f32 0.0, %v3008
        %v3010 = vpop.f32.mrb[0].mxu0
        %3011 = vmatprep.mubr.f32.mxu0 0.0
        %3012 = vmatmul.mubr.f32.gmra.mrb[0].mxu0 %v2772
        %v3013 = vpop.f32.mrb[0].mxu0
        %v3014 = vadd.f32 0.0, %v3013
        %v3015 = vpop.f32.mrb[0].mxu0
        %3016 = vmatprep.mubr.f32.mxu0 0.0
        %3017 = vmatmul.mubr.f32.gmra.mrb[0].mxu0 %v2775
        %v3018 = vpop.f32.mrb[0].mxu0
        %v3019 = vadd.f32 0.0, %v3018
        %v3020 = vpop.f32.mrb[0].mxu0
        %3021 = vdwg.mxu0
        %v3022 = vld [vmem:[%s194] sm:$0xff]
        %v3023 = vld [vmem:[%s194 + $0x8] sm:$0xff]
        %v3024 = vld [vmem:[%s194 + $0x10] sm:$0xff]
        %v3025 = vld [vmem:[%s194 + $0x18] sm:$0xff]
        %v3026 = vld [vmem:[%s194 + $0x20] sm:$0xff]
        %v3027 = vld [vmem:[%s194 + $0x28] sm:$0xff]
        %v3028 = vld [vmem:[%s194 + $0x30] sm:$0xff]
        %v3029 = vld [vmem:[%s194 + $0x38] sm:$0xff]
        %v3030 = vld [vmem:[%s194 + $0x40] sm:$0xff]
        %v3031 = vld [vmem:[%s194 + $0x48] sm:$0xff]
        %v3032 = vld [vmem:[%s194 + $0x50] sm:$0xff]
        %v3033 = vld [vmem:[%s194 + $0x58] sm:$0xff]
        %v3034 = vld [vmem:[%s194 + $0x60] sm:$0xff]
        %v3035 = vld [vmem:[%s194 + $0x68] sm:$0xff]
        %v3036 = vld [vmem:[%s194 + $0x70] sm:$0xff]
        %v3037 = vld [vmem:[%s194 + $0x78] sm:$0xff]
        %v3038 = vld [vmem:[%s194 + $0x80] sm:$0xff]
        %v3039 = vld [vmem:[%s194 + $0x88] sm:$0xff]
        %v3040 = vld [vmem:[%s194 + $0x90] sm:$0xff]
        %v3041 = vld [vmem:[%s194 + $0x98] sm:$0xff]
        %v3042 = vld [vmem:[%s194 + $0xa0] sm:$0xff]
        %v3043 = vld [vmem:[%s194 + $0xa8] sm:$0xff]
        %v3044 = vld [vmem:[%s194 + $0xb0] sm:$0xff]
        %v3045 = vld [vmem:[%s194 + $0xb8] sm:$0xff]
        %v3046 = vld [vmem:[%s194 + $0xc0] sm:$0xff]
        %v3047 = vld [vmem:[%s194 + $0xc8] sm:$0xff]
        %v3048 = vld [vmem:[%s194 + $0xd0] sm:$0xff]
        %v3049 = vld [vmem:[%s194 + $0xd8] sm:$0xff]
        %v3050 = vld [vmem:[%s194 + $0xe0] sm:$0xff]
        %v3051 = vld [vmem:[%s194 + $0xe8] sm:$0xff]
        %v3052 = vld [vmem:[%s194 + $0xf0] sm:$0xff]
        %v3053 = vld [vmem:[%s194 + $0xf8] sm:$0xff]
        %v3054 = vld [vmem:[%s194 + $0x100] sm:$0xff]
        %v3055 = vld [vmem:[%s194 + $0x108] sm:$0xff]
        %v3056 = vld [vmem:[%s194 + $0x110] sm:$0xff]
        %v3057 = vld [vmem:[%s194 + $0x118] sm:$0xff]
        %v3058 = vadd.f32 %v3022, %v2844
        %v3059 = vadd.f32 %v3023, %v2849
        %v3060 = vadd.f32 %v3024, %v2854
        %v3061 = vadd.f32 %v3025, %v2859
        %v3062 = vadd.f32 %v3026, %v2864
        %v3063 = vadd.f32 %v3027, %v2869
        %v3064 = vadd.f32 %v3028, %v2874
        %v3065 = vadd.f32 %v3029, %v2879
        %v3066 = vadd.f32 %v3030, %v2884
        %v3067 = vadd.f32 %v3031, %v2889
        %v3068 = vadd.f32 %v3032, %v2894
        %v3069 = vadd.f32 %v3033, %v2899
        %v3070 = vadd.f32 %v3034, %v2904
        %v3071 = vadd.f32 %v3035, %v2909
        %v3072 = vadd.f32 %v3036, %v2914
        %v3073 = vadd.f32 %v3037, %v2919
        %v3074 = vadd.f32 %v3038, %v2924
        %v3075 = vadd.f32 %v3039, %v2929
        %v3076 = vadd.f32 %v3040, %v2934
        %v3077 = vadd.f32 %v3041, %v2939
        %v3078 = vadd.f32 %v3042, %v2944
        %v3079 = vadd.f32 %v3043, %v2949
        %v3080 = vadd.f32 %v3044, %v2954
        %v3081 = vadd.f32 %v3045, %v2959
        %v3082 = vadd.f32 %v3046, %v2964
        %v3083 = vadd.f32 %v3047, %v2969
        %v3084 = vadd.f32 %v3048, %v2974
        %v3085 = vadd.f32 %v3049, %v2979
        %v3086 = vadd.f32 %v3050, %v2984
        %v3087 = vadd.f32 %v3051, %v2989
        %v3088 = vadd.f32 %v3052, %v2994
        %v3089 = vadd.f32 %v3053, %v2999
        %v3090 = vadd.f32 %v3054, %v3004
        %v3091 = vadd.f32 %v3055, %v3009
        %v3092 = vadd.f32 %v3056, %v3014
        %v3093 = vadd.f32 %v3057, %v3019
        %3094 = vst [vmem:[%s194] sm:$0xff] %v3058
        %3095 = vst [vmem:[%s194 + $0x8] sm:$0xff] %v3059
        %3096 = vst [vmem:[%s194 + $0x10] sm:$0xff] %v3060
        %3097 = vst [vmem:[%s194 + $0x18] sm:$0xff] %v3061
        %3098 = vst [vmem:[%s194 + $0x20] sm:$0xff] %v3062
        %3099 = vst [vmem:[%s194 + $0x28] sm:$0xff] %v3063
        %3100 = vst [vmem:[%s194 + $0x30] sm:$0xff] %v3064
        %3101 = vst [vmem:[%s194 + $0x38] sm:$0xff] %v3065
        %3102 = vst [vmem:[%s194 + $0x40] sm:$0xff] %v3066
        %3103 = vst [vmem:[%s194 + $0x48] sm:$0xff] %v3067
        %3104 = vst [vmem:[%s194 + $0x50] sm:$0xff] %v3068
        %3105 = vst [vmem:[%s194 + $0x58] sm:$0xff] %v3069
        %3106 = vst [vmem:[%s194 + $0x60] sm:$0xff] %v3070
        %3107 = vst [vmem:[%s194 + $0x68] sm:$0xff] %v3071
        %3108 = vst [vmem:[%s194 + $0x70] sm:$0xff] %v3072
        %3109 = vst [vmem:[%s194 + $0x78] sm:$0xff] %v3073
        %3110 = vst [vmem:[%s194 + $0x80] sm:$0xff] %v3074
        %3111 = vst [vmem:[%s194 + $0x88] sm:$0xff] %v3075
        %3112 = vst [vmem:[%s194 + $0x90] sm:$0xff] %v3076
        %3113 = vst [vmem:[%s194 + $0x98] sm:$0xff] %v3077
        %3114 = vst [vmem:[%s194 + $0xa0] sm:$0xff] %v3078
        %3115 = vst [vmem:[%s194 + $0xa8] sm:$0xff] %v3079
        %3116 = vst [vmem:[%s194 + $0xb0] sm:$0xff] %v3080
        %3117 = vst [vmem:[%s194 + $0xb8] sm:$0xff] %v3081
        %3118 = vst [vmem:[%s194 + $0xc0] sm:$0xff] %v3082
        %3119 = vst [vmem:[%s194 + $0xc8] sm:$0xff] %v3083
        %3120 = vst [vmem:[%s194 + $0xd0] sm:$0xff] %v3084
        %3121 = vst [vmem:[%s194 + $0xd8] sm:$0xff] %v3085
        %3122 = vst [vmem:[%s194 + $0xe0] sm:$0xff] %v3086
        %3123 = vst [vmem:[%s194 + $0xe8] sm:$0xff] %v3087
        %3124 = vst [vmem:[%s194 + $0xf0] sm:$0xff] %v3088
        %3125 = vst [vmem:[%s194 + $0xf8] sm:$0xff] %v3089
        %3126 = vst [vmem:[%s194 + $0x100] sm:$0xff] %v3090
        %3127 = vst [vmem:[%s194 + $0x108] sm:$0xff] %v3091
        %3128 = vst [vmem:[%s194 + $0x110] sm:$0xff] %v3092
        %3129 = vst [vmem:[%s194 + $0x118] sm:$0xff] %v3093
        %v3130 = vld [vmem:[%s206 + $0x24] sm:$0xff]
        %v3131 = vld [vmem:[%s206 + $0x2c] sm:$0xff]
        %v3132 = vld [vmem:[%s206 + $0x34] sm:$0xff]
        %v3133 = vld [vmem:[%s206 + $0x3c] sm:$0xff]
        %v3134 = vld [vmem:[%s206 + $0x44] sm:$0xff]
        %v3135 = vld [vmem:[%s206 + $0x4c] sm:$0xff]
        %v3136 = vld [vmem:[%s206 + $0x54] sm:$0xff]
        %v3137 = vld [vmem:[%s206 + $0x5c] sm:$0xff]
        %v3138 = vld [vmem:[%s206 + $0x64] sm:$0xff]
        %v3139 = vld [vmem:[%s206 + $0x6c] sm:$0xff]
        %v3140 = vld [vmem:[%s206 + $0x74] sm:$0xff]
        %v3141 = vld [vmem:[%s206 + $0x7c] sm:$0xff]
        %v3142 = vld [vmem:[%s206 + $0x84] sm:$0xff]
        %v3143 = vld [vmem:[%s206 + $0x8c] sm:$0xff]
        %v3144 = vld [vmem:[%s206 + $0x94] sm:$0xff]
        %v3145 = vld [vmem:[%s206 + $0x9c] sm:$0xff]
        %v3146 = vld [vmem:[%s206 + $0xa4] sm:$0xff]
        %v3147 = vld [vmem:[%s206 + $0xac] sm:$0xff]
        %v3148 = vld [vmem:[%s206 + $0xb4] sm:$0xff]
        %v3149 = vld [vmem:[%s206 + $0xbc] sm:$0xff]
        %v3150 = vld [vmem:[%s206 + $0xc4] sm:$0xff]
        %v3151 = vld [vmem:[%s206 + $0xcc] sm:$0xff]
        %v3152 = vld [vmem:[%s206 + $0xd4] sm:$0xff]
        %v3153 = vld [vmem:[%s206 + $0xdc] sm:$0xff]
        %v3154 = vld [vmem:[%s206 + $0xe4] sm:$0xff]
        %v3155 = vld [vmem:[%s206 + $0xec] sm:$0xff]
        %v3156 = vld [vmem:[%s206 + $0xf4] sm:$0xff]
        %v3157 = vld [vmem:[%s206 + $0xfc] sm:$0xff]
        %v3158 = vld [vmem:[%s206 + $0x104] sm:$0xff]
        %v3159 = vld [vmem:[%s206 + $0x10c] sm:$0xff]
        %v3160 = vld [vmem:[%s206 + $0x114] sm:$0xff]
        %v3161 = vld [vmem:[%s206 + $0x11c] sm:$0xff]
        %v3162 = vld [vmem:[%s206 + $0x124] sm:$0xff]
        %v3163 = vld [vmem:[%s206 + $0x12c] sm:$0xff]
        %v3164 = vld [vmem:[%s206 + $0x134] sm:$0xff]
        %v3165 = vld [vmem:[%s206 + $0x13c] sm:$0xff]
        %s3166 = scalar_lea.vmem %s1, 48
        %v3167 = vld [vmem:[%s3166] sm:$0xff]
        %v3169 = vsel %vm245, %v3130, 0
        %v3172 = vsel %vm245, %v3131, 0
        %v3175 = vsel %vm245, %v3132, 0
        %v3178 = vsel %vm245, %v3133, 0
        %v3181 = vsel %vm245, %v3134, 0
        %v3184 = vsel %vm245, %v3135, 0
        %v3187 = vsel %vm245, %v3136, 0
        %v3190 = vsel %vm245, %v3137, 0
        %v3193 = vsel %vm245, %v3138, 0
        %v3196 = vsel %vm245, %v3139, 0
        %v3199 = vsel %vm245, %v3140, 0
        %v3202 = vsel %vm245, %v3141, 0
        %v3205 = vsel %vm245, %v3142, 0
        %v3208 = vsel %vm245, %v3143, 0
        %v3211 = vsel %vm245, %v3144, 0
        %v3214 = vsel %vm245, %v3145, 0
        %v3217 = vsel %vm245, %v3146, 0
        %v3220 = vsel %vm245, %v3147, 0
        %v3223 = vsel %vm245, %v3148, 0
        %v3226 = vsel %vm245, %v3149, 0
        %v3229 = vsel %vm245, %v3150, 0
        %v3232 = vsel %vm245, %v3151, 0
        %v3235 = vsel %vm245, %v3152, 0
        %v3238 = vsel %vm245, %v3153, 0
        %v3241 = vsel %vm245, %v3154, 0
        %v3244 = vsel %vm245, %v3155, 0
        %v3247 = vsel %vm245, %v3156, 0
        %v3250 = vsel %vm245, %v3157, 0
        %v3253 = vsel %vm245, %v3158, 0
        %v3256 = vsel %vm245, %v3159, 0
        %v3259 = vsel %vm245, %v3160, 0
        %v3262 = vsel %vm245, %v3161, 0
        %v3265 = vsel %vm245, %v3162, 0
        %v3268 = vsel %vm245, %v3163, 0
        %v3271 = vsel %vm245, %v3164, 0
        %v3274 = vsel %vm245, %v3165, 0
        %3276 = vmatprep.subr.mxu0 0.0
        %3277 = vmatpush1.msra.mxu0 %v3167
        %3278 = vmatprep.subr.mxu0 0.0
        %3279 = vmatpush1.msra.mxu0 0.0
        %3280 = vmatprep.subr.mxu0 0.0
        %3281 = vmatpush1.msra.mxu0 0.0
        %3282 = vmatprep.subr.mxu0 0.0
        %3283 = vmatpush1.msra.mxu0 0.0
        %3284 = vmatprep.subr.mxu0 0.0
        %3285 = vmatpush1.msra.mxu0 0.0
        %3286 = vmatprep.subr.mxu0 0.0
        %3287 = vmatpush1.msra.mxu0 0.0
        %3288 = vmatprep.subr.mxu0 0.0
        %3289 = vmatpush1.msra.mxu0 0.0
        %3290 = vmatprep.subr.mxu0 0.0
        %3291 = vmatpush1.msra.mxu0 0.0
        %3292 = vmatprep.subr.mxu0 0.0
        %3293 = vmatpush1.msra.mxu0 0.0
        %3294 = vmatprep.subr.mxu0 0.0
        %3295 = vmatpush1.msra.mxu0 0.0
        %3296 = vmatprep.subr.mxu0 0.0
        %3297 = vmatpush1.msra.mxu0 0.0
        %3298 = vmatprep.subr.mxu0 0.0
        %3299 = vmatpush1.msra.mxu0 0.0
        %3300 = vmatprep.subr.mxu0 0.0
        %3301 = vmatpush1.msra.mxu0 0.0
        %3302 = vmatprep.subr.mxu0 0.0
        %3303 = vmatpush1.msra.mxu0 0.0
        %3304 = vmatprep.subr.mxu0 0.0
        %3305 = vmatpush1.msra.mxu0 0.0
        %3306 = vmatprep.subr.mxu0 0.0
        %3307 = vmatpush1.msra.mxu0 0.0
        %3308 = vmatprep.subr.mxu0 0.0
        %3309 = vmatpush1.msra.mxu0 0.0
        %3310 = vmatprep.subr.mxu0 0.0
        %3311 = vmatpush1.msra.mxu0 0.0
        %3312 = vmatprep.subr.mxu0 0.0
        %3313 = vmatpush1.msra.mxu0 0.0
        %3314 = vmatprep.subr.mxu0 0.0
        %3315 = vmatpush1.msra.mxu0 0.0
        %3316 = vmatprep.subr.mxu0 0.0
        %3317 = vmatpush1.msra.mxu0 0.0
        %3318 = vmatprep.subr.mxu0 0.0
        %3319 = vmatpush1.msra.mxu0 0.0
        %3320 = vmatprep.subr.mxu0 0.0
        %3321 = vmatpush1.msra.mxu0 0.0
        %3322 = vmatprep.subr.mxu0 0.0
        %3323 = vmatpush1.msra.mxu0 0.0
        %3324 = vmatprep.subr.mxu0 0.0
        %3325 = vmatpush1.msra.mxu0 0.0
        %3326 = vmatprep.subr.mxu0 0.0
        %3327 = vmatpush1.msra.mxu0 0.0
        %3328 = vmatprep.subr.mxu0 0.0
        %3329 = vmatpush1.msra.mxu0 0.0
        %3330 = vmatprep.subr.mxu0 0.0
        %3331 = vmatpush1.msra.mxu0 0.0
        %3332 = vmatprep.subr.mxu0 0.0
        %3333 = vmatpush1.msra.mxu0 0.0
        %3334 = vmatprep.subr.mxu0 0.0
        %3335 = vmatpush1.msra.mxu0 0.0
        %3336 = vmatprep.subr.mxu0 0.0
        %3337 = vmatpush1.msra.mxu0 0.0
        %3338 = vmatprep.subr.mxu0 0.0
        %3339 = vmatpush1.msra.mxu0 0.0
        %3340 = vmatprep.mubr.f32.mxu0 0.0
        %3341 = vmatmul.mubr.f32.gmra.mrb[0].mxu0 %v3169
        %v3342 = vpop.f32.mrb[0].mxu0
        %v3343 = vadd.f32 0.0, %v3342
        %v3344 = vpop.f32.mrb[0].mxu0
        %3345 = vmatprep.mubr.f32.mxu0 0.0
        %3346 = vmatmul.mubr.f32.gmra.mrb[0].mxu0 %v3172
        %v3347 = vpop.f32.mrb[0].mxu0
        %v3348 = vadd.f32 0.0, %v3347
        %v3349 = vpop.f32.mrb[0].mxu0
        %3350 = vmatprep.mubr.f32.mxu0 0.0
        %3351 = vmatmul.mubr.f32.gmra.mrb[0].mxu0 %v3175
        %v3352 = vpop.f32.mrb[0].mxu0
        %v3353 = vadd.f32 0.0, %v3352
        %v3354 = vpop.f32.mrb[0].mxu0
        %3355 = vmatprep.mubr.f32.mxu0 0.0
        %3356 = vmatmul.mubr.f32.gmra.mrb[0].mxu0 %v3178
        %v3357 = vpop.f32.mrb[0].mxu0
        %v3358 = vadd.f32 0.0, %v3357
        %v3359 = vpop.f32.mrb[0].mxu0
        %3360 = vmatprep.mubr.f32.mxu0 0.0
        %3361 = vmatmul.mubr.f32.gmra.mrb[0].mxu0 %v3181
        %v3362 = vpop.f32.mrb[0].mxu0
        %v3363 = vadd.f32 0.0, %v3362
        %v3364 = vpop.f32.mrb[0].mxu0
        %3365 = vmatprep.mubr.f32.mxu0 0.0
        %3366 = vmatmul.mubr.f32.gmra.mrb[0].mxu0 %v3184
        %v3367 = vpop.f32.mrb[0].mxu0
        %v3368 = vadd.f32 0.0, %v3367
        %v3369 = vpop.f32.mrb[0].mxu0
        %3370 = vmatprep.mubr.f32.mxu0 0.0
        %3371 = vmatmul.mubr.f32.gmra.mrb[0].mxu0 %v3187
        %v3372 = vpop.f32.mrb[0].mxu0
        %v3373 = vadd.f32 0.0, %v3372
        %v3374 = vpop.f32.mrb[0].mxu0
        %3375 = vmatprep.mubr.f32.mxu0 0.0
        %3376 = vmatmul.mubr.f32.gmra.mrb[0].mxu0 %v3190
        %v3377 = vpop.f32.mrb[0].mxu0
        %v3378 = vadd.f32 0.0, %v3377
        %v3379 = vpop.f32.mrb[0].mxu0
        %3380 = vmatprep.mubr.f32.mxu0 0.0
        %3381 = vmatmul.mubr.f32.gmra.mrb[0].mxu0 %v3193
        %v3382 = vpop.f32.mrb[0].mxu0
        %v3383 = vadd.f32 0.0, %v3382
        %v3384 = vpop.f32.mrb[0].mxu0
        %3385 = vmatprep.mubr.f32.mxu0 0.0
        %3386 = vmatmul.mubr.f32.gmra.mrb[0].mxu0 %v3196
        %v3387 = vpop.f32.mrb[0].mxu0
        %v3388 = vadd.f32 0.0, %v3387
        %v3389 = vpop.f32.mrb[0].mxu0
        %3390 = vmatprep.mubr.f32.mxu0 0.0
        %3391 = vmatmul.mubr.f32.gmra.mrb[0].mxu0 %v3199
        %v3392 = vpop.f32.mrb[0].mxu0
        %v3393 = vadd.f32 0.0, %v3392
        %v3394 = vpop.f32.mrb[0].mxu0
        %3395 = vmatprep.mubr.f32.mxu0 0.0
        %3396 = vmatmul.mubr.f32.gmra.mrb[0].mxu0 %v3202
        %v3397 = vpop.f32.mrb[0].mxu0
        %v3398 = vadd.f32 0.0, %v3397
        %v3399 = vpop.f32.mrb[0].mxu0
        %3400 = vmatprep.mubr.f32.mxu0 0.0
        %3401 = vmatmul.mubr.f32.gmra.mrb[0].mxu0 %v3205
        %v3402 = vpop.f32.mrb[0].mxu0
        %v3403 = vadd.f32 0.0, %v3402
        %v3404 = vpop.f32.mrb[0].mxu0
        %3405 = vmatprep.mubr.f32.mxu0 0.0
        %3406 = vmatmul.mubr.f32.gmra.mrb[0].mxu0 %v3208
        %v3407 = vpop.f32.mrb[0].mxu0
        %v3408 = vadd.f32 0.0, %v3407
        %v3409 = vpop.f32.mrb[0].mxu0
        %3410 = vmatprep.mubr.f32.mxu0 0.0
        %3411 = vmatmul.mubr.f32.gmra.mrb[0].mxu0 %v3211
        %v3412 = vpop.f32.mrb[0].mxu0
        %v3413 = vadd.f32 0.0, %v3412
        %v3414 = vpop.f32.mrb[0].mxu0
        %3415 = vmatprep.mubr.f32.mxu0 0.0
        %3416 = vmatmul.mubr.f32.gmra.mrb[0].mxu0 %v3214
        %v3417 = vpop.f32.mrb[0].mxu0
        %v3418 = vadd.f32 0.0, %v3417
        %v3419 = vpop.f32.mrb[0].mxu0
        %3420 = vmatprep.mubr.f32.mxu0 0.0
        %3421 = vmatmul.mubr.f32.gmra.mrb[0].mxu0 %v3217
        %v3422 = vpop.f32.mrb[0].mxu0
        %v3423 = vadd.f32 0.0, %v3422
        %v3424 = vpop.f32.mrb[0].mxu0
        %3425 = vmatprep.mubr.f32.mxu0 0.0
        %3426 = vmatmul.mubr.f32.gmra.mrb[0].mxu0 %v3220
        %v3427 = vpop.f32.mrb[0].mxu0
        %v3428 = vadd.f32 0.0, %v3427
        %v3429 = vpop.f32.mrb[0].mxu0
        %3430 = vmatprep.mubr.f32.mxu0 0.0
        %3431 = vmatmul.mubr.f32.gmra.mrb[0].mxu0 %v3223
        %v3432 = vpop.f32.mrb[0].mxu0
        %v3433 = vadd.f32 0.0, %v3432
        %v3434 = vpop.f32.mrb[0].mxu0
        %3435 = vmatprep.mubr.f32.mxu0 0.0
        %3436 = vmatmul.mubr.f32.gmra.mrb[0].mxu0 %v3226
        %v3437 = vpop.f32.mrb[0].mxu0
        %v3438 = vadd.f32 0.0, %v3437
        %v3439 = vpop.f32.mrb[0].mxu0
        %3440 = vmatprep.mubr.f32.mxu0 0.0
        %3441 = vmatmul.mubr.f32.gmra.mrb[0].mxu0 %v3229
        %v3442 = vpop.f32.mrb[0].mxu0
        %v3443 = vadd.f32 0.0, %v3442
        %v3444 = vpop.f32.mrb[0].mxu0
        %3445 = vmatprep.mubr.f32.mxu0 0.0
        %3446 = vmatmul.mubr.f32.gmra.mrb[0].mxu0 %v3232
        %v3447 = vpop.f32.mrb[0].mxu0
        %v3448 = vadd.f32 0.0, %v3447
        %v3449 = vpop.f32.mrb[0].mxu0
        %3450 = vmatprep.mubr.f32.mxu0 0.0
        %3451 = vmatmul.mubr.f32.gmra.mrb[0].mxu0 %v3235
        %v3452 = vpop.f32.mrb[0].mxu0
        %v3453 = vadd.f32 0.0, %v3452
        %v3454 = vpop.f32.mrb[0].mxu0
        %3455 = vmatprep.mubr.f32.mxu0 0.0
        %3456 = vmatmul.mubr.f32.gmra.mrb[0].mxu0 %v3238
        %v3457 = vpop.f32.mrb[0].mxu0
        %v3458 = vadd.f32 0.0, %v3457
        %v3459 = vpop.f32.mrb[0].mxu0
        %3460 = vmatprep.mubr.f32.mxu0 0.0
        %3461 = vmatmul.mubr.f32.gmra.mrb[0].mxu0 %v3241
        %v3462 = vpop.f32.mrb[0].mxu0
        %v3463 = vadd.f32 0.0, %v3462
        %v3464 = vpop.f32.mrb[0].mxu0
        %3465 = vmatprep.mubr.f32.mxu0 0.0
        %3466 = vmatmul.mubr.f32.gmra.mrb[0].mxu0 %v3244
        %v3467 = vpop.f32.mrb[0].mxu0
        %v3468 = vadd.f32 0.0, %v3467
        %v3469 = vpop.f32.mrb[0].mxu0
        %3470 = vmatprep.mubr.f32.mxu0 0.0
        %3471 = vmatmul.mubr.f32.gmra.mrb[0].mxu0 %v3247
        %v3472 = vpop.f32.mrb[0].mxu0
        %v3473 = vadd.f32 0.0, %v3472
        %v3474 = vpop.f32.mrb[0].mxu0
        %3475 = vmatprep.mubr.f32.mxu0 0.0
        %3476 = vmatmul.mubr.f32.gmra.mrb[0].mxu0 %v3250
        %v3477 = vpop.f32.mrb[0].mxu0
        %v3478 = vadd.f32 0.0, %v3477
        %v3479 = vpop.f32.mrb[0].mxu0
        %3480 = vmatprep.mubr.f32.mxu0 0.0
        %3481 = vmatmul.mubr.f32.gmra.mrb[0].mxu0 %v3253
        %v3482 = vpop.f32.mrb[0].mxu0
        %v3483 = vadd.f32 0.0, %v3482
        %v3484 = vpop.f32.mrb[0].mxu0
        %3485 = vmatprep.mubr.f32.mxu0 0.0
        %3486 = vmatmul.mubr.f32.gmra.mrb[0].mxu0 %v3256
        %v3487 = vpop.f32.mrb[0].mxu0
        %v3488 = vadd.f32 0.0, %v3487
        %v3489 = vpop.f32.mrb[0].mxu0
        %3490 = vmatprep.mubr.f32.mxu0 0.0
        %3491 = vmatmul.mubr.f32.gmra.mrb[0].mxu0 %v3259
        %v3492 = vpop.f32.mrb[0].mxu0
        %v3493 = vadd.f32 0.0, %v3492
        %v3494 = vpop.f32.mrb[0].mxu0
        %3495 = vmatprep.mubr.f32.mxu0 0.0
        %3496 = vmatmul.mubr.f32.gmra.mrb[0].mxu0 %v3262
        %v3497 = vpop.f32.mrb[0].mxu0
        %v3498 = vadd.f32 0.0, %v3497
        %v3499 = vpop.f32.mrb[0].mxu0
        %3500 = vmatprep.mubr.f32.mxu0 0.0
        %3501 = vmatmul.mubr.f32.gmra.mrb[0].mxu0 %v3265
        %v3502 = vpop.f32.mrb[0].mxu0
        %v3503 = vadd.f32 0.0, %v3502
        %v3504 = vpop.f32.mrb[0].mxu0
        %3505 = vmatprep.mubr.f32.mxu0 0.0
        %3506 = vmatmul.mubr.f32.gmra.mrb[0].mxu0 %v3268
        %v3507 = vpop.f32.mrb[0].mxu0
        %v3508 = vadd.f32 0.0, %v3507
        %v3509 = vpop.f32.mrb[0].mxu0
        %3510 = vmatprep.mubr.f32.mxu0 0.0
        %3511 = vmatmul.mubr.f32.gmra.mrb[0].mxu0 %v3271
        %v3512 = vpop.f32.mrb[0].mxu0
        %v3513 = vadd.f32 0.0, %v3512
        %v3514 = vpop.f32.mrb[0].mxu0
        %3515 = vmatprep.mubr.f32.mxu0 0.0
        %3516 = vmatmul.mubr.f32.gmra.mrb[0].mxu0 %v3274
        %v3517 = vpop.f32.mrb[0].mxu0
        %v3518 = vadd.f32 0.0, %v3517
        %v3519 = vpop.f32.mrb[0].mxu0
        %3520 = vdwg.mxu0
        %v3521 = vld [vmem:[%s194] sm:$0xff]
        %v3522 = vld [vmem:[%s194 + $0x8] sm:$0xff]
        %v3523 = vld [vmem:[%s194 + $0x10] sm:$0xff]
        %v3524 = vld [vmem:[%s194 + $0x18] sm:$0xff]
        %v3525 = vld [vmem:[%s194 + $0x20] sm:$0xff]
        %v3526 = vld [vmem:[%s194 + $0x28] sm:$0xff]
        %v3527 = vld [vmem:[%s194 + $0x30] sm:$0xff]
        %v3528 = vld [vmem:[%s194 + $0x38] sm:$0xff]
        %v3529 = vld [vmem:[%s194 + $0x40] sm:$0xff]
        %v3530 = vld [vmem:[%s194 + $0x48] sm:$0xff]
        %v3531 = vld [vmem:[%s194 + $0x50] sm:$0xff]
        %v3532 = vld [vmem:[%s194 + $0x58] sm:$0xff]
        %v3533 = vld [vmem:[%s194 + $0x60] sm:$0xff]
        %v3534 = vld [vmem:[%s194 + $0x68] sm:$0xff]
        %v3535 = vld [vmem:[%s194 + $0x70] sm:$0xff]
        %v3536 = vld [vmem:[%s194 + $0x78] sm:$0xff]
        %v3537 = vld [vmem:[%s194 + $0x80] sm:$0xff]
        %v3538 = vld [vmem:[%s194 + $0x88] sm:$0xff]
        %v3539 = vld [vmem:[%s194 + $0x90] sm:$0xff]
        %v3540 = vld [vmem:[%s194 + $0x98] sm:$0xff]
        %v3541 = vld [vmem:[%s194 + $0xa0] sm:$0xff]
        %v3542 = vld [vmem:[%s194 + $0xa8] sm:$0xff]
        %v3543 = vld [vmem:[%s194 + $0xb0] sm:$0xff]
        %v3544 = vld [vmem:[%s194 + $0xb8] sm:$0xff]
        %v3545 = vld [vmem:[%s194 + $0xc0] sm:$0xff]
        %v3546 = vld [vmem:[%s194 + $0xc8] sm:$0xff]
        %v3547 = vld [vmem:[%s194 + $0xd0] sm:$0xff]
        %v3548 = vld [vmem:[%s194 + $0xd8] sm:$0xff]
        %v3549 = vld [vmem:[%s194 + $0xe0] sm:$0xff]
        %v3550 = vld [vmem:[%s194 + $0xe8] sm:$0xff]
        %v3551 = vld [vmem:[%s194 + $0xf0] sm:$0xff]
        %v3552 = vld [vmem:[%s194 + $0xf8] sm:$0xff]
        %v3553 = vld [vmem:[%s194 + $0x100] sm:$0xff]
        %v3554 = vld [vmem:[%s194 + $0x108] sm:$0xff]
        %v3555 = vld [vmem:[%s194 + $0x110] sm:$0xff]
        %v3556 = vld [vmem:[%s194 + $0x118] sm:$0xff]
        %v3557 = vadd.f32 %v3521, %v3343
        %v3558 = vadd.f32 %v3522, %v3348
        %v3559 = vadd.f32 %v3523, %v3353
        %v3560 = vadd.f32 %v3524, %v3358
        %v3561 = vadd.f32 %v3525, %v3363
        %v3562 = vadd.f32 %v3526, %v3368
        %v3563 = vadd.f32 %v3527, %v3373
        %v3564 = vadd.f32 %v3528, %v3378
        %v3565 = vadd.f32 %v3529, %v3383
        %v3566 = vadd.f32 %v3530, %v3388
        %v3567 = vadd.f32 %v3531, %v3393
        %v3568 = vadd.f32 %v3532, %v3398
        %v3569 = vadd.f32 %v3533, %v3403
        %v3570 = vadd.f32 %v3534, %v3408
        %v3571 = vadd.f32 %v3535, %v3413
        %v3572 = vadd.f32 %v3536, %v3418
        %v3573 = vadd.f32 %v3537, %v3423
        %v3574 = vadd.f32 %v3538, %v3428
        %v3575 = vadd.f32 %v3539, %v3433
        %v3576 = vadd.f32 %v3540, %v3438
        %v3577 = vadd.f32 %v3541, %v3443
        %v3578 = vadd.f32 %v3542, %v3448
        %v3579 = vadd.f32 %v3543, %v3453
        %v3580 = vadd.f32 %v3544, %v3458
        %v3581 = vadd.f32 %v3545, %v3463
        %v3582 = vadd.f32 %v3546, %v3468
        %v3583 = vadd.f32 %v3547, %v3473
        %v3584 = vadd.f32 %v3548, %v3478
        %v3585 = vadd.f32 %v3549, %v3483
        %v3586 = vadd.f32 %v3550, %v3488
        %v3587 = vadd.f32 %v3551, %v3493
        %v3588 = vadd.f32 %v3552, %v3498
        %v3589 = vadd.f32 %v3553, %v3503
        %v3590 = vadd.f32 %v3554, %v3508
        %v3591 = vadd.f32 %v3555, %v3513
        %v3592 = vadd.f32 %v3556, %v3518
        %3593 = vst [vmem:[%s194] sm:$0xff] %v3557
        %3594 = vst [vmem:[%s194 + $0x8] sm:$0xff] %v3558
        %3595 = vst [vmem:[%s194 + $0x10] sm:$0xff] %v3559
        %3596 = vst [vmem:[%s194 + $0x18] sm:$0xff] %v3560
        %3597 = vst [vmem:[%s194 + $0x20] sm:$0xff] %v3561
        %3598 = vst [vmem:[%s194 + $0x28] sm:$0xff] %v3562
        %3599 = vst [vmem:[%s194 + $0x30] sm:$0xff] %v3563
        %3600 = vst [vmem:[%s194 + $0x38] sm:$0xff] %v3564
        %3601 = vst [vmem:[%s194 + $0x40] sm:$0xff] %v3565
        %3602 = vst [vmem:[%s194 + $0x48] sm:$0xff] %v3566
        %3603 = vst [vmem:[%s194 + $0x50] sm:$0xff] %v3567
        %3604 = vst [vmem:[%s194 + $0x58] sm:$0xff] %v3568
        %3605 = vst [vmem:[%s194 + $0x60] sm:$0xff] %v3569
        %3606 = vst [vmem:[%s194 + $0x68] sm:$0xff] %v3570
        %3607 = vst [vmem:[%s194 + $0x70] sm:$0xff] %v3571
        %3608 = vst [vmem:[%s194 + $0x78] sm:$0xff] %v3572
        %3609 = vst [vmem:[%s194 + $0x80] sm:$0xff] %v3573
        %3610 = vst [vmem:[%s194 + $0x88] sm:$0xff] %v3574
        %3611 = vst [vmem:[%s194 + $0x90] sm:$0xff] %v3575
        %3612 = vst [vmem:[%s194 + $0x98] sm:$0xff] %v3576
        %3613 = vst [vmem:[%s194 + $0xa0] sm:$0xff] %v3577
        %3614 = vst [vmem:[%s194 + $0xa8] sm:$0xff] %v3578
        %3615 = vst [vmem:[%s194 + $0xb0] sm:$0xff] %v3579
        %3616 = vst [vmem:[%s194 + $0xb8] sm:$0xff] %v3580
        %3617 = vst [vmem:[%s194 + $0xc0] sm:$0xff] %v3581
        %3618 = vst [vmem:[%s194 + $0xc8] sm:$0xff] %v3582
        %3619 = vst [vmem:[%s194 + $0xd0] sm:$0xff] %v3583
        %3620 = vst [vmem:[%s194 + $0xd8] sm:$0xff] %v3584
        %3621 = vst [vmem:[%s194 + $0xe0] sm:$0xff] %v3585
        %3622 = vst [vmem:[%s194 + $0xe8] sm:$0xff] %v3586
        %3623 = vst [vmem:[%s194 + $0xf0] sm:$0xff] %v3587
        %3624 = vst [vmem:[%s194 + $0xf8] sm:$0xff] %v3588
        %3625 = vst [vmem:[%s194 + $0x100] sm:$0xff] %v3589
        %3626 = vst [vmem:[%s194 + $0x108] sm:$0xff] %v3590
        %3627 = vst [vmem:[%s194 + $0x110] sm:$0xff] %v3591
        %3628 = vst [vmem:[%s194 + $0x118] sm:$0xff] %v3592
        %v3629 = vld [vmem:[%s206 + $0x25] sm:$0xff]
        %v3630 = vld [vmem:[%s206 + $0x2d] sm:$0xff]
        %v3631 = vld [vmem:[%s206 + $0x35] sm:$0xff]
        %v3632 = vld [vmem:[%s206 + $0x3d] sm:$0xff]
        %v3633 = vld [vmem:[%s206 + $0x45] sm:$0xff]
        %v3634 = vld [vmem:[%s206 + $0x4d] sm:$0xff]
        %v3635 = vld [vmem:[%s206 + $0x55] sm:$0xff]
        %v3636 = vld [vmem:[%s206 + $0x5d] sm:$0xff]
        %v3637 = vld [vmem:[%s206 + $0x65] sm:$0xff]
        %v3638 = vld [vmem:[%s206 + $0x6d] sm:$0xff]
        %v3639 = vld [vmem:[%s206 + $0x75] sm:$0xff]
        %v3640 = vld [vmem:[%s206 + $0x7d] sm:$0xff]
        %v3641 = vld [vmem:[%s206 + $0x85] sm:$0xff]
        %v3642 = vld [vmem:[%s206 + $0x8d] sm:$0xff]
        %v3643 = vld [vmem:[%s206 + $0x95] sm:$0xff]
        %v3644 = vld [vmem:[%s206 + $0x9d] sm:$0xff]
        %v3645 = vld [vmem:[%s206 + $0xa5] sm:$0xff]
        %v3646 = vld [vmem:[%s206 + $0xad] sm:$0xff]
        %v3647 = vld [vmem:[%s206 + $0xb5] sm:$0xff]
        %v3648 = vld [vmem:[%s206 + $0xbd] sm:$0xff]
        %v3649 = vld [vmem:[%s206 + $0xc5] sm:$0xff]
        %v3650 = vld [vmem:[%s206 + $0xcd] sm:$0xff]
        %v3651 = vld [vmem:[%s206 + $0xd5] sm:$0xff]
        %v3652 = vld [vmem:[%s206 + $0xdd] sm:$0xff]
        %v3653 = vld [vmem:[%s206 + $0xe5] sm:$0xff]
        %v3654 = vld [vmem:[%s206 + $0xed] sm:$0xff]
        %v3655 = vld [vmem:[%s206 + $0xf5] sm:$0xff]
        %v3656 = vld [vmem:[%s206 + $0xfd] sm:$0xff]
        %v3657 = vld [vmem:[%s206 + $0x105] sm:$0xff]
        %v3658 = vld [vmem:[%s206 + $0x10d] sm:$0xff]
        %v3659 = vld [vmem:[%s206 + $0x115] sm:$0xff]
        %v3660 = vld [vmem:[%s206 + $0x11d] sm:$0xff]
        %v3661 = vld [vmem:[%s206 + $0x125] sm:$0xff]
        %v3662 = vld [vmem:[%s206 + $0x12d] sm:$0xff]
        %v3663 = vld [vmem:[%s206 + $0x135] sm:$0xff]
        %v3664 = vld [vmem:[%s206 + $0x13d] sm:$0xff]
        %s3665 = scalar_lea.vmem %s1, 56
        %v3666 = vld [vmem:[%s3665] sm:$0xff]
        %v3668 = vsel %vm245, %v3629, 0
        %v3671 = vsel %vm245, %v3630, 0
        %v3674 = vsel %vm245, %v3631, 0
        %v3677 = vsel %vm245, %v3632, 0
        %v3680 = vsel %vm245, %v3633, 0
        %v3683 = vsel %vm245, %v3634, 0
        %v3686 = vsel %vm245, %v3635, 0
        %v3689 = vsel %vm245, %v3636, 0
        %v3692 = vsel %vm245, %v3637, 0
        %v3695 = vsel %vm245, %v3638, 0
        %v3698 = vsel %vm245, %v3639, 0
        %v3701 = vsel %vm245, %v3640, 0
        %v3704 = vsel %vm245, %v3641, 0
        %v3707 = vsel %vm245, %v3642, 0
        %v3710 = vsel %vm245, %v3643, 0
        %v3713 = vsel %vm245, %v3644, 0
        %v3716 = vsel %vm245, %v3645, 0
        %v3719 = vsel %vm245, %v3646, 0
        %v3722 = vsel %vm245, %v3647, 0
        %v3725 = vsel %vm245, %v3648, 0
        %v3728 = vsel %vm245, %v3649, 0
        %v3731 = vsel %vm245, %v3650, 0
        %v3734 = vsel %vm245, %v3651, 0
        %v3737 = vsel %vm245, %v3652, 0
        %v3740 = vsel %vm245, %v3653, 0
        %v3743 = vsel %vm245, %v3654, 0
        %v3746 = vsel %vm245, %v3655, 0
        %v3749 = vsel %vm245, %v3656, 0
        %v3752 = vsel %vm245, %v3657, 0
        %v3755 = vsel %vm245, %v3658, 0
        %v3758 = vsel %vm245, %v3659, 0
        %v3761 = vsel %vm245, %v3660, 0
        %v3764 = vsel %vm245, %v3661, 0
        %v3767 = vsel %vm245, %v3662, 0
        %v3770 = vsel %vm245, %v3663, 0
        %v3773 = vsel %vm245, %v3664, 0
        %3775 = vmatprep.subr.mxu0 0.0
        %3776 = vmatpush1.msra.mxu0 %v3666
        %3777 = vmatprep.subr.mxu0 0.0
        %3778 = vmatpush1.msra.mxu0 0.0
        %3779 = vmatprep.subr.mxu0 0.0
        %3780 = vmatpush1.msra.mxu0 0.0
        %3781 = vmatprep.subr.mxu0 0.0
        %3782 = vmatpush1.msra.mxu0 0.0
        %3783 = vmatprep.subr.mxu0 0.0
        %3784 = vmatpush1.msra.mxu0 0.0
        %3785 = vmatprep.subr.mxu0 0.0
        %3786 = vmatpush1.msra.mxu0 0.0
        %3787 = vmatprep.subr.mxu0 0.0
        %3788 = vmatpush1.msra.mxu0 0.0
        %3789 = vmatprep.subr.mxu0 0.0
        %3790 = vmatpush1.msra.mxu0 0.0
        %3791 = vmatprep.subr.mxu0 0.0
        %3792 = vmatpush1.msra.mxu0 0.0
        %3793 = vmatprep.subr.mxu0 0.0
        %3794 = vmatpush1.msra.mxu0 0.0
        %3795 = vmatprep.subr.mxu0 0.0
        %3796 = vmatpush1.msra.mxu0 0.0
        %3797 = vmatprep.subr.mxu0 0.0
        %3798 = vmatpush1.msra.mxu0 0.0
        %3799 = vmatprep.subr.mxu0 0.0
        %3800 = vmatpush1.msra.mxu0 0.0
        %3801 = vmatprep.subr.mxu0 0.0
        %3802 = vmatpush1.msra.mxu0 0.0
        %3803 = vmatprep.subr.mxu0 0.0
        %3804 = vmatpush1.msra.mxu0 0.0
        %3805 = vmatprep.subr.mxu0 0.0
        %3806 = vmatpush1.msra.mxu0 0.0
        %3807 = vmatprep.subr.mxu0 0.0
        %3808 = vmatpush1.msra.mxu0 0.0
        %3809 = vmatprep.subr.mxu0 0.0
        %3810 = vmatpush1.msra.mxu0 0.0
        %3811 = vmatprep.subr.mxu0 0.0
        %3812 = vmatpush1.msra.mxu0 0.0
        %3813 = vmatprep.subr.mxu0 0.0
        %3814 = vmatpush1.msra.mxu0 0.0
        %3815 = vmatprep.subr.mxu0 0.0
        %3816 = vmatpush1.msra.mxu0 0.0
        %3817 = vmatprep.subr.mxu0 0.0
        %3818 = vmatpush1.msra.mxu0 0.0
        %3819 = vmatprep.subr.mxu0 0.0
        %3820 = vmatpush1.msra.mxu0 0.0
        %3821 = vmatprep.subr.mxu0 0.0
        %3822 = vmatpush1.msra.mxu0 0.0
        %3823 = vmatprep.subr.mxu0 0.0
        %3824 = vmatpush1.msra.mxu0 0.0
        %3825 = vmatprep.subr.mxu0 0.0
        %3826 = vmatpush1.msra.mxu0 0.0
        %3827 = vmatprep.subr.mxu0 0.0
        %3828 = vmatpush1.msra.mxu0 0.0
        %3829 = vmatprep.subr.mxu0 0.0
        %3830 = vmatpush1.msra.mxu0 0.0
        %3831 = vmatprep.subr.mxu0 0.0
        %3832 = vmatpush1.msra.mxu0 0.0
        %3833 = vmatprep.subr.mxu0 0.0
        %3834 = vmatpush1.msra.mxu0 0.0
        %3835 = vmatprep.subr.mxu0 0.0
        %3836 = vmatpush1.msra.mxu0 0.0
        %3837 = vmatprep.subr.mxu0 0.0
        %3838 = vmatpush1.msra.mxu0 0.0
        %3839 = vmatprep.mubr.f32.mxu0 0.0
        %3840 = vmatmul.mubr.f32.gmra.mrb[0].mxu0 %v3668
        %v3841 = vpop.f32.mrb[0].mxu0
        %v3842 = vadd.f32 0.0, %v3841
        %v3843 = vpop.f32.mrb[0].mxu0
        %3844 = vmatprep.mubr.f32.mxu0 0.0
        %3845 = vmatmul.mubr.f32.gmra.mrb[0].mxu0 %v3671
        %v3846 = vpop.f32.mrb[0].mxu0
        %v3847 = vadd.f32 0.0, %v3846
        %v3848 = vpop.f32.mrb[0].mxu0
        %3849 = vmatprep.mubr.f32.mxu0 0.0
        %3850 = vmatmul.mubr.f32.gmra.mrb[0].mxu0 %v3674
        %v3851 = vpop.f32.mrb[0].mxu0
        %v3852 = vadd.f32 0.0, %v3851
        %v3853 = vpop.f32.mrb[0].mxu0
        %3854 = vmatprep.mubr.f32.mxu0 0.0
        %3855 = vmatmul.mubr.f32.gmra.mrb[0].mxu0 %v3677
        %v3856 = vpop.f32.mrb[0].mxu0
        %v3857 = vadd.f32 0.0, %v3856
        %v3858 = vpop.f32.mrb[0].mxu0
        %3859 = vmatprep.mubr.f32.mxu0 0.0
        %3860 = vmatmul.mubr.f32.gmra.mrb[0].mxu0 %v3680
        %v3861 = vpop.f32.mrb[0].mxu0
        %v3862 = vadd.f32 0.0, %v3861
        %v3863 = vpop.f32.mrb[0].mxu0
        %3864 = vmatprep.mubr.f32.mxu0 0.0
        %3865 = vmatmul.mubr.f32.gmra.mrb[0].mxu0 %v3683
        %v3866 = vpop.f32.mrb[0].mxu0
        %v3867 = vadd.f32 0.0, %v3866
        %v3868 = vpop.f32.mrb[0].mxu0
        %3869 = vmatprep.mubr.f32.mxu0 0.0
        %3870 = vmatmul.mubr.f32.gmra.mrb[0].mxu0 %v3686
        %v3871 = vpop.f32.mrb[0].mxu0
        %v3872 = vadd.f32 0.0, %v3871
        %v3873 = vpop.f32.mrb[0].mxu0
        %3874 = vmatprep.mubr.f32.mxu0 0.0
        %3875 = vmatmul.mubr.f32.gmra.mrb[0].mxu0 %v3689
        %v3876 = vpop.f32.mrb[0].mxu0
        %v3877 = vadd.f32 0.0, %v3876
        %v3878 = vpop.f32.mrb[0].mxu0
        %3879 = vmatprep.mubr.f32.mxu0 0.0
        %3880 = vmatmul.mubr.f32.gmra.mrb[0].mxu0 %v3692
        %v3881 = vpop.f32.mrb[0].mxu0
        %v3882 = vadd.f32 0.0, %v3881
        %v3883 = vpop.f32.mrb[0].mxu0
        %3884 = vmatprep.mubr.f32.mxu0 0.0
        %3885 = vmatmul.mubr.f32.gmra.mrb[0].mxu0 %v3695
        %v3886 = vpop.f32.mrb[0].mxu0
        %v3887 = vadd.f32 0.0, %v3886
        %v3888 = vpop.f32.mrb[0].mxu0
        %3889 = vmatprep.mubr.f32.mxu0 0.0
        %3890 = vmatmul.mubr.f32.gmra.mrb[0].mxu0 %v3698
        %v3891 = vpop.f32.mrb[0].mxu0
        %v3892 = vadd.f32 0.0, %v3891
        %v3893 = vpop.f32.mrb[0].mxu0
        %3894 = vmatprep.mubr.f32.mxu0 0.0
        %3895 = vmatmul.mubr.f32.gmra.mrb[0].mxu0 %v3701
        %v3896 = vpop.f32.mrb[0].mxu0
        %v3897 = vadd.f32 0.0, %v3896
        %v3898 = vpop.f32.mrb[0].mxu0
        %3899 = vmatprep.mubr.f32.mxu0 0.0
        %3900 = vmatmul.mubr.f32.gmra.mrb[0].mxu0 %v3704
        %v3901 = vpop.f32.mrb[0].mxu0
        %v3902 = vadd.f32 0.0, %v3901
        %v3903 = vpop.f32.mrb[0].mxu0
        %3904 = vmatprep.mubr.f32.mxu0 0.0
        %3905 = vmatmul.mubr.f32.gmra.mrb[0].mxu0 %v3707
        %v3906 = vpop.f32.mrb[0].mxu0
        %v3907 = vadd.f32 0.0, %v3906
        %v3908 = vpop.f32.mrb[0].mxu0
        %3909 = vmatprep.mubr.f32.mxu0 0.0
        %3910 = vmatmul.mubr.f32.gmra.mrb[0].mxu0 %v3710
        %v3911 = vpop.f32.mrb[0].mxu0
        %v3912 = vadd.f32 0.0, %v3911
        %v3913 = vpop.f32.mrb[0].mxu0
        %3914 = vmatprep.mubr.f32.mxu0 0.0
        %3915 = vmatmul.mubr.f32.gmra.mrb[0].mxu0 %v3713
        %v3916 = vpop.f32.mrb[0].mxu0
        %v3917 = vadd.f32 0.0, %v3916
        %v3918 = vpop.f32.mrb[0].mxu0
        %3919 = vmatprep.mubr.f32.mxu0 0.0
        %3920 = vmatmul.mubr.f32.gmra.mrb[0].mxu0 %v3716
        %v3921 = vpop.f32.mrb[0].mxu0
        %v3922 = vadd.f32 0.0, %v3921
        %v3923 = vpop.f32.mrb[0].mxu0
        %3924 = vmatprep.mubr.f32.mxu0 0.0
        %3925 = vmatmul.mubr.f32.gmra.mrb[0].mxu0 %v3719
        %v3926 = vpop.f32.mrb[0].mxu0
        %v3927 = vadd.f32 0.0, %v3926
        %v3928 = vpop.f32.mrb[0].mxu0
        %3929 = vmatprep.mubr.f32.mxu0 0.0
        %3930 = vmatmul.mubr.f32.gmra.mrb[0].mxu0 %v3722
        %v3931 = vpop.f32.mrb[0].mxu0
        %v3932 = vadd.f32 0.0, %v3931
        %v3933 = vpop.f32.mrb[0].mxu0
        %3934 = vmatprep.mubr.f32.mxu0 0.0
        %3935 = vmatmul.mubr.f32.gmra.mrb[0].mxu0 %v3725
        %v3936 = vpop.f32.mrb[0].mxu0
        %v3937 = vadd.f32 0.0, %v3936
        %v3938 = vpop.f32.mrb[0].mxu0
        %3939 = vmatprep.mubr.f32.mxu0 0.0
        %3940 = vmatmul.mubr.f32.gmra.mrb[0].mxu0 %v3728
        %v3941 = vpop.f32.mrb[0].mxu0
        %v3942 = vadd.f32 0.0, %v3941
        %v3943 = vpop.f32.mrb[0].mxu0
        %3944 = vmatprep.mubr.f32.mxu0 0.0
        %3945 = vmatmul.mubr.f32.gmra.mrb[0].mxu0 %v3731
        %v3946 = vpop.f32.mrb[0].mxu0
        %v3947 = vadd.f32 0.0, %v3946
        %v3948 = vpop.f32.mrb[0].mxu0
        %3949 = vmatprep.mubr.f32.mxu0 0.0
        %3950 = vmatmul.mubr.f32.gmra.mrb[0].mxu0 %v3734
        %v3951 = vpop.f32.mrb[0].mxu0
        %v3952 = vadd.f32 0.0, %v3951
        %v3953 = vpop.f32.mrb[0].mxu0
        %3954 = vmatprep.mubr.f32.mxu0 0.0
        %3955 = vmatmul.mubr.f32.gmra.mrb[0].mxu0 %v3737
        %v3956 = vpop.f32.mrb[0].mxu0
        %v3957 = vadd.f32 0.0, %v3956
        %v3958 = vpop.f32.mrb[0].mxu0
        %3959 = vmatprep.mubr.f32.mxu0 0.0
        %3960 = vmatmul.mubr.f32.gmra.mrb[0].mxu0 %v3740
        %v3961 = vpop.f32.mrb[0].mxu0
        %v3962 = vadd.f32 0.0, %v3961
        %v3963 = vpop.f32.mrb[0].mxu0
        %3964 = vmatprep.mubr.f32.mxu0 0.0
        %3965 = vmatmul.mubr.f32.gmra.mrb[0].mxu0 %v3743
        %v3966 = vpop.f32.mrb[0].mxu0
        %v3967 = vadd.f32 0.0, %v3966
        %v3968 = vpop.f32.mrb[0].mxu0
        %3969 = vmatprep.mubr.f32.mxu0 0.0
        %3970 = vmatmul.mubr.f32.gmra.mrb[0].mxu0 %v3746
        %v3971 = vpop.f32.mrb[0].mxu0
        %v3972 = vadd.f32 0.0, %v3971
        %v3973 = vpop.f32.mrb[0].mxu0
        %3974 = vmatprep.mubr.f32.mxu0 0.0
        %3975 = vmatmul.mubr.f32.gmra.mrb[0].mxu0 %v3749
        %v3976 = vpop.f32.mrb[0].mxu0
        %v3977 = vadd.f32 0.0, %v3976
        %v3978 = vpop.f32.mrb[0].mxu0
        %3979 = vmatprep.mubr.f32.mxu0 0.0
        %3980 = vmatmul.mubr.f32.gmra.mrb[0].mxu0 %v3752
        %v3981 = vpop.f32.mrb[0].mxu0
        %v3982 = vadd.f32 0.0, %v3981
        %v3983 = vpop.f32.mrb[0].mxu0
        %3984 = vmatprep.mubr.f32.mxu0 0.0
        %3985 = vmatmul.mubr.f32.gmra.mrb[0].mxu0 %v3755
        %v3986 = vpop.f32.mrb[0].mxu0
        %v3987 = vadd.f32 0.0, %v3986
        %v3988 = vpop.f32.mrb[0].mxu0
        %3989 = vmatprep.mubr.f32.mxu0 0.0
        %3990 = vmatmul.mubr.f32.gmra.mrb[0].mxu0 %v3758
        %v3991 = vpop.f32.mrb[0].mxu0
        %v3992 = vadd.f32 0.0, %v3991
        %v3993 = vpop.f32.mrb[0].mxu0
        %3994 = vmatprep.mubr.f32.mxu0 0.0
        %3995 = vmatmul.mubr.f32.gmra.mrb[0].mxu0 %v3761
        %v3996 = vpop.f32.mrb[0].mxu0
        %v3997 = vadd.f32 0.0, %v3996
        %v3998 = vpop.f32.mrb[0].mxu0
        %3999 = vmatprep.mubr.f32.mxu0 0.0
        %4000 = vmatmul.mubr.f32.gmra.mrb[0].mxu0 %v3764
        %v4001 = vpop.f32.mrb[0].mxu0
        %v4002 = vadd.f32 0.0, %v4001
        %v4003 = vpop.f32.mrb[0].mxu0
        %4004 = vmatprep.mubr.f32.mxu0 0.0
        %4005 = vmatmul.mubr.f32.gmra.mrb[0].mxu0 %v3767
        %v4006 = vpop.f32.mrb[0].mxu0
        %v4007 = vadd.f32 0.0, %v4006
        %v4008 = vpop.f32.mrb[0].mxu0
        %4009 = vmatprep.mubr.f32.mxu0 0.0
        %4010 = vmatmul.mubr.f32.gmra.mrb[0].mxu0 %v3770
        %v4011 = vpop.f32.mrb[0].mxu0
        %v4012 = vadd.f32 0.0, %v4011
        %v4013 = vpop.f32.mrb[0].mxu0
        %4014 = vmatprep.mubr.f32.mxu0 0.0
        %4015 = vmatmul.mubr.f32.gmra.mrb[0].mxu0 %v3773
        %v4016 = vpop.f32.mrb[0].mxu0
        %v4017 = vadd.f32 0.0, %v4016
        %v4018 = vpop.f32.mrb[0].mxu0
        %4019 = vdwg.mxu0
        %v4020 = vld [vmem:[%s194] sm:$0xff]
        %v4021 = vld [vmem:[%s194 + $0x8] sm:$0xff]
        %v4022 = vld [vmem:[%s194 + $0x10] sm:$0xff]
        %v4023 = vld [vmem:[%s194 + $0x18] sm:$0xff]
        %v4024 = vld [vmem:[%s194 + $0x20] sm:$0xff]
        %v4025 = vld [vmem:[%s194 + $0x28] sm:$0xff]
        %v4026 = vld [vmem:[%s194 + $0x30] sm:$0xff]
        %v4027 = vld [vmem:[%s194 + $0x38] sm:$0xff]
        %v4028 = vld [vmem:[%s194 + $0x40] sm:$0xff]
        %v4029 = vld [vmem:[%s194 + $0x48] sm:$0xff]
        %v4030 = vld [vmem:[%s194 + $0x50] sm:$0xff]
        %v4031 = vld [vmem:[%s194 + $0x58] sm:$0xff]
        %v4032 = vld [vmem:[%s194 + $0x60] sm:$0xff]
        %v4033 = vld [vmem:[%s194 + $0x68] sm:$0xff]
        %v4034 = vld [vmem:[%s194 + $0x70] sm:$0xff]
        %v4035 = vld [vmem:[%s194 + $0x78] sm:$0xff]
        %v4036 = vld [vmem:[%s194 + $0x80] sm:$0xff]
        %v4037 = vld [vmem:[%s194 + $0x88] sm:$0xff]
        %v4038 = vld [vmem:[%s194 + $0x90] sm:$0xff]
        %v4039 = vld [vmem:[%s194 + $0x98] sm:$0xff]
        %v4040 = vld [vmem:[%s194 + $0xa0] sm:$0xff]
        %v4041 = vld [vmem:[%s194 + $0xa8] sm:$0xff]
        %v4042 = vld [vmem:[%s194 + $0xb0] sm:$0xff]
        %v4043 = vld [vmem:[%s194 + $0xb8] sm:$0xff]
        %v4044 = vld [vmem:[%s194 + $0xc0] sm:$0xff]
        %v4045 = vld [vmem:[%s194 + $0xc8] sm:$0xff]
        %v4046 = vld [vmem:[%s194 + $0xd0] sm:$0xff]
        %v4047 = vld [vmem:[%s194 + $0xd8] sm:$0xff]
        %v4048 = vld [vmem:[%s194 + $0xe0] sm:$0xff]
        %v4049 = vld [vmem:[%s194 + $0xe8] sm:$0xff]
        %v4050 = vld [vmem:[%s194 + $0xf0] sm:$0xff]
        %v4051 = vld [vmem:[%s194 + $0xf8] sm:$0xff]
        %v4052 = vld [vmem:[%s194 + $0x100] sm:$0xff]
        %v4053 = vld [vmem:[%s194 + $0x108] sm:$0xff]
        %v4054 = vld [vmem:[%s194 + $0x110] sm:$0xff]
        %v4055 = vld [vmem:[%s194 + $0x118] sm:$0xff]
        %v4056 = vadd.f32 %v4020, %v3842
        %v4057 = vadd.f32 %v4021, %v3847
        %v4058 = vadd.f32 %v4022, %v3852
        %v4059 = vadd.f32 %v4023, %v3857
        %v4060 = vadd.f32 %v4024, %v3862
        %v4061 = vadd.f32 %v4025, %v3867
        %v4062 = vadd.f32 %v4026, %v3872
        %v4063 = vadd.f32 %v4027, %v3877
        %v4064 = vadd.f32 %v4028, %v3882
        %v4065 = vadd.f32 %v4029, %v3887
        %v4066 = vadd.f32 %v4030, %v3892
        %v4067 = vadd.f32 %v4031, %v3897
        %v4068 = vadd.f32 %v4032, %v3902
        %v4069 = vadd.f32 %v4033, %v3907
        %v4070 = vadd.f32 %v4034, %v3912
        %v4071 = vadd.f32 %v4035, %v3917
        %v4072 = vadd.f32 %v4036, %v3922
        %v4073 = vadd.f32 %v4037, %v3927
        %v4074 = vadd.f32 %v4038, %v3932
        %v4075 = vadd.f32 %v4039, %v3937
        %v4076 = vadd.f32 %v4040, %v3942
        %v4077 = vadd.f32 %v4041, %v3947
        %v4078 = vadd.f32 %v4042, %v3952
        %v4079 = vadd.f32 %v4043, %v3957
        %v4080 = vadd.f32 %v4044, %v3962
        %v4081 = vadd.f32 %v4045, %v3967
        %v4082 = vadd.f32 %v4046, %v3972
        %v4083 = vadd.f32 %v4047, %v3977
        %v4084 = vadd.f32 %v4048, %v3982
        %v4085 = vadd.f32 %v4049, %v3987
        %v4086 = vadd.f32 %v4050, %v3992
        %v4087 = vadd.f32 %v4051, %v3997
        %v4088 = vadd.f32 %v4052, %v4002
        %v4089 = vadd.f32 %v4053, %v4007
        %v4090 = vadd.f32 %v4054, %v4012
        %v4091 = vadd.f32 %v4055, %v4017
        %4092 = vst [vmem:[%s194] sm:$0xff] %v4056
        %4093 = vst [vmem:[%s194 + $0x8] sm:$0xff] %v4057
        %4094 = vst [vmem:[%s194 + $0x10] sm:$0xff] %v4058
        %4095 = vst [vmem:[%s194 + $0x18] sm:$0xff] %v4059
        %4096 = vst [vmem:[%s194 + $0x20] sm:$0xff] %v4060
        %4097 = vst [vmem:[%s194 + $0x28] sm:$0xff] %v4061
        %4098 = vst [vmem:[%s194 + $0x30] sm:$0xff] %v4062
        %4099 = vst [vmem:[%s194 + $0x38] sm:$0xff] %v4063
        %4100 = vst [vmem:[%s194 + $0x40] sm:$0xff] %v4064
        %4101 = vst [vmem:[%s194 + $0x48] sm:$0xff] %v4065
        %4102 = vst [vmem:[%s194 + $0x50] sm:$0xff] %v4066
        %4103 = vst [vmem:[%s194 + $0x58] sm:$0xff] %v4067
        %4104 = vst [vmem:[%s194 + $0x60] sm:$0xff] %v4068
        %4105 = vst [vmem:[%s194 + $0x68] sm:$0xff] %v4069
        %4106 = vst [vmem:[%s194 + $0x70] sm:$0xff] %v4070
        %4107 = vst [vmem:[%s194 + $0x78] sm:$0xff] %v4071
        %4108 = vst [vmem:[%s194 + $0x80] sm:$0xff] %v4072
        %4109 = vst [vmem:[%s194 + $0x88] sm:$0xff] %v4073
        %4110 = vst [vmem:[%s194 + $0x90] sm:$0xff] %v4074
        %4111 = vst [vmem:[%s194 + $0x98] sm:$0xff] %v4075
        %4112 = vst [vmem:[%s194 + $0xa0] sm:$0xff] %v4076
        %4113 = vst [vmem:[%s194 + $0xa8] sm:$0xff] %v4077
        %4114 = vst [vmem:[%s194 + $0xb0] sm:$0xff] %v4078
        %4115 = vst [vmem:[%s194 + $0xb8] sm:$0xff] %v4079
        %4116 = vst [vmem:[%s194 + $0xc0] sm:$0xff] %v4080
        %4117 = vst [vmem:[%s194 + $0xc8] sm:$0xff] %v4081
        %4118 = vst [vmem:[%s194 + $0xd0] sm:$0xff] %v4082
        %4119 = vst [vmem:[%s194 + $0xd8] sm:$0xff] %v4083
        %4120 = vst [vmem:[%s194 + $0xe0] sm:$0xff] %v4084
        %4121 = vst [vmem:[%s194 + $0xe8] sm:$0xff] %v4085
        %4122 = vst [vmem:[%s194 + $0xf0] sm:$0xff] %v4086
        %4123 = vst [vmem:[%s194 + $0xf8] sm:$0xff] %v4087
        %4124 = vst [vmem:[%s194 + $0x100] sm:$0xff] %v4088
        %4125 = vst [vmem:[%s194 + $0x108] sm:$0xff] %v4089
        %4126 = vst [vmem:[%s194 + $0x110] sm:$0xff] %v4090
        %4127 = vst [vmem:[%s194 + $0x118] sm:$0xff] %v4091
        %v4128 = vld [vmem:[%s206 + $0x26] sm:$0xff]
        %v4129 = vld [vmem:[%s206 + $0x2e] sm:$0xff]
        %v4130 = vld [vmem:[%s206 + $0x36] sm:$0xff]
        %v4131 = vld [vmem:[%s206 + $0x3e] sm:$0xff]
        %v4132 = vld [vmem:[%s206 + $0x46] sm:$0xff]
        %v4133 = vld [vmem:[%s206 + $0x4e] sm:$0xff]
        %v4134 = vld [vmem:[%s206 + $0x56] sm:$0xff]
        %v4135 = vld [vmem:[%s206 + $0x5e] sm:$0xff]
        %v4136 = vld [vmem:[%s206 + $0x66] sm:$0xff]
        %v4137 = vld [vmem:[%s206 + $0x6e] sm:$0xff]
        %v4138 = vld [vmem:[%s206 + $0x76] sm:$0xff]
        %v4139 = vld [vmem:[%s206 + $0x7e] sm:$0xff]
        %v4140 = vld [vmem:[%s206 + $0x86] sm:$0xff]
        %v4141 = vld [vmem:[%s206 + $0x8e] sm:$0xff]
        %v4142 = vld [vmem:[%s206 + $0x96] sm:$0xff]
        %v4143 = vld [vmem:[%s206 + $0x9e] sm:$0xff]
        %v4144 = vld [vmem:[%s206 + $0xa6] sm:$0xff]
        %v4145 = vld [vmem:[%s206 + $0xae] sm:$0xff]
        %v4146 = vld [vmem:[%s206 + $0xb6] sm:$0xff]
        %v4147 = vld [vmem:[%s206 + $0xbe] sm:$0xff]
        %v4148 = vld [vmem:[%s206 + $0xc6] sm:$0xff]
        %v4149 = vld [vmem:[%s206 + $0xce] sm:$0xff]
        %v4150 = vld [vmem:[%s206 + $0xd6] sm:$0xff]
        %v4151 = vld [vmem:[%s206 + $0xde] sm:$0xff]
        %v4152 = vld [vmem:[%s206 + $0xe6] sm:$0xff]
        %v4153 = vld [vmem:[%s206 + $0xee] sm:$0xff]
        %v4154 = vld [vmem:[%s206 + $0xf6] sm:$0xff]
        %v4155 = vld [vmem:[%s206 + $0xfe] sm:$0xff]
        %v4156 = vld [vmem:[%s206 + $0x106] sm:$0xff]
        %v4157 = vld [vmem:[%s206 + $0x10e] sm:$0xff]
        %v4158 = vld [vmem:[%s206 + $0x116] sm:$0xff]
        %v4159 = vld [vmem:[%s206 + $0x11e] sm:$0xff]
        %v4160 = vld [vmem:[%s206 + $0x126] sm:$0xff]
        %v4161 = vld [vmem:[%s206 + $0x12e] sm:$0xff]
        %v4162 = vld [vmem:[%s206 + $0x136] sm:$0xff]
        %v4163 = vld [vmem:[%s206 + $0x13e] sm:$0xff]
        %s4164 = scalar_lea.vmem %s1, 64
        %v4165 = vld [vmem:[%s4164] sm:$0xff]
        %v4167 = vsel %vm245, %v4128, 0
        %v4170 = vsel %vm245, %v4129, 0
        %v4173 = vsel %vm245, %v4130, 0
        %v4176 = vsel %vm245, %v4131, 0
        %v4179 = vsel %vm245, %v4132, 0
        %v4182 = vsel %vm245, %v4133, 0
        %v4185 = vsel %vm245, %v4134, 0
        %v4188 = vsel %vm245, %v4135, 0
        %v4191 = vsel %vm245, %v4136, 0
        %v4194 = vsel %vm245, %v4137, 0
        %v4197 = vsel %vm245, %v4138, 0
        %v4200 = vsel %vm245, %v4139, 0
        %v4203 = vsel %vm245, %v4140, 0
        %v4206 = vsel %vm245, %v4141, 0
        %v4209 = vsel %vm245, %v4142, 0
        %v4212 = vsel %vm245, %v4143, 0
        %v4215 = vsel %vm245, %v4144, 0
        %v4218 = vsel %vm245, %v4145, 0
        %v4221 = vsel %vm245, %v4146, 0
        %v4224 = vsel %vm245, %v4147, 0
        %v4227 = vsel %vm245, %v4148, 0
        %v4230 = vsel %vm245, %v4149, 0
        %v4233 = vsel %vm245, %v4150, 0
        %v4236 = vsel %vm245, %v4151, 0
        %v4239 = vsel %vm245, %v4152, 0
        %v4242 = vsel %vm245, %v4153, 0
        %v4245 = vsel %vm245, %v4154, 0
        %v4248 = vsel %vm245, %v4155, 0
        %v4251 = vsel %vm245, %v4156, 0
        %v4254 = vsel %vm245, %v4157, 0
        %v4257 = vsel %vm245, %v4158, 0
        %v4260 = vsel %vm245, %v4159, 0
        %v4263 = vsel %vm245, %v4160, 0
        %v4266 = vsel %vm245, %v4161, 0
        %v4269 = vsel %vm245, %v4162, 0
        %v4272 = vsel %vm245, %v4163, 0
        %4274 = vmatprep.subr.mxu0 0.0
        %4275 = vmatpush1.msra.mxu0 %v4165
        %4276 = vmatprep.subr.mxu0 0.0
        %4277 = vmatpush1.msra.mxu0 0.0
        %4278 = vmatprep.subr.mxu0 0.0
        %4279 = vmatpush1.msra.mxu0 0.0
        %4280 = vmatprep.subr.mxu0 0.0
        %4281 = vmatpush1.msra.mxu0 0.0
        %4282 = vmatprep.subr.mxu0 0.0
        %4283 = vmatpush1.msra.mxu0 0.0
        %4284 = vmatprep.subr.mxu0 0.0
        %4285 = vmatpush1.msra.mxu0 0.0
        %4286 = vmatprep.subr.mxu0 0.0
        %4287 = vmatpush1.msra.mxu0 0.0
        %4288 = vmatprep.subr.mxu0 0.0
        %4289 = vmatpush1.msra.mxu0 0.0
        %4290 = vmatprep.subr.mxu0 0.0
        %4291 = vmatpush1.msra.mxu0 0.0
        %4292 = vmatprep.subr.mxu0 0.0
        %4293 = vmatpush1.msra.mxu0 0.0
        %4294 = vmatprep.subr.mxu0 0.0
        %4295 = vmatpush1.msra.mxu0 0.0
        %4296 = vmatprep.subr.mxu0 0.0
        %4297 = vmatpush1.msra.mxu0 0.0
        %4298 = vmatprep.subr.mxu0 0.0
        %4299 = vmatpush1.msra.mxu0 0.0
        %4300 = vmatprep.subr.mxu0 0.0
        %4301 = vmatpush1.msra.mxu0 0.0
        %4302 = vmatprep.subr.mxu0 0.0
        %4303 = vmatpush1.msra.mxu0 0.0
        %4304 = vmatprep.subr.mxu0 0.0
        %4305 = vmatpush1.msra.mxu0 0.0
        %4306 = vmatprep.subr.mxu0 0.0
        %4307 = vmatpush1.msra.mxu0 0.0
        %4308 = vmatprep.subr.mxu0 0.0
        %4309 = vmatpush1.msra.mxu0 0.0
        %4310 = vmatprep.subr.mxu0 0.0
        %4311 = vmatpush1.msra.mxu0 0.0
        %4312 = vmatprep.subr.mxu0 0.0
        %4313 = vmatpush1.msra.mxu0 0.0
        %4314 = vmatprep.subr.mxu0 0.0
        %4315 = vmatpush1.msra.mxu0 0.0
        %4316 = vmatprep.subr.mxu0 0.0
        %4317 = vmatpush1.msra.mxu0 0.0
        %4318 = vmatprep.subr.mxu0 0.0
        %4319 = vmatpush1.msra.mxu0 0.0
        %4320 = vmatprep.subr.mxu0 0.0
        %4321 = vmatpush1.msra.mxu0 0.0
        %4322 = vmatprep.subr.mxu0 0.0
        %4323 = vmatpush1.msra.mxu0 0.0
        %4324 = vmatprep.subr.mxu0 0.0
        %4325 = vmatpush1.msra.mxu0 0.0
        %4326 = vmatprep.subr.mxu0 0.0
        %4327 = vmatpush1.msra.mxu0 0.0
        %4328 = vmatprep.subr.mxu0 0.0
        %4329 = vmatpush1.msra.mxu0 0.0
        %4330 = vmatprep.subr.mxu0 0.0
        %4331 = vmatpush1.msra.mxu0 0.0
        %4332 = vmatprep.subr.mxu0 0.0
        %4333 = vmatpush1.msra.mxu0 0.0
        %4334 = vmatprep.subr.mxu0 0.0
        %4335 = vmatpush1.msra.mxu0 0.0
        %4336 = vmatprep.subr.mxu0 0.0
        %4337 = vmatpush1.msra.mxu0 0.0
        %4338 = vmatprep.mubr.f32.mxu0 0.0
        %4339 = vmatmul.mubr.f32.gmra.mrb[0].mxu0 %v4167
        %v4340 = vpop.f32.mrb[0].mxu0
        %v4341 = vadd.f32 0.0, %v4340
        %v4342 = vpop.f32.mrb[0].mxu0
        %4343 = vmatprep.mubr.f32.mxu0 0.0
        %4344 = vmatmul.mubr.f32.gmra.mrb[0].mxu0 %v4170
        %v4345 = vpop.f32.mrb[0].mxu0
        %v4346 = vadd.f32 0.0, %v4345
        %v4347 = vpop.f32.mrb[0].mxu0
        %4348 = vmatprep.mubr.f32.mxu0 0.0
        %4349 = vmatmul.mubr.f32.gmra.mrb[0].mxu0 %v4173
        %v4350 = vpop.f32.mrb[0].mxu0
        %v4351 = vadd.f32 0.0, %v4350
        %v4352 = vpop.f32.mrb[0].mxu0
        %4353 = vmatprep.mubr.f32.mxu0 0.0
        %4354 = vmatmul.mubr.f32.gmra.mrb[0].mxu0 %v4176
        %v4355 = vpop.f32.mrb[0].mxu0
        %v4356 = vadd.f32 0.0, %v4355
        %v4357 = vpop.f32.mrb[0].mxu0
        %4358 = vmatprep.mubr.f32.mxu0 0.0
        %4359 = vmatmul.mubr.f32.gmra.mrb[0].mxu0 %v4179
        %v4360 = vpop.f32.mrb[0].mxu0
        %v4361 = vadd.f32 0.0, %v4360
        %v4362 = vpop.f32.mrb[0].mxu0
        %4363 = vmatprep.mubr.f32.mxu0 0.0
        %4364 = vmatmul.mubr.f32.gmra.mrb[0].mxu0 %v4182
        %v4365 = vpop.f32.mrb[0].mxu0
        %v4366 = vadd.f32 0.0, %v4365
        %v4367 = vpop.f32.mrb[0].mxu0
        %4368 = vmatprep.mubr.f32.mxu0 0.0
        %4369 = vmatmul.mubr.f32.gmra.mrb[0].mxu0 %v4185
        %v4370 = vpop.f32.mrb[0].mxu0
        %v4371 = vadd.f32 0.0, %v4370
        %v4372 = vpop.f32.mrb[0].mxu0
        %4373 = vmatprep.mubr.f32.mxu0 0.0
        %4374 = vmatmul.mubr.f32.gmra.mrb[0].mxu0 %v4188
        %v4375 = vpop.f32.mrb[0].mxu0
        %v4376 = vadd.f32 0.0, %v4375
        %v4377 = vpop.f32.mrb[0].mxu0
        %4378 = vmatprep.mubr.f32.mxu0 0.0
        %4379 = vmatmul.mubr.f32.gmra.mrb[0].mxu0 %v4191
        %v4380 = vpop.f32.mrb[0].mxu0
        %v4381 = vadd.f32 0.0, %v4380
        %v4382 = vpop.f32.mrb[0].mxu0
        %4383 = vmatprep.mubr.f32.mxu0 0.0
        %4384 = vmatmul.mubr.f32.gmra.mrb[0].mxu0 %v4194
        %v4385 = vpop.f32.mrb[0].mxu0
        %v4386 = vadd.f32 0.0, %v4385
        %v4387 = vpop.f32.mrb[0].mxu0
        %4388 = vmatprep.mubr.f32.mxu0 0.0
        %4389 = vmatmul.mubr.f32.gmra.mrb[0].mxu0 %v4197
        %v4390 = vpop.f32.mrb[0].mxu0
        %v4391 = vadd.f32 0.0, %v4390
        %v4392 = vpop.f32.mrb[0].mxu0
        %4393 = vmatprep.mubr.f32.mxu0 0.0
        %4394 = vmatmul.mubr.f32.gmra.mrb[0].mxu0 %v4200
        %v4395 = vpop.f32.mrb[0].mxu0
        %v4396 = vadd.f32 0.0, %v4395
        %v4397 = vpop.f32.mrb[0].mxu0
        %4398 = vmatprep.mubr.f32.mxu0 0.0
        %4399 = vmatmul.mubr.f32.gmra.mrb[0].mxu0 %v4203
        %v4400 = vpop.f32.mrb[0].mxu0
        %v4401 = vadd.f32 0.0, %v4400
        %v4402 = vpop.f32.mrb[0].mxu0
        %4403 = vmatprep.mubr.f32.mxu0 0.0
        %4404 = vmatmul.mubr.f32.gmra.mrb[0].mxu0 %v4206
        %v4405 = vpop.f32.mrb[0].mxu0
        %v4406 = vadd.f32 0.0, %v4405
        %v4407 = vpop.f32.mrb[0].mxu0
        %4408 = vmatprep.mubr.f32.mxu0 0.0
        %4409 = vmatmul.mubr.f32.gmra.mrb[0].mxu0 %v4209
        %v4410 = vpop.f32.mrb[0].mxu0
        %v4411 = vadd.f32 0.0, %v4410
        %v4412 = vpop.f32.mrb[0].mxu0
        %4413 = vmatprep.mubr.f32.mxu0 0.0
        %4414 = vmatmul.mubr.f32.gmra.mrb[0].mxu0 %v4212
        %v4415 = vpop.f32.mrb[0].mxu0
        %v4416 = vadd.f32 0.0, %v4415
        %v4417 = vpop.f32.mrb[0].mxu0
        %4418 = vmatprep.mubr.f32.mxu0 0.0
        %4419 = vmatmul.mubr.f32.gmra.mrb[0].mxu0 %v4215
        %v4420 = vpop.f32.mrb[0].mxu0
        %v4421 = vadd.f32 0.0, %v4420
        %v4422 = vpop.f32.mrb[0].mxu0
        %4423 = vmatprep.mubr.f32.mxu0 0.0
        %4424 = vmatmul.mubr.f32.gmra.mrb[0].mxu0 %v4218
        %v4425 = vpop.f32.mrb[0].mxu0
        %v4426 = vadd.f32 0.0, %v4425
        %v4427 = vpop.f32.mrb[0].mxu0
        %4428 = vmatprep.mubr.f32.mxu0 0.0
        %4429 = vmatmul.mubr.f32.gmra.mrb[0].mxu0 %v4221
        %v4430 = vpop.f32.mrb[0].mxu0
        %v4431 = vadd.f32 0.0, %v4430
        %v4432 = vpop.f32.mrb[0].mxu0
        %4433 = vmatprep.mubr.f32.mxu0 0.0
        %4434 = vmatmul.mubr.f32.gmra.mrb[0].mxu0 %v4224
        %v4435 = vpop.f32.mrb[0].mxu0
        %v4436 = vadd.f32 0.0, %v4435
        %v4437 = vpop.f32.mrb[0].mxu0
        %4438 = vmatprep.mubr.f32.mxu0 0.0
        %4439 = vmatmul.mubr.f32.gmra.mrb[0].mxu0 %v4227
        %v4440 = vpop.f32.mrb[0].mxu0
        %v4441 = vadd.f32 0.0, %v4440
        %v4442 = vpop.f32.mrb[0].mxu0
        %4443 = vmatprep.mubr.f32.mxu0 0.0
        %4444 = vmatmul.mubr.f32.gmra.mrb[0].mxu0 %v4230
        %v4445 = vpop.f32.mrb[0].mxu0
        %v4446 = vadd.f32 0.0, %v4445
        %v4447 = vpop.f32.mrb[0].mxu0
        %4448 = vmatprep.mubr.f32.mxu0 0.0
        %4449 = vmatmul.mubr.f32.gmra.mrb[0].mxu0 %v4233
        %v4450 = vpop.f32.mrb[0].mxu0
        %v4451 = vadd.f32 0.0, %v4450
        %v4452 = vpop.f32.mrb[0].mxu0
        %4453 = vmatprep.mubr.f32.mxu0 0.0
        %4454 = vmatmul.mubr.f32.gmra.mrb[0].mxu0 %v4236
        %v4455 = vpop.f32.mrb[0].mxu0
        %v4456 = vadd.f32 0.0, %v4455
        %v4457 = vpop.f32.mrb[0].mxu0
        %4458 = vmatprep.mubr.f32.mxu0 0.0
        %4459 = vmatmul.mubr.f32.gmra.mrb[0].mxu0 %v4239
        %v4460 = vpop.f32.mrb[0].mxu0
        %v4461 = vadd.f32 0.0, %v4460
        %v4462 = vpop.f32.mrb[0].mxu0
        %4463 = vmatprep.mubr.f32.mxu0 0.0
        %4464 = vmatmul.mubr.f32.gmra.mrb[0].mxu0 %v4242
        %v4465 = vpop.f32.mrb[0].mxu0
        %v4466 = vadd.f32 0.0, %v4465
        %v4467 = vpop.f32.mrb[0].mxu0
        %4468 = vmatprep.mubr.f32.mxu0 0.0
        %4469 = vmatmul.mubr.f32.gmra.mrb[0].mxu0 %v4245
        %v4470 = vpop.f32.mrb[0].mxu0
        %v4471 = vadd.f32 0.0, %v4470
        %v4472 = vpop.f32.mrb[0].mxu0
        %4473 = vmatprep.mubr.f32.mxu0 0.0
        %4474 = vmatmul.mubr.f32.gmra.mrb[0].mxu0 %v4248
        %v4475 = vpop.f32.mrb[0].mxu0
        %v4476 = vadd.f32 0.0, %v4475
        %v4477 = vpop.f32.mrb[0].mxu0
        %4478 = vmatprep.mubr.f32.mxu0 0.0
        %4479 = vmatmul.mubr.f32.gmra.mrb[0].mxu0 %v4251
        %v4480 = vpop.f32.mrb[0].mxu0
        %v4481 = vadd.f32 0.0, %v4480
        %v4482 = vpop.f32.mrb[0].mxu0
        %4483 = vmatprep.mubr.f32.mxu0 0.0
        %4484 = vmatmul.mubr.f32.gmra.mrb[0].mxu0 %v4254
        %v4485 = vpop.f32.mrb[0].mxu0
        %v4486 = vadd.f32 0.0, %v4485
        %v4487 = vpop.f32.mrb[0].mxu0
        %4488 = vmatprep.mubr.f32.mxu0 0.0
        %4489 = vmatmul.mubr.f32.gmra.mrb[0].mxu0 %v4257
        %v4490 = vpop.f32.mrb[0].mxu0
        %v4491 = vadd.f32 0.0, %v4490
        %v4492 = vpop.f32.mrb[0].mxu0
        %4493 = vmatprep.mubr.f32.mxu0 0.0
        %4494 = vmatmul.mubr.f32.gmra.mrb[0].mxu0 %v4260
        %v4495 = vpop.f32.mrb[0].mxu0
        %v4496 = vadd.f32 0.0, %v4495
        %v4497 = vpop.f32.mrb[0].mxu0
        %4498 = vmatprep.mubr.f32.mxu0 0.0
        %4499 = vmatmul.mubr.f32.gmra.mrb[0].mxu0 %v4263
        %v4500 = vpop.f32.mrb[0].mxu0
        %v4501 = vadd.f32 0.0, %v4500
        %v4502 = vpop.f32.mrb[0].mxu0
        %4503 = vmatprep.mubr.f32.mxu0 0.0
        %4504 = vmatmul.mubr.f32.gmra.mrb[0].mxu0 %v4266
        %v4505 = vpop.f32.mrb[0].mxu0
        %v4506 = vadd.f32 0.0, %v4505
        %v4507 = vpop.f32.mrb[0].mxu0
        %4508 = vmatprep.mubr.f32.mxu0 0.0
        %4509 = vmatmul.mubr.f32.gmra.mrb[0].mxu0 %v4269
        %v4510 = vpop.f32.mrb[0].mxu0
        %v4511 = vadd.f32 0.0, %v4510
        %v4512 = vpop.f32.mrb[0].mxu0
        %4513 = vmatprep.mubr.f32.mxu0 0.0
        %4514 = vmatmul.mubr.f32.gmra.mrb[0].mxu0 %v4272
        %v4515 = vpop.f32.mrb[0].mxu0
        %v4516 = vadd.f32 0.0, %v4515
        %v4517 = vpop.f32.mrb[0].mxu0
        %4518 = vdwg.mxu0
        %v4519 = vld [vmem:[%s194] sm:$0xff]
        %v4520 = vld [vmem:[%s194 + $0x8] sm:$0xff]
        %v4521 = vld [vmem:[%s194 + $0x10] sm:$0xff]
        %v4522 = vld [vmem:[%s194 + $0x18] sm:$0xff]
        %v4523 = vld [vmem:[%s194 + $0x20] sm:$0xff]
        %v4524 = vld [vmem:[%s194 + $0x28] sm:$0xff]
        %v4525 = vld [vmem:[%s194 + $0x30] sm:$0xff]
        %v4526 = vld [vmem:[%s194 + $0x38] sm:$0xff]
        %v4527 = vld [vmem:[%s194 + $0x40] sm:$0xff]
        %v4528 = vld [vmem:[%s194 + $0x48] sm:$0xff]
        %v4529 = vld [vmem:[%s194 + $0x50] sm:$0xff]
        %v4530 = vld [vmem:[%s194 + $0x58] sm:$0xff]
        %v4531 = vld [vmem:[%s194 + $0x60] sm:$0xff]
        %v4532 = vld [vmem:[%s194 + $0x68] sm:$0xff]
        %v4533 = vld [vmem:[%s194 + $0x70] sm:$0xff]
        %v4534 = vld [vmem:[%s194 + $0x78] sm:$0xff]
        %v4535 = vld [vmem:[%s194 + $0x80] sm:$0xff]
        %v4536 = vld [vmem:[%s194 + $0x88] sm:$0xff]
        %v4537 = vld [vmem:[%s194 + $0x90] sm:$0xff]
        %v4538 = vld [vmem:[%s194 + $0x98] sm:$0xff]
        %v4539 = vld [vmem:[%s194 + $0xa0] sm:$0xff]
        %v4540 = vld [vmem:[%s194 + $0xa8] sm:$0xff]
        %v4541 = vld [vmem:[%s194 + $0xb0] sm:$0xff]
        %v4542 = vld [vmem:[%s194 + $0xb8] sm:$0xff]
        %v4543 = vld [vmem:[%s194 + $0xc0] sm:$0xff]
        %v4544 = vld [vmem:[%s194 + $0xc8] sm:$0xff]
        %v4545 = vld [vmem:[%s194 + $0xd0] sm:$0xff]
        %v4546 = vld [vmem:[%s194 + $0xd8] sm:$0xff]
        %v4547 = vld [vmem:[%s194 + $0xe0] sm:$0xff]
        %v4548 = vld [vmem:[%s194 + $0xe8] sm:$0xff]
        %v4549 = vld [vmem:[%s194 + $0xf0] sm:$0xff]
        %v4550 = vld [vmem:[%s194 + $0xf8] sm:$0xff]
        %v4551 = vld [vmem:[%s194 + $0x100] sm:$0xff]
        %v4552 = vld [vmem:[%s194 + $0x108] sm:$0xff]
        %v4553 = vld [vmem:[%s194 + $0x110] sm:$0xff]
        %v4554 = vld [vmem:[%s194 + $0x118] sm:$0xff]
        %v4555 = vadd.f32 %v4519, %v4341
        %v4556 = vadd.f32 %v4520, %v4346
        %v4557 = vadd.f32 %v4521, %v4351
        %v4558 = vadd.f32 %v4522, %v4356
        %v4559 = vadd.f32 %v4523, %v4361
        %v4560 = vadd.f32 %v4524, %v4366
        %v4561 = vadd.f32 %v4525, %v4371
        %v4562 = vadd.f32 %v4526, %v4376
        %v4563 = vadd.f32 %v4527, %v4381
        %v4564 = vadd.f32 %v4528, %v4386
        %v4565 = vadd.f32 %v4529, %v4391
        %v4566 = vadd.f32 %v4530, %v4396
        %v4567 = vadd.f32 %v4531, %v4401
        %v4568 = vadd.f32 %v4532, %v4406
        %v4569 = vadd.f32 %v4533, %v4411
        %v4570 = vadd.f32 %v4534, %v4416
        %v4571 = vadd.f32 %v4535, %v4421
        %v4572 = vadd.f32 %v4536, %v4426
        %v4573 = vadd.f32 %v4537, %v4431
        %v4574 = vadd.f32 %v4538, %v4436
        %v4575 = vadd.f32 %v4539, %v4441
        %v4576 = vadd.f32 %v4540, %v4446
        %v4577 = vadd.f32 %v4541, %v4451
        %v4578 = vadd.f32 %v4542, %v4456
        %v4579 = vadd.f32 %v4543, %v4461
        %v4580 = vadd.f32 %v4544, %v4466
        %v4581 = vadd.f32 %v4545, %v4471
        %v4582 = vadd.f32 %v4546, %v4476
        %v4583 = vadd.f32 %v4547, %v4481
        %v4584 = vadd.f32 %v4548, %v4486
        %v4585 = vadd.f32 %v4549, %v4491
        %v4586 = vadd.f32 %v4550, %v4496
        %v4587 = vadd.f32 %v4551, %v4501
        %v4588 = vadd.f32 %v4552, %v4506
        %v4589 = vadd.f32 %v4553, %v4511
        %v4590 = vadd.f32 %v4554, %v4516
        %4591 = vst [vmem:[%s194] sm:$0xff] %v4555
        %4592 = vst [vmem:[%s194 + $0x8] sm:$0xff] %v4556
        %4593 = vst [vmem:[%s194 + $0x10] sm:$0xff] %v4557
        %4594 = vst [vmem:[%s194 + $0x18] sm:$0xff] %v4558
        %4595 = vst [vmem:[%s194 + $0x20] sm:$0xff] %v4559
        %4596 = vst [vmem:[%s194 + $0x28] sm:$0xff] %v4560
        %4597 = vst [vmem:[%s194 + $0x30] sm:$0xff] %v4561
        %4598 = vst [vmem:[%s194 + $0x38] sm:$0xff] %v4562
        %4599 = vst [vmem:[%s194 + $0x40] sm:$0xff] %v4563
        %4600 = vst [vmem:[%s194 + $0x48] sm:$0xff] %v4564
        %4601 = vst [vmem:[%s194 + $0x50] sm:$0xff] %v4565
        %4602 = vst [vmem:[%s194 + $0x58] sm:$0xff] %v4566
        %4603 = vst [vmem:[%s194 + $0x60] sm:$0xff] %v4567
        %4604 = vst [vmem:[%s194 + $0x68] sm:$0xff] %v4568
        %4605 = vst [vmem:[%s194 + $0x70] sm:$0xff] %v4569
        %4606 = vst [vmem:[%s194 + $0x78] sm:$0xff] %v4570
        %4607 = vst [vmem:[%s194 + $0x80] sm:$0xff] %v4571
        %4608 = vst [vmem:[%s194 + $0x88] sm:$0xff] %v4572
        %4609 = vst [vmem:[%s194 + $0x90] sm:$0xff] %v4573
        %4610 = vst [vmem:[%s194 + $0x98] sm:$0xff] %v4574
        %4611 = vst [vmem:[%s194 + $0xa0] sm:$0xff] %v4575
        %4612 = vst [vmem:[%s194 + $0xa8] sm:$0xff] %v4576
        %4613 = vst [vmem:[%s194 + $0xb0] sm:$0xff] %v4577
        %4614 = vst [vmem:[%s194 + $0xb8] sm:$0xff] %v4578
        %4615 = vst [vmem:[%s194 + $0xc0] sm:$0xff] %v4579
        %4616 = vst [vmem:[%s194 + $0xc8] sm:$0xff] %v4580
        %4617 = vst [vmem:[%s194 + $0xd0] sm:$0xff] %v4581
        %4618 = vst [vmem:[%s194 + $0xd8] sm:$0xff] %v4582
        %4619 = vst [vmem:[%s194 + $0xe0] sm:$0xff] %v4583
        %4620 = vst [vmem:[%s194 + $0xe8] sm:$0xff] %v4584
        %4621 = vst [vmem:[%s194 + $0xf0] sm:$0xff] %v4585
        %4622 = vst [vmem:[%s194 + $0xf8] sm:$0xff] %v4586
        %4623 = vst [vmem:[%s194 + $0x100] sm:$0xff] %v4587
        %4624 = vst [vmem:[%s194 + $0x108] sm:$0xff] %v4588
        %4625 = vst [vmem:[%s194 + $0x110] sm:$0xff] %v4589
        %4626 = vst [vmem:[%s194 + $0x118] sm:$0xff] %v4590
        %v4627 = vld [vmem:[%s194] sm:$0xff]
        %v4628 = vld [vmem:[%s194 + $0x8] sm:$0xff]
        %v4629 = vld [vmem:[%s194 + $0x10] sm:$0xff]
        %v4630 = vld [vmem:[%s194 + $0x18] sm:$0xff]
        %v4631 = vld [vmem:[%s194 + $0x20] sm:$0xff]
        %v4632 = vld [vmem:[%s194 + $0x28] sm:$0xff]
        %v4633 = vld [vmem:[%s194 + $0x30] sm:$0xff]
        %v4634 = vld [vmem:[%s194 + $0x38] sm:$0xff]
        %v4635 = vld [vmem:[%s194 + $0x40] sm:$0xff]
        %v4636 = vld [vmem:[%s194 + $0x48] sm:$0xff]
        %v4637 = vld [vmem:[%s194 + $0x50] sm:$0xff]
        %v4638 = vld [vmem:[%s194 + $0x58] sm:$0xff]
        %v4639 = vld [vmem:[%s194 + $0x60] sm:$0xff]
        %v4640 = vld [vmem:[%s194 + $0x68] sm:$0xff]
        %v4641 = vld [vmem:[%s194 + $0x70] sm:$0xff]
        %v4642 = vld [vmem:[%s194 + $0x78] sm:$0xff]
        %v4643 = vld [vmem:[%s194 + $0x80] sm:$0xff]
        %v4644 = vld [vmem:[%s194 + $0x88] sm:$0xff]
        %v4645 = vld [vmem:[%s194 + $0x90] sm:$0xff]
        %v4646 = vld [vmem:[%s194 + $0x98] sm:$0xff]
        %v4647 = vld [vmem:[%s194 + $0xa0] sm:$0xff]
        %v4648 = vld [vmem:[%s194 + $0xa8] sm:$0xff]
        %v4649 = vld [vmem:[%s194 + $0xb0] sm:$0xff]
        %v4650 = vld [vmem:[%s194 + $0xb8] sm:$0xff]
        %v4651 = vld [vmem:[%s194 + $0xc0] sm:$0xff]
        %v4652 = vld [vmem:[%s194 + $0xc8] sm:$0xff]
        %v4653 = vld [vmem:[%s194 + $0xd0] sm:$0xff]
        %v4654 = vld [vmem:[%s194 + $0xd8] sm:$0xff]
        %v4655 = vld [vmem:[%s194 + $0xe0] sm:$0xff]
        %v4656 = vld [vmem:[%s194 + $0xe8] sm:$0xff]
        %v4657 = vld [vmem:[%s194 + $0xf0] sm:$0xff]
        %v4658 = vld [vmem:[%s194 + $0xf8] sm:$0xff]
        %v4659 = vld [vmem:[%s194 + $0x100] sm:$0xff]
        %v4660 = vld [vmem:[%s194 + $0x108] sm:$0xff]
        %v4661 = vld [vmem:[%s194 + $0x110] sm:$0xff]
        %v4662 = vld [vmem:[%s194 + $0x118] sm:$0xff]
        %v4663 = vld [vmem:[%s2] sm:$0xff]
        %v4664 = vld [vmem:[%s2 + $0x8] sm:$0xff]
        %v4665 = vld [vmem:[%s2 + $0x10] sm:$0xff]
        %v4666 = vld [vmem:[%s2 + $0x18] sm:$0xff]
        %v4667 = vld [vmem:[%s2 + $0x20] sm:$0xff]
        %v4668 = vld [vmem:[%s2 + $0x28] sm:$0xff]
        %v4669 = vld [vmem:[%s2 + $0x30] sm:$0xff]
        %v4670 = vld [vmem:[%s2 + $0x38] sm:$0xff]
        %v4671 = vld [vmem:[%s2 + $0x40] sm:$0xff]
        %v4672 = vld [vmem:[%s2 + $0x48] sm:$0xff]
        %v4673 = vld [vmem:[%s2 + $0x50] sm:$0xff]
        %v4674 = vld [vmem:[%s2 + $0x58] sm:$0xff]
        %v4675 = vld [vmem:[%s2 + $0x60] sm:$0xff]
        %v4676 = vld [vmem:[%s2 + $0x68] sm:$0xff]
        %v4677 = vld [vmem:[%s2 + $0x70] sm:$0xff]
        %v4678 = vld [vmem:[%s2 + $0x78] sm:$0xff]
        %v4679 = vld [vmem:[%s2 + $0x80] sm:$0xff]
        %v4680 = vld [vmem:[%s2 + $0x88] sm:$0xff]
        %v4681 = vld [vmem:[%s2 + $0x90] sm:$0xff]
        %v4682 = vld [vmem:[%s2 + $0x98] sm:$0xff]
        %v4683 = vld [vmem:[%s2 + $0xa0] sm:$0xff]
        %v4684 = vld [vmem:[%s2 + $0xa8] sm:$0xff]
        %v4685 = vld [vmem:[%s2 + $0xb0] sm:$0xff]
        %v4686 = vld [vmem:[%s2 + $0xb8] sm:$0xff]
        %v4687 = vld [vmem:[%s2 + $0xc0] sm:$0xff]
        %v4688 = vld [vmem:[%s2 + $0xc8] sm:$0xff]
        %v4689 = vld [vmem:[%s2 + $0xd0] sm:$0xff]
        %v4690 = vld [vmem:[%s2 + $0xd8] sm:$0xff]
        %v4691 = vld [vmem:[%s2 + $0xe0] sm:$0xff]
        %v4692 = vld [vmem:[%s2 + $0xe8] sm:$0xff]
        %v4693 = vld [vmem:[%s2 + $0xf0] sm:$0xff]
        %v4694 = vld [vmem:[%s2 + $0xf8] sm:$0xff]
        %v4695 = vld [vmem:[%s2 + $0x100] sm:$0xff]
        %v4696 = vld [vmem:[%s2 + $0x108] sm:$0xff]
        %v4697 = vld [vmem:[%s2 + $0x110] sm:$0xff]
        %v4698 = vld [vmem:[%s2 + $0x118] sm:$0xff]
        %4700 = vset.pattern.permute.xlu0 0
        %4701 = vperm.xlu0 %4700, %v4663
        %v4702 = vpop.permute.xlu0 %4701
        %4705 = vset.pattern.permute.xlu0 0
        %4706 = vperm.xlu0 %4705, %v4664
        %v4707 = vpop.permute.xlu0 %4706
        %4710 = vset.pattern.permute.xlu0 0
        %4711 = vperm.xlu0 %4710, %v4665
        %v4712 = vpop.permute.xlu0 %4711
        %4715 = vset.pattern.permute.xlu0 0
        %4716 = vperm.xlu0 %4715, %v4666
        %v4717 = vpop.permute.xlu0 %4716
        %4720 = vset.pattern.permute.xlu0 0
        %4721 = vperm.xlu0 %4720, %v4667
        %v4722 = vpop.permute.xlu0 %4721
        %4725 = vset.pattern.permute.xlu0 0
        %4726 = vperm.xlu0 %4725, %v4668
        %v4727 = vpop.permute.xlu0 %4726
        %4730 = vset.pattern.permute.xlu0 0
        %4731 = vperm.xlu0 %4730, %v4669
        %v4732 = vpop.permute.xlu0 %4731
        %4735 = vset.pattern.permute.xlu0 0
        %4736 = vperm.xlu0 %4735, %v4670
        %v4737 = vpop.permute.xlu0 %4736
        %4740 = vset.pattern.permute.xlu0 0
        %4741 = vperm.xlu0 %4740, %v4671
        %v4742 = vpop.permute.xlu0 %4741
        %4745 = vset.pattern.permute.xlu0 0
        %4746 = vperm.xlu0 %4745, %v4672
        %v4747 = vpop.permute.xlu0 %4746
        %4750 = vset.pattern.permute.xlu0 0
        %4751 = vperm.xlu0 %4750, %v4673
        %v4752 = vpop.permute.xlu0 %4751
        %4755 = vset.pattern.permute.xlu0 0
        %4756 = vperm.xlu0 %4755, %v4674
        %v4757 = vpop.permute.xlu0 %4756
        %4760 = vset.pattern.permute.xlu0 0
        %4761 = vperm.xlu0 %4760, %v4675
        %v4762 = vpop.permute.xlu0 %4761
        %4765 = vset.pattern.permute.xlu0 0
        %4766 = vperm.xlu0 %4765, %v4676
        %v4767 = vpop.permute.xlu0 %4766
        %4770 = vset.pattern.permute.xlu0 0
        %4771 = vperm.xlu0 %4770, %v4677
        %v4772 = vpop.permute.xlu0 %4771
        %4775 = vset.pattern.permute.xlu0 0
        %4776 = vperm.xlu0 %4775, %v4678
        %v4777 = vpop.permute.xlu0 %4776
        %4780 = vset.pattern.permute.xlu0 0
        %4781 = vperm.xlu0 %4780, %v4679
        %v4782 = vpop.permute.xlu0 %4781
        %4785 = vset.pattern.permute.xlu0 0
        %4786 = vperm.xlu0 %4785, %v4680
        %v4787 = vpop.permute.xlu0 %4786
        %4790 = vset.pattern.permute.xlu0 0
        %4791 = vperm.xlu0 %4790, %v4681
        %v4792 = vpop.permute.xlu0 %4791
        %4795 = vset.pattern.permute.xlu0 0
        %4796 = vperm.xlu0 %4795, %v4682
        %v4797 = vpop.permute.xlu0 %4796
        %4800 = vset.pattern.permute.xlu0 0
        %4801 = vperm.xlu0 %4800, %v4683
        %v4802 = vpop.permute.xlu0 %4801
        %4805 = vset.pattern.permute.xlu0 0
        %4806 = vperm.xlu0 %4805, %v4684
        %v4807 = vpop.permute.xlu0 %4806
        %4810 = vset.pattern.permute.xlu0 0
        %4811 = vperm.xlu0 %4810, %v4685
        %v4812 = vpop.permute.xlu0 %4811
        %4815 = vset.pattern.permute.xlu0 0
        %4816 = vperm.xlu0 %4815, %v4686
        %v4817 = vpop.permute.xlu0 %4816
        %4820 = vset.pattern.permute.xlu0 0
        %4821 = vperm.xlu0 %4820, %v4687
        %v4822 = vpop.permute.xlu0 %4821
        %4825 = vset.pattern.permute.xlu0 0
        %4826 = vperm.xlu0 %4825, %v4688
        %v4827 = vpop.permute.xlu0 %4826
        %4830 = vset.pattern.permute.xlu0 0
        %4831 = vperm.xlu0 %4830, %v4689
        %v4832 = vpop.permute.xlu0 %4831
        %4835 = vset.pattern.permute.xlu0 0
        %4836 = vperm.xlu0 %4835, %v4690
        %v4837 = vpop.permute.xlu0 %4836
        %4840 = vset.pattern.permute.xlu0 0
        %4841 = vperm.xlu0 %4840, %v4691
        %v4842 = vpop.permute.xlu0 %4841
        %4845 = vset.pattern.permute.xlu0 0
        %4846 = vperm.xlu0 %4845, %v4692
        %v4847 = vpop.permute.xlu0 %4846
        %4850 = vset.pattern.permute.xlu0 0
        %4851 = vperm.xlu0 %4850, %v4693
        %v4852 = vpop.permute.xlu0 %4851
        %4855 = vset.pattern.permute.xlu0 0
        %4856 = vperm.xlu0 %4855, %v4694
        %v4857 = vpop.permute.xlu0 %4856
        %4860 = vset.pattern.permute.xlu0 0
        %4861 = vperm.xlu0 %4860, %v4695
        %v4862 = vpop.permute.xlu0 %4861
        %4865 = vset.pattern.permute.xlu0 0
        %4866 = vperm.xlu0 %4865, %v4696
        %v4867 = vpop.permute.xlu0 %4866
        %4870 = vset.pattern.permute.xlu0 0
        %4871 = vperm.xlu0 %4870, %v4697
        %v4872 = vpop.permute.xlu0 %4871
        %4875 = vset.pattern.permute.xlu0 0
        %4876 = vperm.xlu0 %4875, %v4698
        %v4877 = vpop.permute.xlu0 %4876
        %v4879 = vmul.f32 %v4627, %v4702
        %v4880 = vmul.f32 %v4628, %v4707
        %v4881 = vmul.f32 %v4629, %v4712
        %v4882 = vmul.f32 %v4630, %v4717
        %v4883 = vmul.f32 %v4631, %v4722
        %v4884 = vmul.f32 %v4632, %v4727
        %v4885 = vmul.f32 %v4633, %v4732
        %v4886 = vmul.f32 %v4634, %v4737
        %v4887 = vmul.f32 %v4635, %v4742
        %v4888 = vmul.f32 %v4636, %v4747
        %v4889 = vmul.f32 %v4637, %v4752
        %v4890 = vmul.f32 %v4638, %v4757
        %v4891 = vmul.f32 %v4639, %v4762
        %v4892 = vmul.f32 %v4640, %v4767
        %v4893 = vmul.f32 %v4641, %v4772
        %v4894 = vmul.f32 %v4642, %v4777
        %v4895 = vmul.f32 %v4643, %v4782
        %v4896 = vmul.f32 %v4644, %v4787
        %v4897 = vmul.f32 %v4645, %v4792
        %v4898 = vmul.f32 %v4646, %v4797
        %v4899 = vmul.f32 %v4647, %v4802
        %v4900 = vmul.f32 %v4648, %v4807
        %v4901 = vmul.f32 %v4649, %v4812
        %v4902 = vmul.f32 %v4650, %v4817
        %v4903 = vmul.f32 %v4651, %v4822
        %v4904 = vmul.f32 %v4652, %v4827
        %v4905 = vmul.f32 %v4653, %v4832
        %v4906 = vmul.f32 %v4654, %v4837
        %v4907 = vmul.f32 %v4655, %v4842
        %v4908 = vmul.f32 %v4656, %v4847
        %v4909 = vmul.f32 %v4657, %v4852
        %v4910 = vmul.f32 %v4658, %v4857
        %v4911 = vmul.f32 %v4659, %v4862
        %v4912 = vmul.f32 %v4660, %v4867
        %v4913 = vmul.f32 %v4661, %v4872
        %v4914 = vmul.f32 %v4662, %v4877
        %v4915 = vadd.f32 %v4879, %v4880
        %v4916 = vadd.f32 %v4915, %v4881
        %v4917 = vadd.f32 %v4916, %v4882
        %v4918 = vadd.f32 %v4917, %v4883
        %v4919 = vadd.f32 %v4918, %v4884
        %v4920 = vadd.f32 %v4919, %v4885
        %v4921 = vadd.f32 %v4920, %v4886
        %v4922 = vadd.f32 %v4921, %v4887
        %v4923 = vadd.f32 %v4922, %v4888
        %v4924 = vadd.f32 %v4923, %v4889
        %v4925 = vadd.f32 %v4924, %v4890
        %v4926 = vadd.f32 %v4925, %v4891
        %v4927 = vadd.f32 %v4926, %v4892
        %v4928 = vadd.f32 %v4927, %v4893
        %v4929 = vadd.f32 %v4928, %v4894
        %v4930 = vadd.f32 %v4929, %v4895
        %v4931 = vadd.f32 %v4930, %v4896
        %v4932 = vadd.f32 %v4931, %v4897
        %v4933 = vadd.f32 %v4932, %v4898
        %v4934 = vadd.f32 %v4933, %v4899
        %v4935 = vadd.f32 %v4934, %v4900
        %v4936 = vadd.f32 %v4935, %v4901
        %v4937 = vadd.f32 %v4936, %v4902
        %v4938 = vadd.f32 %v4937, %v4903
        %v4939 = vadd.f32 %v4938, %v4904
        %v4940 = vadd.f32 %v4939, %v4905
        %v4941 = vadd.f32 %v4940, %v4906
        %v4942 = vadd.f32 %v4941, %v4907
        %v4943 = vadd.f32 %v4942, %v4908
        %v4944 = vadd.f32 %v4943, %v4909
        %v4945 = vadd.f32 %v4944, %v4910
        %v4946 = vadd.f32 %v4945, %v4911
        %v4947 = vadd.f32 %v4946, %v4912
        %v4948 = vadd.f32 %v4947, %v4913
        %v4949 = vadd.f32 %v4948, %v4914
        %v4950 = vrot.slane %v4949, 4
        %v4951 = vadd.f32 %v4949, %v4950
        %v4952 = vrot.slane %v4951, 2
        %v4953 = vadd.f32 %v4951, %v4952
        %v4954 = vrot.slane %v4953, 1
        %v4955 = vadd.f32 %v4953, %v4954
        %v4956 = vmul.f32 %v4879, %v4627
        %v4957 = vmul.f32 %v4880, %v4628
        %v4958 = vmul.f32 %v4881, %v4629
        %v4959 = vmul.f32 %v4882, %v4630
        %v4960 = vmul.f32 %v4883, %v4631
        %v4961 = vmul.f32 %v4884, %v4632
        %v4962 = vmul.f32 %v4885, %v4633
        %v4963 = vmul.f32 %v4886, %v4634
        %v4964 = vmul.f32 %v4887, %v4635
        %v4965 = vmul.f32 %v4888, %v4636
        %v4966 = vmul.f32 %v4889, %v4637
        %v4967 = vmul.f32 %v4890, %v4638
        %v4968 = vmul.f32 %v4891, %v4639
        %v4969 = vmul.f32 %v4892, %v4640
        %v4970 = vmul.f32 %v4893, %v4641
        %v4971 = vmul.f32 %v4894, %v4642
        %v4972 = vmul.f32 %v4895, %v4643
        %v4973 = vmul.f32 %v4896, %v4644
        %v4974 = vmul.f32 %v4897, %v4645
        %v4975 = vmul.f32 %v4898, %v4646
        %v4976 = vmul.f32 %v4899, %v4647
        %v4977 = vmul.f32 %v4900, %v4648
        %v4978 = vmul.f32 %v4901, %v4649
        %v4979 = vmul.f32 %v4902, %v4650
        %v4980 = vmul.f32 %v4903, %v4651
        %v4981 = vmul.f32 %v4904, %v4652
        %v4982 = vmul.f32 %v4905, %v4653
        %v4983 = vmul.f32 %v4906, %v4654
        %v4984 = vmul.f32 %v4907, %v4655
        %v4985 = vmul.f32 %v4908, %v4656
        %v4986 = vmul.f32 %v4909, %v4657
        %v4987 = vmul.f32 %v4910, %v4658
        %v4988 = vmul.f32 %v4911, %v4659
        %v4989 = vmul.f32 %v4912, %v4660
        %v4990 = vmul.f32 %v4913, %v4661
        %v4991 = vmul.f32 %v4914, %v4662
        %v4992 = vadd.f32 %v4956, %v4957
        %v4993 = vadd.f32 %v4992, %v4958
        %v4994 = vadd.f32 %v4993, %v4959
        %v4995 = vadd.f32 %v4994, %v4960
        %v4996 = vadd.f32 %v4995, %v4961
        %v4997 = vadd.f32 %v4996, %v4962
        %v4998 = vadd.f32 %v4997, %v4963
        %v4999 = vadd.f32 %v4998, %v4964
        %v5000 = vadd.f32 %v4999, %v4965
        %v5001 = vadd.f32 %v5000, %v4966
        %v5002 = vadd.f32 %v5001, %v4967
        %v5003 = vadd.f32 %v5002, %v4968
        %v5004 = vadd.f32 %v5003, %v4969
        %v5005 = vadd.f32 %v5004, %v4970
        %v5006 = vadd.f32 %v5005, %v4971
        %v5007 = vadd.f32 %v5006, %v4972
        %v5008 = vadd.f32 %v5007, %v4973
        %v5009 = vadd.f32 %v5008, %v4974
        %v5010 = vadd.f32 %v5009, %v4975
        %v5011 = vadd.f32 %v5010, %v4976
        %v5012 = vadd.f32 %v5011, %v4977
        %v5013 = vadd.f32 %v5012, %v4978
        %v5014 = vadd.f32 %v5013, %v4979
        %v5015 = vadd.f32 %v5014, %v4980
        %v5016 = vadd.f32 %v5015, %v4981
        %v5017 = vadd.f32 %v5016, %v4982
        %v5018 = vadd.f32 %v5017, %v4983
        %v5019 = vadd.f32 %v5018, %v4984
        %v5020 = vadd.f32 %v5019, %v4985
        %v5021 = vadd.f32 %v5020, %v4986
        %v5022 = vadd.f32 %v5021, %v4987
        %v5023 = vadd.f32 %v5022, %v4988
        %v5024 = vadd.f32 %v5023, %v4989
        %v5025 = vadd.f32 %v5024, %v4990
        %v5026 = vadd.f32 %v5025, %v4991
        %v5027 = vrot.slane %v5026, 4
        %v5028 = vadd.f32 %v5026, %v5027
        %v5029 = vrot.slane %v5028, 2
        %v5030 = vadd.f32 %v5028, %v5029
        %v5031 = vrot.slane %v5030, 1
        %v5032 = vadd.f32 %v5030, %v5031
        %vm5033 = vcmask 1040384
        %v5034 = vsel %vm5033, %v4955, %v5032
        %vm5035 = vcmask 1041408
        %v5036 = vsel %vm5035, %v5034, 0.0
        %5037 = vst [vmem:[%s201] sm:$0xff] %v5036
        %s5038 = sand.u32 %s98, 1
        %s5039 = scalar_lea.sflag [#allocation3], %s5038
        %s5040 = sand.u32 %s98, 1
        %s5041 = smul.addr %s5040, 288
        %s5042 = scalar_lea.vmem [#allocation2], %s5041
        %s5043 = sand.u32 %s124, 1
        %s5044 = scalar_lea.sflag [#allocation5], %s5043
        %s5045 = sand.u32 %s124, 1
        %s5046 = smul.addr %s5045, 8
        %s5047 = scalar_lea.vmem [#allocation4], %s5046
        // Predicated region
        $region33: #{tpu_custom_call.1} parent=31 // pred_check
          %p5048 = pneg %p108
        $region34: #{tpu_custom_call.1} parent=31 // pred_check_branch
          %5050 = sbr.rel (%p5048) target = $region36
        $region35: #{tpu_custom_call.1} parent=31 // pred_region
          %s5051 = smul.u32 36, %s22
          %s5053 = ssub.s32 4608, 4608
          %5054 = vsyncadd %s5039, %s5053
          %s5055 = smul.addr %s5051, 128
          %s5056 = scalar_lea.hbm %s3, %s5055
          %s5057 = sshll.u32 %s5042, 4
          %s5058 = int_to_ptr.vmem [resolvable:$true] %s5057
          %5063 = dma.vmem_to_hbm [thread:$0]  %s5058, 4608, %s5056, %s5039, 128, 128, 8
        $region36: #{tpu_custom_call.1} parent=31 // pred_fallthru
          _
        // Predicated region
        $region37: #{tpu_custom_call.1} parent=31 // pred_check
          %p5064 = pneg %p134
        $region38: #{tpu_custom_call.1} parent=31 // pred_check_branch
          %5066 = sbr.rel (%p5064) target = $region40
        $region39: #{tpu_custom_call.1} parent=31 // pred_region
          %s5068 = ssub.s32 128, 128
          %5069 = vsyncadd %s5044, %s5068
          %s5070 = smul.addr %s22, 128
          %s5071 = scalar_lea.hbm %s4, %s5070
          %s5073 = sshll.u32 %s5047, 4
          %s5074 = int_to_ptr.vmem [resolvable:$true] %s5073
          %5076 = dma.vmem_to_hbm [thread:$0]  %s5074, 128, %s5071, %s5044
        $region40: #{tpu_custom_call.1} parent=31 // pred_fallthru
          _
      $region32: #{tpu_custom_call.1} parent=5 // pred_fallthru
        _
      %p5077 = scmp.le.s32.totalorder 2, %s17
      // Predicated region
      $region41: #{tpu_custom_call.1} parent=5 // pred_check
        %p5078 = pneg %p5077
      $region42: #{tpu_custom_call.1} parent=5 // pred_check_branch
        %5080 = sbr.rel (%p5078) target = $region44
      $region43: #{tpu_custom_call.1} parent=5 // pred_region
        %s5081 = ssub.s32 %s17, 2
        // Predicated region
        $region45: #{tpu_custom_call.1} parent=43 // pred_check
          %p5082 = pneg %p114
        $region46: #{tpu_custom_call.1} parent=43 // pred_check_branch
          %5084 = sbr.rel (%p5082) target = $region48
        $region47: #{tpu_custom_call.1} parent=43 // pred_region
          %s5085 = sand.u32 %s99, 1
          %s5086 = scalar_lea.sflag [#allocation3], %s5085
          %s5087 = sand.u32 %s99, 1
          %s5088 = smul.addr %s5087, 288
          %s5089 = scalar_lea.vmem [#allocation2], %s5088
          %5090 = dma.done %s5086, 4608
        $region48: #{tpu_custom_call.1} parent=43 // pred_fallthru
          _
        // Predicated region
        $region49: #{tpu_custom_call.1} parent=43 // pred_check
          %p5091 = pneg %p140
        $region50: #{tpu_custom_call.1} parent=43 // pred_check_branch
          %5093 = sbr.rel (%p5091) target = $region52
        $region51: #{tpu_custom_call.1} parent=43 // pred_region
          %s5094 = sand.u32 %s125, 1
          %s5095 = scalar_lea.sflag [#allocation5], %s5094
          %s5096 = sand.u32 %s125, 1
          %s5097 = smul.addr %s5096, 8
          %s5098 = scalar_lea.vmem [#allocation4], %s5097
          %5099 = dma.done %s5095, 128
        $region52: #{tpu_custom_call.1} parent=43 // pred_fallthru
          _
      $region44: #{tpu_custom_call.1} parent=5 // pred_fallthru
        _
    $region6: #{tpu_custom_call.1} parent=1 // loop_footer
      %s21 = sadd.s32 1, %s17
    $region7: #{tpu_custom_call.1} parent=1 // loop_footer_branch
      %16 = sbr.rel target = $region3
    $region8: #{tpu_custom_call.1} parent=1 // loop_exit
      _
    %5100 = vsyncpa [#allocation3], 1
    %s5101 = scalar_lea.sflag [#allocation3], 1
    %5102 = vsyncpa %s5101, 1
    %5103 = vsyncpa [#allocation5], 1
    %s5104 = scalar_lea.sflag [#allocation5], 1
    %5105 = vsyncpa %s5104, 1

</llo_original>
